<compile_context>
chip_gen: v7x
topology: tpu7x:2x2x1
jax: 0.10.0
libtpu: 0.0.40
codegen_flags: <defaults>
</compile_context>

<pallas_src>
import functools
import math

import numpy as np
import jax
import jax.numpy as jnp
from jax.experimental import pallas as pl
from jax.experimental.pallas import tpu as pltpu

LN_EPS = 1e-5
EDGE_TYPE_IDX = {"reactant": 0, "product": 1}


def _round_up(x, m):
    return ((x + m - 1) // m) * m


# ----------------------------------------------------------------------------
# Pallas kernels
# ----------------------------------------------------------------------------
def _linear_kernel(x_ref, w_ref, b_ref, o_ref, *, relu):
    y = jnp.dot(x_ref[...], w_ref[...], preferred_element_type=jnp.float32) + b_ref[...]
    o_ref[...] = jnp.maximum(y, 0.0) if relu else y


def linear_pallas(x, w, b, relu=False):
    """y = x @ w + b (optionally ReLU).  All feature dims pre-padded to 128 lanes."""
    n, din = x.shape
    dout = w.shape[1]
    # TODO(synk): for large N/Dout add a (cdiv(N,tm), cdiv(Dout,tn), cdiv(Din,tk)) grid
    # with a f32 scratch accumulator and bf16 operands; at these tiny shapes a single
    # lane-dense block is already one tile.
    return pl.pallas_call(
        functools.partial(_linear_kernel, relu=relu),
        out_shape=jax.ShapeDtypeStruct((n, dout), jnp.float32),
        in_specs=[
            pl.BlockSpec((n, din), lambda: (0, 0)),
            pl.BlockSpec((din, dout), lambda: (0, 0)),
            pl.BlockSpec((1, dout), lambda: (0, 0)),
        ],
        out_specs=pl.BlockSpec((n, dout), lambda: (0, 0)),
    )(x, w, b.reshape(1, dout))


def _layernorm(y, g, b, inv_d):
    # Padded lanes of y are zero; divide by the *real* feature count.
    mean = jnp.sum(y, axis=-1, keepdims=True) * inv_d
    var = jnp.sum(y * y, axis=-1, keepdims=True) * inv_d - mean * mean
    var = jnp.maximum(var, 0.0)
    return (y - mean) * jax.lax.rsqrt(var + LN_EPS) * g + b


def _proj_res_ln_kernel(a_ref, x_ref, w_ref, b_ref, g_ref, bb_ref, o_ref, *, inv_d):
    y = x_ref[...] + jnp.dot(a_ref[...], w_ref[...],
                             preferred_element_type=jnp.float32) + b_ref[...]
    o_ref[...] = _layernorm(y, g_ref[...], bb_ref[...], inv_d)


def proj_residual_ln_pallas(attn, x, w, b, gamma, beta, d_real):
    n, dp = x.shape
    return pl.pallas_call(
        functools.partial(_proj_res_ln_kernel, inv_d=1.0 / d_real),
        out_shape=jax.ShapeDtypeStruct((n, dp), jnp.float32),
        in_specs=[
            pl.BlockSpec((n, dp), lambda: (0, 0)),
            pl.BlockSpec((n, dp), lambda: (0, 0)),
            pl.BlockSpec((dp, dp), lambda: (0, 0)),
            pl.BlockSpec((1, dp), lambda: (0, 0)),
            pl.BlockSpec((1, dp), lambda: (0, 0)),
            pl.BlockSpec((1, dp), lambda: (0, 0)),
        ],
        out_specs=pl.BlockSpec((n, dp), lambda: (0, 0)),
    )(attn, x, w, b.reshape(1, dp), gamma.reshape(1, dp), beta.reshape(1, dp))


def _ffn_res_ln_kernel(x_ref, w1_ref, b1_ref, w2_ref, b2_ref, g_ref, bb_ref, o_ref,
                       *, inv_d):
    xv = x_ref[...]
    h = jnp.maximum(jnp.dot(xv, w1_ref[...],
                            preferred_element_type=jnp.float32) + b1_ref[...], 0.0)
    y = xv + jnp.dot(h, w2_ref[...], preferred_element_type=jnp.float32) + b2_ref[...]
    o_ref[...] = _layernorm(y, g_ref[...], bb_ref[...], inv_d)


def ffn_residual_ln_pallas(x, w1, b1, w2, b2, gamma, beta, d_real):
    n, dp = x.shape
    ffp = w1.shape[1]
    return pl.pallas_call(
        functools.partial(_ffn_res_ln_kernel, inv_d=1.0 / d_real),
        out_shape=jax.ShapeDtypeStruct((n, dp), jnp.float32),
        in_specs=[
            pl.BlockSpec((n, dp), lambda: (0, 0)),
            pl.BlockSpec((dp, ffp), lambda: (0, 0)),
            pl.BlockSpec((1, ffp), lambda: (0, 0)),
            pl.BlockSpec((ffp, dp), lambda: (0, 0)),
            pl.BlockSpec((1, dp), lambda: (0, 0)),
            pl.BlockSpec((1, dp), lambda: (0, 0)),
            pl.BlockSpec((1, dp), lambda: (0, 0)),
        ],
        out_specs=pl.BlockSpec((n, dp), lambda: (0, 0)),
    )(x, w1, b1.reshape(1, ffp), w2, b2.reshape(1, dp),
      gamma.reshape(1, dp), beta.reshape(1, dp))


def _out_head_kernel(x_ref, w1_ref, b1_ref, w2_ref, b2_ref, o_ref):
    h = jnp.maximum(jnp.dot(x_ref[...], w1_ref[...],
                            preferred_element_type=jnp.float32) + b1_ref[...], 0.0)
    o_ref[...] = jnp.dot(h, w2_ref[...], preferred_element_type=jnp.float32) + b2_ref[...]


def out_head_pallas(x, w1, b1, w2, b2):
    n, dp = x.shape
    vp = w2.shape[1]
    return pl.pallas_call(
        _out_head_kernel,
        out_shape=jax.ShapeDtypeStruct((n, vp), jnp.float32),
        in_specs=[
            pl.BlockSpec((n, dp), lambda: (0, 0)),
            pl.BlockSpec((dp, dp), lambda: (0, 0)),
            pl.BlockSpec((1, dp), lambda: (0, 0)),
            pl.BlockSpec((dp, vp), lambda: (0, 0)),
            pl.BlockSpec((1, vp), lambda: (0, 0)),
        ],
        out_specs=pl.BlockSpec((n, vp), lambda: (0, 0)),
    )(x, w1, b1.reshape(1, dp), w2, b2.reshape(1, vp))


def _attention_kernel(q_ref, k_ref, v_ref, m_ref, kpm_ref, o_ref, *, scale):
    q = q_ref[0] * scale                  # scale q (O(S*Dh)) not the (S,S) scores
    k = k_ref[0]
    v = v_ref[0]
    # contract the last dims directly — no in-kernel transpose of k
    s = jnp.einsum('hqd,hkd->hqk', q, k, preferred_element_type=jnp.float32)
    bias = m_ref[...] + kpm_ref[0]        # (S,S) causal + (1,S) key-padding -> (S,S)
    s = s + bias[None, :, :]
    s = s - jnp.max(s, axis=-1, keepdims=True)
    p = jnp.exp(s)
    p = p * pl.reciprocal(jnp.sum(p, axis=-1, keepdims=True), approx=True)
    o_ref[0] = jnp.einsum('hqk,hkd->hqd', p, v, preferred_element_type=jnp.float32)


def attention_pallas(q, k, v, causal_mask, kpm_add, scale):
    """q,k,v:(B,H,S,Dh); causal_mask:(S,S) additive; kpm_add:(B,1,S) additive."""
    b, h, s, dh = q.shape
    qkv_spec = pl.BlockSpec((1, h, s, dh), lambda i: (i, 0, 0, 0))
    # TODO(synk): for long S switch to a flash-style (bh, S//tq, S//tk) grid with
    # online softmax; at S=9 the full-S scores trivially fit in VMEM.
    return pl.pallas_call(
        functools.partial(_attention_kernel, scale=scale),
        out_shape=jax.ShapeDtypeStruct((b, h, s, dh), jnp.float32),
        grid=(b,),
        in_specs=[
            qkv_spec, qkv_spec, qkv_spec,
            pl.BlockSpec((s, s), lambda i: (0, 0)),    # same mask block every step
            pl.BlockSpec((1, 1, s), lambda i: (i, 0, 0)),
        ],
        out_specs=qkv_spec,
        compiler_params=pltpu.CompilerParams(dimension_semantics=("parallel",)),
    )(q, k, v, causal_mask, kpm_add)


# ----------------------------------------------------------------------------
# Parameter initialization (deterministic, synthetic — mirrors PyTorch shapes,
# stored zero-padded to lane-dense widths)
# ----------------------------------------------------------------------------
def _pad2(w, rows, cols):
    return jnp.pad(w, ((0, rows - w.shape[0]), (0, cols - w.shape[1])))


def _pad1(v, n):
    return jnp.pad(v, (0, n - v.shape[0]))


def sinusoidal_pe(max_len, d):
    pos = np.arange(max_len)[:, None].astype(np.float32)
    div = np.exp(np.arange(0, d, 2).astype(np.float32) * (-math.log(10000.0) / d))
    pe = np.zeros((max_len, d), np.float32)
    pe[:, 0::2] = np.sin(pos * div)
    pe[:, 1::2] = np.cos(pos * div)
    return jnp.asarray(pe)


def init_params(key, net_dim, heads, dec_layers, n_words, mol_feat=300, max_len=64):
    dp = _round_up(net_dim, 128)
    ff = net_dim << 1
    ffp = _round_up(ff, 128)
    vp = _round_up(n_words, 128)
    molp = _round_up(mol_feat, 128)

    ks = list(jax.random.split(key, 16 + 16 * dec_layers))
    nk = iter(ks)

    def w(shape, scale=0.05):
        return jax.random.normal(next(nk), shape, jnp.float32) * scale

    params = {
        # edge_emb ParameterDict: 'reactant'(idx 0), 'product'(idx 1)
        "edge_emb": _pad2(jax.random.normal(next(nk), (2, net_dim), jnp.float32), 2, dp),
        "reaction_init": _pad1(jax.random.normal(next(nk), (net_dim,), jnp.float32), dp),
        "word_emb": _pad2(jax.random.normal(next(nk), (n_words, net_dim), jnp.float32),
                          n_words, dp),
        "pos_enc": _pad2(sinusoidal_pe(max_len, net_dim), max_len, dp),
        # self.linear : 300 -> net_dim
        "lin_w": _pad2(w((mol_feat, net_dim)), molp, dp),
        "lin_b": jnp.zeros((dp,), jnp.float32),
        # synthetic gnn2 weights
        "gnn_w": _pad2(w((net_dim, net_dim)), dp, dp),
        "gnn_b": jnp.zeros((dp,), jnp.float32),
        # out_layer: Linear(D,D) -> ReLU -> Dropout -> Linear(D,n_words)
        "out1_w": _pad2(w((net_dim, net_dim)), dp, dp),
        "out1_b": jnp.zeros((dp,), jnp.float32),
        "out2_w": _pad2(w((net_dim, n_words)), dp, vp),
        "out2_b": jnp.zeros((vp,), jnp.float32),
        "layers": [],
    }
    ln_g = _pad1(jnp.ones((net_dim,), jnp.float32), dp)   # padded lanes get gamma=0
    for _ in range(dec_layers):
        wq = _pad2(w((net_dim, net_dim)), dp, dp)
        wk = _pad2(w((net_dim, net_dim)), dp, dp)
        wv = _pad2(w((net_dim, net_dim)), dp, dp)
        params["layers"].append({
            # fused QKV projection: one (Dp, 3*Dp) matmul per layer
            "w_qkv": jnp.concatenate([wq, wk, wv], axis=1),
            "b_qkv": jnp.zeros((3 * dp,), jnp.float32),
            "wo": _pad2(w((net_dim, net_dim)), dp, dp),
            "bo": jnp.zeros((dp,), jnp.float32),
            "w1": _pad2(w((net_dim, ff)), dp, ffp),
            "b1": jnp.zeros((ffp,), jnp.float32),
            "w2": _pad2(w((ff, net_dim)), ffp, dp),
            "b2": jnp.zeros((dp,), jnp.float32),
            "ln1_g": ln_g, "ln1_b": jnp.zeros((dp,), jnp.float32),
            "ln2_g": ln_g, "ln2_b": jnp.zeros((dp,), jnp.float32),
        })
    return params


# ----------------------------------------------------------------------------
# Model (glue in JAX, hot paths in fused Pallas kernels)
# ----------------------------------------------------------------------------
def transformer_encoder_layer(x, lp, causal_mask, kpm_add, heads, d_real):
    # PyTorch TransformerEncoderLayer, post-LN, ReLU FFN, dropout = identity (eval).
    b, s, dp = x.shape
    dh = d_real // heads
    n = b * s
    x2 = x.reshape(n, dp)

    qkv = linear_pallas(x2, lp["w_qkv"], lp["b_qkv"])         # (N, 3*Dp), lane-dense
    q = qkv[:, 0:d_real]
    k = qkv[:, dp:dp + d_real]
    v = qkv[:, 2 * dp:2 * dp + d_real]

    def split(t):
        return t.reshape(b, s, heads, dh).transpose(0, 2, 1, 3)   # (B, H, S, Dh)

    attn = attention_pallas(split(q), split(k), split(v), causal_mask, kpm_add,
                            1.0 / math.sqrt(dh))
    attn = attn.transpose(0, 2, 1, 3).reshape(n, d_real)
    attn = jnp.pad(attn, ((0, 0), (0, dp - d_real)))

    x2 = proj_residual_ln_pallas(attn, x2, lp["wo"], lp["bo"],
                                 lp["ln1_g"], lp["ln1_b"], d_real)
    x2 = ffn_residual_ln_pallas(x2, lp["w1"], lp["b1"], lp["w2"], lp["b2"],
                                lp["ln2_g"], lp["ln2_b"], d_real)
    return x2.reshape(b, s, dp)


def encode(params, molecules, mol_ids, rxn_ids, required_ids, edge_index,
           edge_type_ids, n_nodes):
    dp = params["reaction_init"].shape[0]
    molp = params["lin_w"].shape[0]
    mol2d = jnp.squeeze(molecules, axis=1)
    mol2d = jnp.pad(mol2d, ((0, 0), (0, molp - mol2d.shape[1])))
    mol_proj = linear_pallas(mol2d, params["lin_w"], params["lin_b"])

    x_feat = jnp.zeros((n_nodes, dp), jnp.float32)
    x_feat = x_feat.at[mol_ids].set(mol_proj)
    x_feat = x_feat.at[rxn_ids].set(params["reaction_init"])

    edge_feats = jnp.take(params["edge_emb"], edge_type_ids, axis=0)

    # TODO(synk): gnn2 is an injected module in the PyTorch spec; a simple scatter-add
    # message-passing step stands in for it (graph scatter/gather stays in XLA).
    src, dst = edge_index[0], edge_index[1]
    msgs = jnp.take(x_feat, src, axis=0) + edge_feats
    agg = jnp.zeros_like(x_feat).at[dst].add(msgs)
    net_x = linear_pallas(x_feat + agg, params["gnn_w"], params["gnn_b"], relu=True)
    return jnp.take(net_x, required_ids, axis=0)


def decode(params, memory, labels, attn_mask, heads, net_dim, n_words,
           key_padding_mask=None):
    b, l = labels.shape
    dp = memory.shape[-1]
    s = l + 1
    x_input = jnp.take(params["word_emb"], labels, axis=0)               # (B, L, Dp)
    seq = jnp.concatenate([memory[:, None, :], x_input], axis=1)         # (B, S, Dp)
    seq = seq + params["pos_enc"][:s][None, :, :]                        # self.pos_enc

    causal_mask = attn_mask.astype(jnp.float32)                          # (S, S)
    if key_padding_mask is None:
        kpm_add = jnp.zeros((b, 1, s), jnp.float32)
    else:
        kpm_add = jnp.where(key_padding_mask, -1e9, 0.0).astype(jnp.float32)[:, None, :]

    x = seq
    for lp in params["layers"]:
        x = transformer_encoder_layer(x, lp, causal_mask, kpm_add, heads, net_dim)

    x2 = x.reshape(b * s, dp)
    # TODO(synk): dropout layers are identity at inference; no RNG dropout emitted.
    logits = out_head_pallas(x2, params["out1_w"], params["out1_b"],
                             params["out2_w"], params["out2_b"])
    return logits.reshape(b, s, -1)[:, :, :n_words]


@functools.partial(jax.jit, static_argnames=("heads", "net_dim", "n_words", "n_nodes"))
def forward(params, molecules, mol_ids, rxn_ids, required_ids, edge_index,
            edge_type_ids, labels, attn_mask, key_padding_mask=None, *,
            heads, net_dim, n_words, n_nodes):
    memory = encode(params, molecules, mol_ids, rxn_ids, required_ids,
                    edge_index, edge_type_ids, n_nodes)
    return decode(params, memory, labels, attn_mask, heads, net_dim, n_words,
                  key_padding_mask=key_padding_mask)


# ----------------------------------------------------------------------------
if __name__ == "__main__":
    key = jax.random.PRNGKey(0)
    k_par, k_mol, k_lab = jax.random.split(key, 3)

    net_dim, heads, dec_layers, n_words = 32, 4, 2, 50
    params = init_params(k_par, net_dim, heads, dec_layers, n_words)

    # small synthetic reaction graph: 4 molecule nodes + 2 reaction nodes
    n_mol, n_rxn = 4, 2
    n_nodes = n_mol + n_rxn
    molecules = jax.random.normal(k_mol, (n_mol, 1, 300), jnp.float32)
    molecule_mask = np.array([True, True, True, True, False, False])
    reaction_mask = ~molecule_mask
    # host-side index precomputation keeps the jitted forward free of numpy
    mol_ids = jnp.asarray(np.nonzero(molecule_mask)[0], jnp.int32)
    rxn_ids = jnp.asarray(np.nonzero(reaction_mask)[0], jnp.int32)
    required_ids = jnp.array([4, 5], jnp.int32)
    edge_index = jnp.array([[0, 1, 2, 3, 4, 5],
                            [4, 4, 5, 5, 1, 3]], jnp.int32)
    edge_types = ["reactant", "reactant", "reactant", "reactant", "product", "product"]
    edge_type_ids = jnp.asarray([EDGE_TYPE_IDX[t] for t in edge_types], jnp.int32)

    # decoder inputs: batch=2 (one per required reaction), seq of 8 label tokens
    B, L = 2, 8
    S = L + 1
    labels = jax.random.randint(k_lab, (B, L), 0, n_words, dtype=jnp.int32)
    attn_mask = jnp.where(jnp.triu(jnp.ones((S, S), bool), 1), -1e9, 0.0).astype(jnp.float32)

    out = forward(params, molecules, mol_ids, rxn_ids, required_ids, edge_index,
                  edge_type_ids, labels, attn_mask,
                  heads=heads, net_dim=net_dim, n_words=n_words, n_nodes=n_nodes)
    out = jax.block_until_ready(out)
    assert out.shape == (B, S, n_words), out.shape
    assert bool(jnp.all(jnp.isfinite(out)))
    print("KERNEL_OK")
</pallas_src>

<mosaic_0001>
module attributes {stable_mosaic.version = 11 : i64} {
  func.func @_linear_kernel(%arg0: memref<4x384xf32, #tpu.memory_space<vmem>>, %arg1: memref<384x128xf32, #tpu.memory_space<vmem>>, %arg2: memref<1x128xf32, #tpu.memory_space<vmem>>, %arg3: memref<4x128xf32, #tpu.memory_space<vmem>>) attributes {dimension_semantics = [], scalar_prefetch = 0 : i64, scratch_operands = 0 : i64, tpu.core_type = #tpu.core_type<tc>} {
    %c0 = arith.constant 0 : index
    %c0_0 = arith.constant 0 : index
    %0 = vector.load %arg0[%c0, %c0_0] : memref<4x384xf32, #tpu.memory_space<vmem>>, vector<4x384xf32>
    %c0_1 = arith.constant 0 : index
    %c0_2 = arith.constant 0 : index
    %1 = vector.load %arg1[%c0_1, %c0_2] : memref<384x128xf32, #tpu.memory_space<vmem>>, vector<384x128xf32>
    %cst = arith.constant dense<0.000000e+00> : vector<4x128xf32>
    %2 = tpu.matmul %0, %1, %cst {dimension_numbers = #tpu.dot_dimension_numbers<[1], [0], [0], [1], [0, 0, 1, 1], [], []>} : vector<4x384xf32>, vector<384x128xf32>, vector<4x128xf32> -> vector<4x128xf32>
    %c0_3 = arith.constant 0 : index
    %c0_4 = arith.constant 0 : index
    %3 = vector.load %arg2[%c0_3, %c0_4] : memref<1x128xf32, #tpu.memory_space<vmem>>, vector<1x128xf32>
    %4 = vector.broadcast %3 : vector<1x128xf32> to vector<4x128xf32>
    %5 = arith.addf %2, %4 : vector<4x128xf32>
    %c0_5 = arith.constant 0 : index
    %c0_6 = arith.constant 0 : index
    %6 = vector.load %arg3[%c0_5, %c0_6] : memref<4x128xf32, #tpu.memory_space<vmem>>, vector<4x128xf32>
    tpu.vector_store %arg3[%c0_5, %c0_6], %5 {strides = array<i32>} : memref<4x128xf32, #tpu.memory_space<vmem>>, vector<4x128xf32>,
    return
  }
}

module attributes {stable_mosaic.version = 11 : i64} {
  func.func @_linear_kernel(%arg0: memref<6x128xf32, #tpu.memory_space<vmem>>, %arg1: memref<128x128xf32, #tpu.memory_space<vmem>>, %arg2: memref<1x128xf32, #tpu.memory_space<vmem>>, %arg3: memref<6x128xf32, #tpu.memory_space<vmem>>) attributes {dimension_semantics = [], scalar_prefetch = 0 : i64, scratch_operands = 0 : i64, tpu.core_type = #tpu.core_type<tc>} {
    %c0 = arith.constant 0 : index
    %c0_0 = arith.constant 0 : index
    %0 = vector.load %arg0[%c0, %c0_0] : memref<6x128xf32, #tpu.memory_space<vmem>>, vector<6x128xf32>
    %c0_1 = arith.constant 0 : index
    %c0_2 = arith.constant 0 : index
    %1 = vector.load %arg1[%c0_1, %c0_2] : memref<128x128xf32, #tpu.memory_space<vmem>>, vector<128x128xf32>
    %cst = arith.constant dense<0.000000e+00> : vector<6x128xf32>
    %2 = tpu.matmul %0, %1, %cst {dimension_numbers = #tpu.dot_dimension_numbers<[1], [0], [0], [1], [0, 0, 1, 1], [], []>} : vector<6x128xf32>, vector<128x128xf32>, vector<6x128xf32> -> vector<6x128xf32>
    %c0_3 = arith.constant 0 : index
    %c0_4 = arith.constant 0 : index
    %3 = vector.load %arg2[%c0_3, %c0_4] : memref<1x128xf32, #tpu.memory_space<vmem>>, vector<1x128xf32>
    %4 = vector.broadcast %3 : vector<1x128xf32> to vector<6x128xf32>
    %5 = arith.addf %2, %4 : vector<6x128xf32>
    %cst_5 = arith.constant 0.000000e+00 : f32
    %6 = vector.broadcast %cst_5 : f32 to vector<6x128xf32>
    %7 = arith.maximumf %5, %6 : vector<6x128xf32>
    %c0_6 = arith.constant 0 : index
    %c0_7 = arith.constant 0 : index
    %8 = vector.load %arg3[%c0_6, %c0_7] : memref<6x128xf32, #tpu.memory_space<vmem>>, vector<6x128xf32>
    tpu.vector_store %arg3[%c0_6, %c0_7], %7 {strides = array<i32>} : memref<6x128xf32, #tpu.memory_space<vmem>>, vector<6x128xf32>,
    return
  }
}

module attributes {stable_mosaic.version = 11 : i64} {
  func.func @_linear_kernel(%arg0: memref<18x128xf32, #tpu.memory_space<vmem>>, %arg1: memref<128x384xf32, #tpu.memory_space<vmem>>, %arg2: memref<1x384xf32, #tpu.memory_space<vmem>>, %arg3: memref<18x384xf32, #tpu.memory_space<vmem>>) attributes {dimension_semantics = [], scalar_prefetch = 0 : i64, scratch_operands = 0 : i64, tpu.core_type = #tpu.core_type<tc>} {
    %c0 = arith.constant 0 : index
    %c0_0 = arith.constant 0 : index
    %0 = vector.load %arg0[%c0, %c0_0] : memref<18x128xf32, #tpu.memory_space<vmem>>, vector<18x128xf32>
    %c0_1 = arith.constant 0 : index
    %c0_2 = arith.constant 0 : index
    %1 = vector.load %arg1[%c0_1, %c0_2] : memref<128x384xf32, #tpu.memory_space<vmem>>, vector<128x384xf32>
    %cst = arith.constant dense<0.000000e+00> : vector<18x384xf32>
    %2 = tpu.matmul %0, %1, %cst {dimension_numbers = #tpu.dot_dimension_numbers<[1], [0], [0], [1], [0, 0, 1, 1], [], []>} : vector<18x128xf32>, vector<128x384xf32>, vector<18x384xf32> -> vector<18x384xf32>
    %c0_3 = arith.constant 0 : index
    %c0_4 = arith.constant 0 : index
    %3 = vector.load %arg2[%c0_3, %c0_4] : memref<1x384xf32, #tpu.memory_space<vmem>>, vector<1x384xf32>
    %4 = vector.broadcast %3 : vector<1x384xf32> to vector<18x384xf32>
    %5 = arith.addf %2, %4 : vector<18x384xf32>
    %c0_5 = arith.constant 0 : index
    %c0_6 = arith.constant 0 : index
    %6 = vector.load %arg3[%c0_5, %c0_6] : memref<18x384xf32, #tpu.memory_space<vmem>>, vector<18x384xf32>
    tpu.vector_store %arg3[%c0_5, %c0_6], %5 {strides = array<i32>} : memref<18x384xf32, #tpu.memory_space<vmem>>, vector<18x384xf32>,
    return
  }
}

module attributes {stable_mosaic.version = 11 : i64} {
  func.func @_proj_res_ln_kernel(%arg0: memref<18x128xf32, #tpu.memory_space<vmem>>, %arg1: memref<18x128xf32, #tpu.memory_space<vmem>>, %arg2: memref<128x128xf32, #tpu.memory_space<vmem>>, %arg3: memref<1x128xf32, #tpu.memory_space<vmem>>, %arg4: memref<1x128xf32, #tpu.memory_space<vmem>>, %arg5: memref<1x128xf32, #tpu.memory_space<vmem>>, %arg6: memref<18x128xf32, #tpu.memory_space<vmem>>) attributes {dimension_semantics = [], scalar_prefetch = 0 : i64, scratch_operands = 0 : i64, tpu.core_type = #tpu.core_type<tc>} {
    %c0 = arith.constant 0 : index
    %c0_0 = arith.constant 0 : index
    %0 = vector.load %arg1[%c0, %c0_0] : memref<18x128xf32, #tpu.memory_space<vmem>>, vector<18x128xf32>
    %c0_1 = arith.constant 0 : index
    %c0_2 = arith.constant 0 : index
    %1 = vector.load %arg0[%c0_1, %c0_2] : memref<18x128xf32, #tpu.memory_space<vmem>>, vector<18x128xf32>
    %c0_3 = arith.constant 0 : index
    %c0_4 = arith.constant 0 : index
    %2 = vector.load %arg2[%c0_3, %c0_4] : memref<128x128xf32, #tpu.memory_space<vmem>>, vector<128x128xf32>
    %cst = arith.constant dense<0.000000e+00> : vector<18x128xf32>
    %3 = tpu.matmul %1, %2, %cst {dimension_numbers = #tpu.dot_dimension_numbers<[1], [0], [0], [1], [0, 0, 1, 1], [], []>} : vector<18x128xf32>, vector<128x128xf32>, vector<18x128xf32> -> vector<18x128xf32>
    %4 = arith.addf %0, %3 : vector<18x128xf32>
    %c0_5 = arith.constant 0 : index
    %c0_6 = arith.constant 0 : index
    %5 = vector.load %arg3[%c0_5, %c0_6] : memref<1x128xf32, #tpu.memory_space<vmem>>, vector<1x128xf32>
    %6 = vector.broadcast %5 : vector<1x128xf32> to vector<18x128xf32>
    %7 = arith.addf %4, %6 : vector<18x128xf32>
    %c0_7 = arith.constant 0 : index
    %c0_8 = arith.constant 0 : index
    %8 = vector.load %arg4[%c0_7, %c0_8] : memref<1x128xf32, #tpu.memory_space<vmem>>, vector<1x128xf32>
    %c0_9 = arith.constant 0 : index
    %c0_10 = arith.constant 0 : index
    %9 = vector.load %arg5[%c0_9, %c0_10] : memref<1x128xf32, #tpu.memory_space<vmem>>, vector<1x128xf32>
    %cst_11 = arith.constant dense<0.000000e+00> : vector<18xf32>
    %10 = vector.multi_reduction <add>, %7, %cst_11 [1] : vector<18x128xf32> to vector<18xf32>
    %11 = vector.shape_cast %10 : vector<18xf32> to vector<18x1xf32>
    %cst_12 = arith.constant 3.125000e-02 : f32
    %12 = vector.broadcast %cst_12 : f32 to vector<18x1xf32>
    %13 = arith.mulf %11, %12 : vector<18x1xf32>
    %14 = arith.mulf %7, %7 : vector<18x128xf32>
    %cst_13 = arith.constant dense<0.000000e+00> : vector<18xf32>
    %15 = vector.multi_reduction <add>, %14, %cst_13 [1] : vector<18x128xf32> to vector<18xf32>
    %16 = vector.shape_cast %15 : vector<18xf32> to vector<18x1xf32>
    %cst_14 = arith.constant 3.125000e-02 : f32
    %17 = vector.broadcast %cst_14 : f32 to vector<18x1xf32>
    %18 = arith.mulf %16, %17 : vector<18x1xf32>
    %19 = arith.mulf %13, %13 : vector<18x1xf32>
    %20 = arith.subf %18, %19 : vector<18x1xf32>
    %cst_15 = arith.constant 0.000000e+00 : f32
    %21 = vector.broadcast %cst_15 : f32 to vector<18x1xf32>
    %22 = arith.maximumf %20, %21 : vector<18x1xf32>
    %23 = vector.broadcast %13 : vector<18x1xf32> to vector<18x128xf32>
    %24 = arith.subf %7, %23 : vector<18x128xf32>
    %cst_16 = arith.constant 9.99999974E-6 : f32
    %25 = vector.broadcast %cst_16 : f32 to vector<18x1xf32>
    %26 = arith.addf %22, %25 : vector<18x1xf32>
    %27 = math.rsqrt %26 : vector<18x1xf32>
    %28 = vector.broadcast %27 : vector<18x1xf32> to vector<18x128xf32>
    %29 = arith.mulf %24, %28 : vector<18x128xf32>
    %30 = vector.broadcast %8 : vector<1x128xf32> to vector<18x128xf32>
    %31 = arith.mulf %29, %30 : vector<18x128xf32>
    %32 = vector.broadcast %9 : vector<1x128xf32> to vector<18x128xf32>
    %33 = arith.addf %31, %32 : vector<18x128xf32>
    %c0_17 = arith.constant 0 : index
    %c0_18 = arith.constant 0 : index
    %34 = vector.load %arg6[%c0_17, %c0_18] : memref<18x128xf32, #tpu.memory_space<vmem>>, vector<18x128xf32>
    tpu.vector_store %arg6[%c0_17, %c0_18], %33 {strides = array<i32>} : memref<18x128xf32, #tpu.memory_space<vmem>>, vector<18x128xf32>,
    return
  }
}

module attributes {stable_mosaic.version = 11 : i64} {
  func.func @_ffn_res_ln_kernel(%arg0: memref<18x128xf32, #tpu.memory_space<vmem>>, %arg1: memref<128x128xf32, #tpu.memory_space<vmem>>, %arg2: memref<1x128xf32, #tpu.memory_space<vmem>>, %arg3: memref<128x128xf32, #tpu.memory_space<vmem>>, %arg4: memref<1x128xf32, #tpu.memory_space<vmem>>, %arg5: memref<1x128xf32, #tpu.memory_space<vmem>>, %arg6: memref<1x128xf32, #tpu.memory_space<vmem>>, %arg7: memref<18x128xf32, #tpu.memory_space<vmem>>) attributes {dimension_semantics = [], scalar_prefetch = 0 : i64, scratch_operands = 0 : i64, tpu.core_type = #tpu.core_type<tc>} {
    %c0 = arith.constant 0 : index
    %c0_0 = arith.constant 0 : index
    %0 = vector.load %arg0[%c0, %c0_0] : memref<18x128xf32, #tpu.memory_space<vmem>>, vector<18x128xf32>
    %c0_1 = arith.constant 0 : index
    %c0_2 = arith.constant 0 : index
    %1 = vector.load %arg1[%c0_1, %c0_2] : memref<128x128xf32, #tpu.memory_space<vmem>>, vector<128x128xf32>
    %cst = arith.constant dense<0.000000e+00> : vector<18x128xf32>
    %2 = tpu.matmul %0, %1, %cst {dimension_numbers = #tpu.dot_dimension_numbers<[1], [0], [0], [1], [0, 0, 1, 1], [], []>} : vector<18x128xf32>, vector<128x128xf32>, vector<18x128xf32> -> vector<18x128xf32>
    %c0_3 = arith.constant 0 : index
    %c0_4 = arith.constant 0 : index
    %3 = vector.load %arg2[%c0_3, %c0_4] : memref<1x128xf32, #tpu.memory_space<vmem>>, vector<1x128xf32>
    %4 = vector.broadcast %3 : vector<1x128xf32> to vector<18x128xf32>
    %5 = arith.addf %2, %4 : vector<18x128xf32>
    %cst_5 = arith.constant 0.000000e+00 : f32
    %6 = vector.broadcast %cst_5 : f32 to vector<18x128xf32>
    %7 = arith.maximumf %5, %6 : vector<18x128xf32>
    %c0_6 = arith.constant 0 : index
    %c0_7 = arith.constant 0 : index
    %8 = vector.load %arg3[%c0_6, %c0_7] : memref<128x128xf32, #tpu.memory_space<vmem>>, vector<128x128xf32>
    %cst_8 = arith.constant dense<0.000000e+00> : vector<18x128xf32>
    %9 = tpu.matmul %7, %8, %cst_8 {dimension_numbers = #tpu.dot_dimension_numbers<[1], [0], [0], [1], [0, 0, 1, 1], [], []>} : vector<18x128xf32>, vector<128x128xf32>, vector<18x128xf32> -> vector<18x128xf32>
    %10 = arith.addf %0, %9 : vector<18x128xf32>
    %c0_9 = arith.constant 0 : index
    %c0_10 = arith.constant 0 : index
    %11 = vector.load %arg4[%c0_9, %c0_10] : memref<1x128xf32, #tpu.memory_space<vmem>>, vector<1x128xf32>
    %12 = vector.broadcast %11 : vector<1x128xf32> to vector<18x128xf32>
    %13 = arith.addf %10, %12 : vector<18x128xf32>
    %c0_11 = arith.constant 0 : index
    %c0_12 = arith.constant 0 : index
    %14 = vector.load %arg5[%c0_11, %c0_12] : memref<1x128xf32, #tpu.memory_space<vmem>>, vector<1x128xf32>
    %c0_13 = arith.constant 0 : index
    %c0_14 = arith.constant 0 : index
    %15 = vector.load %arg6[%c0_13, %c0_14] : memref<1x128xf32, #tpu.memory_space<vmem>>, vector<1x128xf32>
    %cst_15 = arith.constant dense<0.000000e+00> : vector<18xf32>
    %16 = vector.multi_reduction <add>, %13, %cst_15 [1] : vector<18x128xf32> to vector<18xf32>
    %17 = vector.shape_cast %16 : vector<18xf32> to vector<18x1xf32>
    %cst_16 = arith.constant 3.125000e-02 : f32
    %18 = vector.broadcast %cst_16 : f32 to vector<18x1xf32>
    %19 = arith.mulf %17, %18 : vector<18x1xf32>
    %20 = arith.mulf %13, %13 : vector<18x128xf32>
    %cst_17 = arith.constant dense<0.000000e+00> : vector<18xf32>
    %21 = vector.multi_reduction <add>, %20, %cst_17 [1] : vector<18x128xf32> to vector<18xf32>
    %22 = vector.shape_cast %21 : vector<18xf32> to vector<18x1xf32>
    %cst_18 = arith.constant 3.125000e-02 : f32
    %23 = vector.broadcast %cst_18 : f32 to vector<18x1xf32>
    %24 = arith.mulf %22, %23 : vector<18x1xf32>
    %25 = arith.mulf %19, %19 : vector<18x1xf32>
    %26 = arith.subf %24, %25 : vector<18x1xf32>
    %cst_19 = arith.constant 0.000000e+00 : f32
    %27 = vector.broadcast %cst_19 : f32 to vector<18x1xf32>
    %28 = arith.maximumf %26, %27 : vector<18x1xf32>
    %29 = vector.broadcast %19 : vector<18x1xf32> to vector<18x128xf32>
    %30 = arith.subf %13, %29 : vector<18x128xf32>
    %cst_20 = arith.constant 9.99999974E-6 : f32
    %31 = vector.broadcast %cst_20 : f32 to vector<18x1xf32>
    %32 = arith.addf %28, %31 : vector<18x1xf32>
    %33 = math.rsqrt %32 : vector<18x1xf32>
    %34 = vector.broadcast %33 : vector<18x1xf32> to vector<18x128xf32>
    %35 = arith.mulf %30, %34 : vector<18x128xf32>
    %36 = vector.broadcast %14 : vector<1x128xf32> to vector<18x128xf32>
    %37 = arith.mulf %35, %36 : vector<18x128xf32>
    %38 = vector.broadcast %15 : vector<1x128xf32> to vector<18x128xf32>
    %39 = arith.addf %37, %38 : vector<18x128xf32>
    %c0_21 = arith.constant 0 : index
    %c0_22 = arith.constant 0 : index
    %40 = vector.load %arg7[%c0_21, %c0_22] : memref<18x128xf32, #tpu.memory_space<vmem>>, vector<18x128xf32>
    tpu.vector_store %arg7[%c0_21, %c0_22], %39 {strides = array<i32>} : memref<18x128xf32, #tpu.memory_space<vmem>>, vector<18x128xf32>,
    return
  }
}

module attributes {stable_mosaic.version = 11 : i64} {
  func.func @_attention_kernel(%arg0: i32, %arg1: memref<1x4x9x8xf32, #tpu.memory_space<vmem>>, %arg2: memref<1x4x9x8xf32, #tpu.memory_space<vmem>>, %arg3: memref<1x4x9x8xf32, #tpu.memory_space<vmem>>, %arg4: memref<9x9xf32, #tpu.memory_space<vmem>>, %arg5: memref<1x1x9xf32, #tpu.memory_space<vmem>>, %arg6: memref<1x4x9x8xf32, #tpu.memory_space<vmem>>) attributes {dimension_semantics = [#tpu.dimension_semantics<parallel>], iteration_bounds = array<i64: 2>, scalar_prefetch = 0 : i64, scratch_operands = 0 : i64, tpu.core_type = #tpu.core_type<tc>, window_params = [{transform_indices = @transform_0, window_bounds = array<i64: 1, 4, 9, 8>}, {transform_indices = @transform_1, window_bounds = array<i64: 1, 4, 9, 8>}, {transform_indices = @transform_2, window_bounds = array<i64: 1, 4, 9, 8>}, {pipeline_mode = #tpu.pipeline_mode<synchronous>, transform_indices = @transform_3, window_bounds = array<i64: 9, 9>}, {transform_indices = @transform_4, window_bounds = array<i64: 1, 1, 9>}, {transform_indices = @transform_5, window_bounds = array<i64: 1, 4, 9, 8>}]} {
    %c0 = arith.constant 0 : index
    %c0_0 = arith.constant 0 : index
    %c0_1 = arith.constant 0 : index
    %c0_2 = arith.constant 0 : index
    %0 = vector.load %arg1[%c0, %c0_0, %c0_1, %c0_2] : memref<1x4x9x8xf32, #tpu.memory_space<vmem>>, vector<1x4x9x8xf32>
    %1 = vector.shape_cast %0 : vector<1x4x9x8xf32> to vector<4x9x8xf32>
    %cst = arith.constant 0.353553385 : f32
    %2 = vector.broadcast %cst : f32 to vector<4x9x8xf32>
    %3 = arith.mulf %1, %2 : vector<4x9x8xf32>
    %c0_3 = arith.constant 0 : index
    %c0_4 = arith.constant 0 : index
    %c0_5 = arith.constant 0 : index
    %c0_6 = arith.constant 0 : index
    %4 = vector.load %arg2[%c0_3, %c0_4, %c0_5, %c0_6] : memref<1x4x9x8xf32, #tpu.memory_space<vmem>>, vector<1x4x9x8xf32>
    %5 = vector.shape_cast %4 : vector<1x4x9x8xf32> to vector<4x9x8xf32>
    %c0_7 = arith.constant 0 : index
    %c0_8 = arith.constant 0 : index
    %c0_9 = arith.constant 0 : index
    %c0_10 = arith.constant 0 : index
    %6 = vector.load %arg3[%c0_7, %c0_8, %c0_9, %c0_10] : memref<1x4x9x8xf32, #tpu.memory_space<vmem>>, vector<1x4x9x8xf32>
    %7 = vector.shape_cast %6 : vector<1x4x9x8xf32> to vector<4x9x8xf32>
    "tpu.trace_start"() <{level = 10 : i32, message = "hqd,hkd->hqk"}> : () -> ()
    %cst_11 = arith.constant dense<0.000000e+00> : vector<4x9x9xf32>
    %8 = tpu.matmul %3, %5, %cst_11 {dimension_numbers = #tpu.dot_dimension_numbers<[2], [2], [1], [1], [0, 0, 0, 1, 1, 1], [0], [0]>} : vector<4x9x8xf32>, vector<4x9x8xf32>, vector<4x9x9xf32> -> vector<4x9x9xf32>
    "tpu.trace_stop"() : () -> ()
    %c0_12 = arith.constant 0 : index
    %c0_13 = arith.constant 0 : index
    %9 = vector.load %arg4[%c0_12, %c0_13] : memref<9x9xf32, #tpu.memory_space<vmem>>, vector<9x9xf32>
    %c0_14 = arith.constant 0 : index
    %c0_15 = arith.constant 0 : index
    %c0_16 = arith.constant 0 : index
    %10 = vector.load %arg5[%c0_14, %c0_15, %c0_16] : memref<1x1x9xf32, #tpu.memory_space<vmem>>, vector<1x1x9xf32>
    %11 = vector.shape_cast %10 : vector<1x1x9xf32> to vector<1x9xf32>
    %12 = vector.broadcast %11 : vector<1x9xf32> to vector<9x9xf32>
    %13 = arith.addf %9, %12 : vector<9x9xf32>
    %14 = vector.shape_cast %13 : vector<9x9xf32> to vector<1x9x9xf32>
    %15 = vector.broadcast %14 : vector<1x9x9xf32> to vector<4x9x9xf32>
    %16 = arith.addf %8, %15 : vector<4x9x9xf32>
    %cst_17 = arith.constant dense<0xFF800000> : vector<4x9xf32>
    %17 = vector.multi_reduction <maximumf>, %16, %cst_17 [2] : vector<4x9x9xf32> to vector<4x9xf32>
    %18 = vector.shape_cast %17 : vector<4x9xf32> to vector<4x9x1xf32>
    %19 = vector.broadcast %18 : vector<4x9x1xf32> to vector<4x9x9xf32>
    %20 = arith.subf %16, %19 : vector<4x9x9xf32>
    %21 = math.exp %20 : vector<4x9x9xf32>
    %cst_18 = arith.constant dense<0.000000e+00> : vector<4x9xf32>
    %22 = vector.multi_reduction <add>, %21, %cst_18 [2] : vector<4x9x9xf32> to vector<4x9xf32>
    %23 = vector.shape_cast %22 : vector<4x9xf32> to vector<4x9x1xf32>
    %24 = tpu.reciprocal %23 {approx = true} : vector<4x9x1xf32> -> vector<4x9x1xf32>
    %25 = vector.broadcast %24 : vector<4x9x1xf32> to vector<4x9x9xf32>
    %26 = arith.mulf %21, %25 : vector<4x9x9xf32>
    "tpu.trace_start"() <{level = 10 : i32, message = "hqk,hkd->hqd"}> : () -> ()
    %cst_19 = arith.constant dense<0.000000e+00> : vector<4x9x8xf32>
    %27 = tpu.matmul %26, %7, %cst_19 {dimension_numbers = #tpu.dot_dimension_numbers<[2], [1], [1], [2], [0, 0, 0, 1, 1, 2], [0], [0]>} : vector<4x9x9xf32>, vector<4x9x8xf32>, vector<4x9x8xf32> -> vector<4x9x8xf32>
    "tpu.trace_stop"() : () -> ()
    %c0_20 = arith.constant 0 : index
    %c0_21 = arith.constant 0 : index
    %c0_22 = arith.constant 0 : index
    %c0_23 = arith.constant 0 : index
    %28 = vector.load %arg6[%c0_20, %c0_21, %c0_22, %c0_23] : memref<1x4x9x8xf32, #tpu.memory_space<vmem>>, vector<1x4x9x8xf32>
    %29 = vector.shape_cast %28 : vector<1x4x9x8xf32> to vector<4x9x8xf32>
    %30 = vector.shape_cast %27 : vector<4x9x8xf32> to vector<1x4x9x8xf32>
    tpu.vector_store %arg6[%c0_20, %c0_21, %c0_22, %c0_23], %30 {strides = array<i32>} : memref<1x4x9x8xf32, #tpu.memory_space<vmem>>, vector<1x4x9x8xf32>,
    return
  }
  func.func @transform_0(%arg0: i32) -> (i32, i32, i32, i32) {
    %c0_i32 = arith.constant 0 : i32
    %c0_i32_0 = arith.constant 0 : i32
    %c0_i32_1 = arith.constant 0 : i32
    %c0_i32_2 = arith.constant 0 : i32
    return %arg0, %c0_i32, %c0_i32_0, %c0_i32_1 : i32, i32, i32, i32
  }
  func.func @transform_1(%arg0: i32) -> (i32, i32, i32, i32) {
    %c0_i32 = arith.constant 0 : i32
    %c0_i32_0 = arith.constant 0 : i32
    %c0_i32_1 = arith.constant 0 : i32
    %c0_i32_2 = arith.constant 0 : i32
    return %arg0, %c0_i32, %c0_i32_0, %c0_i32_1 : i32, i32, i32, i32
  }
  func.func @transform_2(%arg0: i32) -> (i32, i32, i32, i32) {
    %c0_i32 = arith.constant 0 : i32
    %c0_i32_0 = arith.constant 0 : i32
    %c0_i32_1 = arith.constant 0 : i32
    %c0_i32_2 = arith.constant 0 : i32
    return %arg0, %c0_i32, %c0_i32_0, %c0_i32_1 : i32, i32, i32, i32
  }
  func.func @transform_3(%arg0: i32) -> (i32, i32) {
    %c0_i32 = arith.constant 0 : i32
    %c0_i32_0 = arith.constant 0 : i32
    %c0_i32_1 = arith.constant 0 : i32
    return %c0_i32, %c0_i32_0 : i32, i32
  }
  func.func @transform_4(%arg0: i32) -> (i32, i32, i32) {
    %c0_i32 = arith.constant 0 : i32
    %c0_i32_0 = arith.constant 0 : i32
    %c0_i32_1 = arith.constant 0 : i32
    return %arg0, %c0_i32, %c0_i32_0 : i32, i32, i32
  }
  func.func @transform_5(%arg0: i32) -> (i32, i32, i32, i32) {
    %c0_i32 = arith.constant 0 : i32
    %c0_i32_0 = arith.constant 0 : i32
    %c0_i32_1 = arith.constant 0 : i32
    %c0_i32_2 = arith.constant 0 : i32
    return %arg0, %c0_i32, %c0_i32_0, %c0_i32_1 : i32, i32, i32, i32
  }
}

module attributes {stable_mosaic.version = 11 : i64} {
  func.func @_out_head_kernel(%arg0: memref<18x128xf32, #tpu.memory_space<vmem>>, %arg1: memref<128x128xf32, #tpu.memory_space<vmem>>, %arg2: memref<1x128xf32, #tpu.memory_space<vmem>>, %arg3: memref<128x128xf32, #tpu.memory_space<vmem>>, %arg4: memref<1x128xf32, #tpu.memory_space<vmem>>, %arg5: memref<18x128xf32, #tpu.memory_space<vmem>>) attributes {dimension_semantics = [], scalar_prefetch = 0 : i64, scratch_operands = 0 : i64, tpu.core_type = #tpu.core_type<tc>} {
    %c0 = arith.constant 0 : index
    %c0_0 = arith.constant 0 : index
    %0 = vector.load %arg0[%c0, %c0_0] : memref<18x128xf32, #tpu.memory_space<vmem>>, vector<18x128xf32>
    %c0_1 = arith.constant 0 : index
    %c0_2 = arith.constant 0 : index
    %1 = vector.load %arg1[%c0_1, %c0_2] : memref<128x128xf32, #tpu.memory_space<vmem>>, vector<128x128xf32>
    %cst = arith.constant dense<0.000000e+00> : vector<18x128xf32>
    %2 = tpu.matmul %0, %1, %cst {dimension_numbers = #tpu.dot_dimension_numbers<[1], [0], [0], [1], [0, 0, 1, 1], [], []>} : vector<18x128xf32>, vector<128x128xf32>, vector<18x128xf32> -> vector<18x128xf32>
    %c0_3 = arith.constant 0 : index
    %c0_4 = arith.constant 0 : index
    %3 = vector.load %arg2[%c0_3, %c0_4] : memref<1x128xf32, #tpu.memory_space<vmem>>, vector<1x128xf32>
    %4 = vector.broadcast %3 : vector<1x128xf32> to vector<18x128xf32>
    %5 = arith.addf %2, %4 : vector<18x128xf32>
    %cst_5 = arith.constant 0.000000e+00 : f32
    %6 = vector.broadcast %cst_5 : f32 to vector<18x128xf32>
    %7 = arith.maximumf %5, %6 : vector<18x128xf32>
    %c0_6 = arith.constant 0 : index
    %c0_7 = arith.constant 0 : index
    %8 = vector.load %arg3[%c0_6, %c0_7] : memref<128x128xf32, #tpu.memory_space<vmem>>, vector<128x128xf32>
    %cst_8 = arith.constant dense<0.000000e+00> : vector<18x128xf32>
    %9 = tpu.matmul %7, %8, %cst_8 {dimension_numbers = #tpu.dot_dimension_numbers<[1], [0], [0], [1], [0, 0, 1, 1], [], []>} : vector<18x128xf32>, vector<128x128xf32>, vector<18x128xf32> -> vector<18x128xf32>
    %c0_9 = arith.constant 0 : index
    %c0_10 = arith.constant 0 : index
    %10 = vector.load %arg4[%c0_9, %c0_10] : memref<1x128xf32, #tpu.memory_space<vmem>>, vector<1x128xf32>
    %11 = vector.broadcast %10 : vector<1x128xf32> to vector<18x128xf32>
    %12 = arith.addf %9, %11 : vector<18x128xf32>
    %c0_11 = arith.constant 0 : index
    %c0_12 = arith.constant 0 : index
    %13 = vector.load %arg5[%c0_11, %c0_12] : memref<18x128xf32, #tpu.memory_space<vmem>>, vector<18x128xf32>
    tpu.vector_store %arg5[%c0_11, %c0_12], %12 {strides = array<i32>} : memref<18x128xf32, #tpu.memory_space<vmem>>, vector<18x128xf32>,
    return
  }
}

</mosaic_0001>

<llo_original>
// kernel: forward.12
$region0: #{forward.12}
  #allocation0 [shape = 'u32[]', space=smem, size = 0x4, offset = 0x4, fixed_abs, tag = 'smem constant byte address 0x4 - core index']
  #allocation1 [shape = 'u32[144,128]{1,0:T(1,128)}', space=vmem, size = 0x12000, scoped, tag = 'internal scratch']
  %s0 = inlined_call_operand.vmem [shape: f32[6,128], index: 0, kind: input, shape index: {}]
  %s1 = inlined_call_operand.vmem [shape: f32[128,128], index: 1, kind: input, shape index: {}]
  %s2 = inlined_call_operand.vmem [shape: f32[1,128], index: 2, kind: input, shape index: {}]
  %s3 = inlined_call_operand.vmem [shape: f32[6,128], index: 3, kind: output, shape index: {}]
  %s4 = sld [smem:[#allocation0]]
  $region22: #{forward.12} parent=0
    _
  %s6 = ssub.s32 1, %s4
  %s7 = scalar_select 0, %s6, %s4
  // Predicated region
  $region2: #{forward.12} parent=0 // pred_check
    _
  $region3: #{forward.12} parent=0 // pred_check_branch
    %9 = sbr.rel (0) target = $region5
  $region4: #{forward.12} parent=0 // pred_region
    _
  $region5: #{forward.12} parent=0 // pred_fallthru
    _
  // Predicated region
  $region6: #{forward.12} parent=0 // pred_check
    _
  $region7: #{forward.12} parent=0 // pred_check_branch
    %11 = sbr.rel (0) target = $region9
  $region8: #{forward.12} parent=0 // pred_region
    _
  $region9: #{forward.12} parent=0 // pred_fallthru
    _
  // Predicated region
  $region10: #{forward.12} parent=0 // pred_check
    _
  $region11: #{forward.12} parent=0 // pred_check_branch
    %13 = sbr.rel (0) target = $region13
  $region12: #{forward.12} parent=0 // pred_region
    _
  $region13: #{forward.12} parent=0 // pred_fallthru
    _
  %v14 = vld [vmem:[%s0] sm:$0x3f]
  %v15 = vld [vmem:[%s1] sm:$0xff]
  %v16 = vld [vmem:[%s1 + $0x8] sm:$0xff]
  %v17 = vld [vmem:[%s1 + $0x10] sm:$0xff]
  %v18 = vld [vmem:[%s1 + $0x18] sm:$0xff]
  %v19 = vld [vmem:[%s1 + $0x20] sm:$0xff]
  %v20 = vld [vmem:[%s1 + $0x28] sm:$0xff]
  %v21 = vld [vmem:[%s1 + $0x30] sm:$0xff]
  %v22 = vld [vmem:[%s1 + $0x38] sm:$0xff]
  %v23 = vld [vmem:[%s1 + $0x40] sm:$0xff]
  %v24 = vld [vmem:[%s1 + $0x48] sm:$0xff]
  %v25 = vld [vmem:[%s1 + $0x50] sm:$0xff]
  %v26 = vld [vmem:[%s1 + $0x58] sm:$0xff]
  %v27 = vld [vmem:[%s1 + $0x60] sm:$0xff]
  %v28 = vld [vmem:[%s1 + $0x68] sm:$0xff]
  %v29 = vld [vmem:[%s1 + $0x70] sm:$0xff]
  %v30 = vld [vmem:[%s1 + $0x78] sm:$0xff]
  %v31 = vld [vmem:[%s2] sm:$0x1]
  %v33 = vlaneseq
  %v34 = vshrl.u32 %v33, 7
  %v35 = vsub.s32 0, %v34
  %v36 = vrot.slane %v31, %v35
  %38 = vmatprep.subr.mxu0 0.0
  %39 = vmatpush1.msra.mxu0 %v15
  %40 = vmatprep.subr.mxu0 0.0
  %41 = vmatpush1.msra.mxu0 %v16
  %42 = vmatprep.subr.mxu0 0.0
  %43 = vmatpush1.msra.mxu0 %v17
  %44 = vmatprep.subr.mxu0 0.0
  %45 = vmatpush1.msra.mxu0 %v18
  %46 = vmatprep.subr.mxu0 0.0
  %47 = vmatpush1.msra.mxu0 %v19
  %48 = vmatprep.subr.mxu0 0.0
  %49 = vmatpush1.msra.mxu0 %v20
  %50 = vmatprep.subr.mxu0 0.0
  %51 = vmatpush1.msra.mxu0 %v21
  %52 = vmatprep.subr.mxu0 0.0
  %53 = vmatpush1.msra.mxu0 %v22
  %54 = vmatprep.subr.mxu0 0.0
  %55 = vmatpush1.msra.mxu0 %v23
  %56 = vmatprep.subr.mxu0 0.0
  %57 = vmatpush1.msra.mxu0 %v24
  %58 = vmatprep.subr.mxu0 0.0
  %59 = vmatpush1.msra.mxu0 %v25
  %60 = vmatprep.subr.mxu0 0.0
  %61 = vmatpush1.msra.mxu0 %v26
  %62 = vmatprep.subr.mxu0 0.0
  %63 = vmatpush1.msra.mxu0 %v27
  %64 = vmatprep.subr.mxu0 0.0
  %65 = vmatpush1.msra.mxu0 %v28
  %66 = vmatprep.subr.mxu0 0.0
  %67 = vmatpush1.msra.mxu0 %v29
  %68 = vmatprep.subr.mxu0 0.0
  %69 = vmatpush1.msra.mxu0 %v30
  %70 = vmatprep.subr.mxu0 0.0
  %71 = vmatpush1.msra.mxu0 0.0
  %72 = vmatprep.subr.mxu0 0.0
  %73 = vmatpush1.msra.mxu0 0.0
  %74 = vmatprep.subr.mxu0 0.0
  %75 = vmatpush1.msra.mxu0 0.0
  %76 = vmatprep.subr.mxu0 0.0
  %77 = vmatpush1.msra.mxu0 0.0
  %78 = vmatprep.subr.mxu0 0.0
  %79 = vmatpush1.msra.mxu0 0.0
  %80 = vmatprep.subr.mxu0 0.0
  %81 = vmatpush1.msra.mxu0 0.0
  %82 = vmatprep.subr.mxu0 0.0
  %83 = vmatpush1.msra.mxu0 0.0
  %84 = vmatprep.subr.mxu0 0.0
  %85 = vmatpush1.msra.mxu0 0.0
  %86 = vmatprep.subr.mxu0 0.0
  %87 = vmatpush1.msra.mxu0 0.0
  %88 = vmatprep.subr.mxu0 0.0
  %89 = vmatpush1.msra.mxu0 0.0
  %90 = vmatprep.subr.mxu0 0.0
  %91 = vmatpush1.msra.mxu0 0.0
  %92 = vmatprep.subr.mxu0 0.0
  %93 = vmatpush1.msra.mxu0 0.0
  %94 = vmatprep.subr.mxu0 0.0
  %95 = vmatpush1.msra.mxu0 0.0
  %96 = vmatprep.subr.mxu0 0.0
  %97 = vmatpush1.msra.mxu0 0.0
  %98 = vmatprep.subr.mxu0 0.0
  %99 = vmatpush1.msra.mxu0 0.0
  %100 = vmatprep.subr.mxu0 0.0
  %101 = vmatpush1.msra.mxu0 0.0
  %102 = vmatprep.mubr.f32.mxu0 0.0
  %103 = vmatmul.mubr.f32.gmra.mrb[0].mxu0 %v14
  %v104 = vpop.f32.mrb[0].mxu0
  %v105 = vadd.f32 %v36, %v104
  %v106 = vpop.f32.mrb[0].mxu0
  %107 = vdwg.mxu0
  %v108 = vmax.f32 %v105, 0.0
  %109 = vst [vmem:[%s3] sm:$0x3f] %v108
  // Predicated region
  $region14: #{forward.12} parent=0 // pred_check
    _
  $region15: #{forward.12} parent=0 // pred_check_branch
    %111 = sbr.rel (0) target = $region17
  $region16: #{forward.12} parent=0 // pred_region
    _
  $region17: #{forward.12} parent=0 // pred_fallthru
    _
  // Predicated region
  $region18: #{forward.12} parent=0 // pred_check
    _
  $region19: #{forward.12} parent=0 // pred_check_branch
    %113 = sbr.rel (0) target = $region21
  $region20: #{forward.12} parent=0 // pred_region
    _
  $region21: #{forward.12} parent=0 // pred_fallthru
    _

// kernel: forward.11
$region0: #{forward.11}
  #allocation0 [shape = 'u32[]', space=smem, size = 0x4, offset = 0x4, fixed_abs, tag = 'smem constant byte address 0x4 - core index']
  #allocation1 [shape = 'u32[144,128]{1,0:T(1,128)}', space=vmem, size = 0x12000, scoped, tag = 'internal scratch']
  %s0 = inlined_call_operand.vmem [shape: f32[4,384], index: 0, kind: input, shape index: {}]
  %s1 = inlined_call_operand.hbm [shape: f32[384,128], index: 1, kind: input, shape index: {}]
  %s2 = inlined_call_operand.vmem [shape: f32[1,128], index: 2, kind: input, shape index: {}]
  %s3 = inlined_call_operand.vmem [shape: f32[4,128], index: 3, kind: output, shape index: {}]
  %s4 = sld [smem:[#allocation0]]
  $region26: #{forward.11} parent=0
    _
  %s6 = ssub.s32 1, %s4
  %s7 = scalar_select 0, %s6, %s4
  $region1: #{forward.11} parent=0
    #allocation2 [shape = 'u8[196608]{0}', space=vmem, size = 0x30000, scoped, tag = 'input window, operand 1, single buffered']
    #allocation3 [shape = 's32[1]{0}', space=sflag, size = 0x4, scoped, tag = 'scoped memory for forward.11']
    %8 = vsyncpa [#allocation3], 0
    // Predicated region
    $region2: #{forward.11} parent=1 // pred_check
      _
    $region3: #{forward.11} parent=1 // pred_check_branch
      %10 = sbr.rel (0) target = $region5
    $region4: #{forward.11} parent=1 // pred_region
      _
    $region5: #{forward.11} parent=1 // pred_fallthru
      _
    // Predicated region
    $region6: #{forward.11} parent=1 // pred_check
      _
    $region7: #{forward.11} parent=1 // pred_check_branch
      %12 = sbr.rel (0) target = $region9
    $region8: #{forward.11} parent=1 // pred_region
      %s14 = ssub.s32 6144, 6144
      %15 = vsyncadd [#allocation3], %s14
      %s16 = sshll.u32 [#allocation2], 4
      %s17 = int_to_ptr.vmem [resolvable:$true] %s16
      %22 = dma.hbm_to_vmem [thread:$0]  %s1, 6144, %s17, [#allocation3], 128, 128, 8
    $region9: #{forward.11} parent=1 // pred_fallthru
      _
    // Predicated region
    $region10: #{forward.11} parent=1 // pred_check
      _
    $region11: #{forward.11} parent=1 // pred_check_branch
      %24 = sbr.rel (0) target = $region13
    $region12: #{forward.11} parent=1 // pred_region
      _
    $region13: #{forward.11} parent=1 // pred_fallthru
      _
    // Predicated region
    $region14: #{forward.11} parent=1 // pred_check
      _
    $region15: #{forward.11} parent=1 // pred_check_branch
      %26 = sbr.rel (0) target = $region17
    $region16: #{forward.11} parent=1 // pred_region
      %27 = dma.done [#allocation3], 6144
    $region17: #{forward.11} parent=1 // pred_fallthru
      _
    %v28 = vld [vmem:[%s0] sm:$0xff]
    %v29 = vld [vmem:[%s0 + $0x8] sm:$0xf]
    %v30 = vld [vmem:[#allocation2] sm:$0xff]
    %v31 = vld [vmem:[#allocation2 + $0x8] sm:$0xff]
    %v32 = vld [vmem:[#allocation2 + $0x10] sm:$0xff]
    %v33 = vld [vmem:[#allocation2 + $0x18] sm:$0xff]
    %v34 = vld [vmem:[#allocation2 + $0x20] sm:$0xff]
    %v35 = vld [vmem:[#allocation2 + $0x28] sm:$0xff]
    %v36 = vld [vmem:[#allocation2 + $0x30] sm:$0xff]
    %v37 = vld [vmem:[#allocation2 + $0x38] sm:$0xff]
    %v38 = vld [vmem:[#allocation2 + $0x40] sm:$0xff]
    %v39 = vld [vmem:[#allocation2 + $0x48] sm:$0xff]
    %v40 = vld [vmem:[#allocation2 + $0x50] sm:$0xff]
    %v41 = vld [vmem:[#allocation2 + $0x58] sm:$0xff]
    %v42 = vld [vmem:[#allocation2 + $0x60] sm:$0xff]
    %v43 = vld [vmem:[#allocation2 + $0x68] sm:$0xff]
    %v44 = vld [vmem:[#allocation2 + $0x70] sm:$0xff]
    %v45 = vld [vmem:[#allocation2 + $0x78] sm:$0xff]
    %v46 = vld [vmem:[#allocation2 + $0x80] sm:$0xff]
    %v47 = vld [vmem:[#allocation2 + $0x88] sm:$0xff]
    %v48 = vld [vmem:[#allocation2 + $0x90] sm:$0xff]
    %v49 = vld [vmem:[#allocation2 + $0x98] sm:$0xff]
    %v50 = vld [vmem:[#allocation2 + $0xa0] sm:$0xff]
    %v51 = vld [vmem:[#allocation2 + $0xa8] sm:$0xff]
    %v52 = vld [vmem:[#allocation2 + $0xb0] sm:$0xff]
    %v53 = vld [vmem:[#allocation2 + $0xb8] sm:$0xff]
    %v54 = vld [vmem:[#allocation2 + $0xc0] sm:$0xff]
    %v55 = vld [vmem:[#allocation2 + $0xc8] sm:$0xff]
    %v56 = vld [vmem:[#allocation2 + $0xd0] sm:$0xff]
    %v57 = vld [vmem:[#allocation2 + $0xd8] sm:$0xff]
    %v58 = vld [vmem:[#allocation2 + $0xe0] sm:$0xff]
    %v59 = vld [vmem:[#allocation2 + $0xe8] sm:$0xff]
    %v60 = vld [vmem:[#allocation2 + $0xf0] sm:$0xff]
    %v61 = vld [vmem:[#allocation2 + $0xf8] sm:$0xff]
    %v62 = vld [vmem:[#allocation2 + $0x100] sm:$0xff]
    %v63 = vld [vmem:[#allocation2 + $0x108] sm:$0xff]
    %v64 = vld [vmem:[#allocation2 + $0x110] sm:$0xff]
    %v65 = vld [vmem:[#allocation2 + $0x118] sm:$0xff]
    %v66 = vld [vmem:[#allocation2 + $0x120] sm:$0xff]
    %v67 = vld [vmem:[#allocation2 + $0x128] sm:$0xff]
    %v68 = vld [vmem:[#allocation2 + $0x130] sm:$0xff]
    %v69 = vld [vmem:[#allocation2 + $0x138] sm:$0xff]
    %v70 = vld [vmem:[#allocation2 + $0x140] sm:$0xff]
    %v71 = vld [vmem:[#allocation2 + $0x148] sm:$0xff]
    %v72 = vld [vmem:[#allocation2 + $0x150] sm:$0xff]
    %v73 = vld [vmem:[#allocation2 + $0x158] sm:$0xff]
    %v74 = vld [vmem:[#allocation2 + $0x160] sm:$0xff]
    %v75 = vld [vmem:[#allocation2 + $0x168] sm:$0xff]
    %v76 = vld [vmem:[#allocation2 + $0x170] sm:$0xff]
    %v77 = vld [vmem:[#allocation2 + $0x178] sm:$0xff]
    %v78 = vld [vmem:[%s2] sm:$0x1]
    %v80 = vlaneseq
    %v81 = vshrl.u32 %v80, 7
    %v82 = vsub.s32 0, %v81
    %v83 = vrot.slane %v78, %v82
    %v86 = vcombine.high %v28, %v28
    %88 = vmatprep.subr.mxu0 0.0
    %89 = vmatpush1.msra.mxu0 %v30
    %90 = vmatprep.subr.mxu0 0.0
    %91 = vmatpush1.msra.mxu0 %v31
    %92 = vmatprep.subr.mxu0 0.0
    %93 = vmatpush1.msra.mxu0 %v32
    %94 = vmatprep.subr.mxu0 0.0
    %95 = vmatpush1.msra.mxu0 %v33
    %96 = vmatprep.subr.mxu0 0.0
    %97 = vmatpush1.msra.mxu0 %v34
    %98 = vmatprep.subr.mxu0 0.0
    %99 = vmatpush1.msra.mxu0 %v35
    %100 = vmatprep.subr.mxu0 0.0
    %101 = vmatpush1.msra.mxu0 %v36
    %102 = vmatprep.subr.mxu0 0.0
    %103 = vmatpush1.msra.mxu0 %v37
    %104 = vmatprep.subr.mxu0 0.0
    %105 = vmatpush1.msra.mxu0 %v38
    %106 = vmatprep.subr.mxu0 0.0
    %107 = vmatpush1.msra.mxu0 %v39
    %108 = vmatprep.subr.mxu0 0.0
    %109 = vmatpush1.msra.mxu0 %v40
    %110 = vmatprep.subr.mxu0 0.0
    %111 = vmatpush1.msra.mxu0 %v41
    %112 = vmatprep.subr.mxu0 0.0
    %113 = vmatpush1.msra.mxu0 %v42
    %114 = vmatprep.subr.mxu0 0.0
    %115 = vmatpush1.msra.mxu0 %v43
    %116 = vmatprep.subr.mxu0 0.0
    %117 = vmatpush1.msra.mxu0 %v44
    %118 = vmatprep.subr.mxu0 0.0
    %119 = vmatpush1.msra.mxu0 %v45
    %120 = vmatprep.subr.mxu0 0.0
    %121 = vmatpush1.msra.mxu0 %v46
    %122 = vmatprep.subr.mxu0 0.0
    %123 = vmatpush1.msra.mxu0 %v47
    %124 = vmatprep.subr.mxu0 0.0
    %125 = vmatpush1.msra.mxu0 %v48
    %126 = vmatprep.subr.mxu0 0.0
    %127 = vmatpush1.msra.mxu0 %v49
    %128 = vmatprep.subr.mxu0 0.0
    %129 = vmatpush1.msra.mxu0 %v50
    %130 = vmatprep.subr.mxu0 0.0
    %131 = vmatpush1.msra.mxu0 %v51
    %132 = vmatprep.subr.mxu0 0.0
    %133 = vmatpush1.msra.mxu0 %v52
    %134 = vmatprep.subr.mxu0 0.0
    %135 = vmatpush1.msra.mxu0 %v53
    %136 = vmatprep.subr.mxu0 0.0
    %137 = vmatpush1.msra.mxu0 %v54
    %138 = vmatprep.subr.mxu0 0.0
    %139 = vmatpush1.msra.mxu0 %v55
    %140 = vmatprep.subr.mxu0 0.0
    %141 = vmatpush1.msra.mxu0 %v56
    %142 = vmatprep.subr.mxu0 0.0
    %143 = vmatpush1.msra.mxu0 %v57
    %144 = vmatprep.subr.mxu0 0.0
    %145 = vmatpush1.msra.mxu0 %v58
    %146 = vmatprep.subr.mxu0 0.0
    %147 = vmatpush1.msra.mxu0 %v59
    %148 = vmatprep.subr.mxu0 0.0
    %149 = vmatpush1.msra.mxu0 %v60
    %150 = vmatprep.subr.mxu0 0.0
    %151 = vmatpush1.msra.mxu0 %v61
    %152 = vmatprep.mubr.f32.mxu0 %v86
    %153 = vmatmul.mubr.f32.gmra.mrb[0].mxu0 %v28
    %v154 = vpop.f32.mrb[0].mxu0
    %v155 = vadd.f32 %v83, %v154
    %v156 = vpop.f32.mrb[0].mxu0
    %157 = vdwg.mxu0
    %158 = vmatprep.subr.mxu0 0.0
    %159 = vmatpush1.msra.mxu0 %v62
    %160 = vmatprep.subr.mxu0 0.0
    %161 = vmatpush1.msra.mxu0 %v63
    %162 = vmatprep.subr.mxu0 0.0
    %163 = vmatpush1.msra.mxu0 %v64
    %164 = vmatprep.subr.mxu0 0.0
    %165 = vmatpush1.msra.mxu0 %v65
    %166 = vmatprep.subr.mxu0 0.0
    %167 = vmatpush1.msra.mxu0 %v66
    %168 = vmatprep.subr.mxu0 0.0
    %169 = vmatpush1.msra.mxu0 %v67
    %170 = vmatprep.subr.mxu0 0.0
    %171 = vmatpush1.msra.mxu0 %v68
    %172 = vmatprep.subr.mxu0 0.0
    %173 = vmatpush1.msra.mxu0 %v69
    %174 = vmatprep.subr.mxu0 0.0
    %175 = vmatpush1.msra.mxu0 %v70
    %176 = vmatprep.subr.mxu0 0.0
    %177 = vmatpush1.msra.mxu0 %v71
    %178 = vmatprep.subr.mxu0 0.0
    %179 = vmatpush1.msra.mxu0 %v72
    %180 = vmatprep.subr.mxu0 0.0
    %181 = vmatpush1.msra.mxu0 %v73
    %182 = vmatprep.subr.mxu0 0.0
    %183 = vmatpush1.msra.mxu0 %v74
    %184 = vmatprep.subr.mxu0 0.0
    %185 = vmatpush1.msra.mxu0 %v75
    %186 = vmatprep.subr.mxu0 0.0
    %187 = vmatpush1.msra.mxu0 %v76
    %188 = vmatprep.subr.mxu0 0.0
    %189 = vmatpush1.msra.mxu0 %v77
    %190 = vmatprep.subr.mxu0 0.0
    %191 = vmatpush1.msra.mxu0 0.0
    %192 = vmatprep.subr.mxu0 0.0
    %193 = vmatpush1.msra.mxu0 0.0
    %194 = vmatprep.subr.mxu0 0.0
    %195 = vmatpush1.msra.mxu0 0.0
    %196 = vmatprep.subr.mxu0 0.0
    %197 = vmatpush1.msra.mxu0 0.0
    %198 = vmatprep.subr.mxu0 0.0
    %199 = vmatpush1.msra.mxu0 0.0
    %200 = vmatprep.subr.mxu0 0.0
    %201 = vmatpush1.msra.mxu0 0.0
    %202 = vmatprep.subr.mxu0 0.0
    %203 = vmatpush1.msra.mxu0 0.0
    %204 = vmatprep.subr.mxu0 0.0
    %205 = vmatpush1.msra.mxu0 0.0
    %206 = vmatprep.subr.mxu0 0.0
    %207 = vmatpush1.msra.mxu0 0.0
    %208 = vmatprep.subr.mxu0 0.0
    %209 = vmatpush1.msra.mxu0 0.0
    %210 = vmatprep.subr.mxu0 0.0
    %211 = vmatpush1.msra.mxu0 0.0
    %212 = vmatprep.subr.mxu0 0.0
    %213 = vmatpush1.msra.mxu0 0.0
    %214 = vmatprep.subr.mxu0 0.0
    %215 = vmatpush1.msra.mxu0 0.0
    %216 = vmatprep.subr.mxu0 0.0
    %217 = vmatpush1.msra.mxu0 0.0
    %218 = vmatprep.subr.mxu0 0.0
    %219 = vmatpush1.msra.mxu0 0.0
    %220 = vmatprep.subr.mxu0 0.0
    %221 = vmatpush1.msra.mxu0 0.0
    %222 = vmatprep.mubr.f32.mxu0 0.0
    %223 = vmatmul.mubr.f32.gmra.mrb[0].mxu0 %v29
    %v224 = vpop.f32.mrb[0].mxu0
    %v225 = vadd.f32 %v155, %v224
    %v226 = vpop.f32.mrb[0].mxu0
    %227 = vdwg.mxu0
    %228 = vst [vmem:[%s3] sm:$0xf] %v225
    // Predicated region
    $region18: #{forward.11} parent=1 // pred_check
      _
    $region19: #{forward.11} parent=1 // pred_check_branch
      %230 = sbr.rel (0) target = $region21
    $region20: #{forward.11} parent=1 // pred_region
      _
    $region21: #{forward.11} parent=1 // pred_fallthru
      _
    // Predicated region
    $region22: #{forward.11} parent=1 // pred_check
      _
    $region23: #{forward.11} parent=1 // pred_check_branch
      %232 = sbr.rel (0) target = $region25
    $region24: #{forward.11} parent=1 // pred_region
      _
    $region25: #{forward.11} parent=1 // pred_fallthru
      _
    %233 = vsyncpa [#allocation3], 1

// kernel: forward.13
$region0: #{forward.13}
  #allocation0 [shape = 'u32[]', space=smem, size = 0x4, offset = 0x4, fixed_abs, tag = 'smem constant byte address 0x4 - core index']
  #allocation1 [shape = 'u32[144,128]{1,0:T(1,128)}', space=vmem, size = 0x12000, scoped, tag = 'internal scratch']
  %s0 = inlined_call_operand.vmem [shape: f32[18,128], index: 0, kind: input, shape index: {}]
  %s1 = inlined_call_operand.vmem [shape: f32[128,384], index: 1, kind: input, shape index: {}]
  %s2 = inlined_call_operand.vmem [shape: f32[1,384], index: 2, kind: input, shape index: {}]
  %s3 = inlined_call_operand.vmem [shape: f32[18,384], index: 3, kind: output, shape index: {}]
  %s4 = sld [smem:[#allocation0]]
  $region22: #{forward.13} parent=0
    _
  %s6 = ssub.s32 1, %s4
  %s7 = scalar_select 0, %s6, %s4
  // Predicated region
  $region2: #{forward.13} parent=0 // pred_check
    _
  $region3: #{forward.13} parent=0 // pred_check_branch
    %9 = sbr.rel (0) target = $region5
  $region4: #{forward.13} parent=0 // pred_region
    _
  $region5: #{forward.13} parent=0 // pred_fallthru
    _
  // Predicated region
  $region6: #{forward.13} parent=0 // pred_check
    _
  $region7: #{forward.13} parent=0 // pred_check_branch
    %11 = sbr.rel (0) target = $region9
  $region8: #{forward.13} parent=0 // pred_region
    _
  $region9: #{forward.13} parent=0 // pred_fallthru
    _
  // Predicated region
  $region10: #{forward.13} parent=0 // pred_check
    _
  $region11: #{forward.13} parent=0 // pred_check_branch
    %13 = sbr.rel (0) target = $region13
  $region12: #{forward.13} parent=0 // pred_region
    _
  $region13: #{forward.13} parent=0 // pred_fallthru
    _
  %v14 = vld [vmem:[%s0] sm:$0xff]
  %v15 = vld [vmem:[%s0 + $0x8] sm:$0xff]
  %v16 = vld [vmem:[%s0 + $0x10] sm:$0x3]
  %v17 = vld [vmem:[%s1] sm:$0xff]
  %v18 = vld [vmem:[%s1 + $0x8] sm:$0xff]
  %v19 = vld [vmem:[%s1 + $0x10] sm:$0xff]
  %v20 = vld [vmem:[%s1 + $0x18] sm:$0xff]
  %v21 = vld [vmem:[%s1 + $0x20] sm:$0xff]
  %v22 = vld [vmem:[%s1 + $0x28] sm:$0xff]
  %v23 = vld [vmem:[%s1 + $0x30] sm:$0xff]
  %v24 = vld [vmem:[%s1 + $0x38] sm:$0xff]
  %v25 = vld [vmem:[%s1 + $0x40] sm:$0xff]
  %v26 = vld [vmem:[%s1 + $0x48] sm:$0xff]
  %v27 = vld [vmem:[%s1 + $0x50] sm:$0xff]
  %v28 = vld [vmem:[%s1 + $0x58] sm:$0xff]
  %v29 = vld [vmem:[%s1 + $0x60] sm:$0xff]
  %v30 = vld [vmem:[%s1 + $0x68] sm:$0xff]
  %v31 = vld [vmem:[%s1 + $0x70] sm:$0xff]
  %v32 = vld [vmem:[%s1 + $0x78] sm:$0xff]
  %v33 = vld [vmem:[%s1 + $0x80] sm:$0xff]
  %v34 = vld [vmem:[%s1 + $0x88] sm:$0xff]
  %v35 = vld [vmem:[%s1 + $0x90] sm:$0xff]
  %v36 = vld [vmem:[%s1 + $0x98] sm:$0xff]
  %v37 = vld [vmem:[%s1 + $0xa0] sm:$0xff]
  %v38 = vld [vmem:[%s1 + $0xa8] sm:$0xff]
  %v39 = vld [vmem:[%s1 + $0xb0] sm:$0xff]
  %v40 = vld [vmem:[%s1 + $0xb8] sm:$0xff]
  %v41 = vld [vmem:[%s1 + $0xc0] sm:$0xff]
  %v42 = vld [vmem:[%s1 + $0xc8] sm:$0xff]
  %v43 = vld [vmem:[%s1 + $0xd0] sm:$0xff]
  %v44 = vld [vmem:[%s1 + $0xd8] sm:$0xff]
  %v45 = vld [vmem:[%s1 + $0xe0] sm:$0xff]
  %v46 = vld [vmem:[%s1 + $0xe8] sm:$0xff]
  %v47 = vld [vmem:[%s1 + $0xf0] sm:$0xff]
  %v48 = vld [vmem:[%s1 + $0xf8] sm:$0xff]
  %v49 = vld [vmem:[%s1 + $0x100] sm:$0xff]
  %v50 = vld [vmem:[%s1 + $0x108] sm:$0xff]
  %v51 = vld [vmem:[%s1 + $0x110] sm:$0xff]
  %v52 = vld [vmem:[%s1 + $0x118] sm:$0xff]
  %v53 = vld [vmem:[%s1 + $0x120] sm:$0xff]
  %v54 = vld [vmem:[%s1 + $0x128] sm:$0xff]
  %v55 = vld [vmem:[%s1 + $0x130] sm:$0xff]
  %v56 = vld [vmem:[%s1 + $0x138] sm:$0xff]
  %v57 = vld [vmem:[%s1 + $0x140] sm:$0xff]
  %v58 = vld [vmem:[%s1 + $0x148] sm:$0xff]
  %v59 = vld [vmem:[%s1 + $0x150] sm:$0xff]
  %v60 = vld [vmem:[%s1 + $0x158] sm:$0xff]
  %v61 = vld [vmem:[%s1 + $0x160] sm:$0xff]
  %v62 = vld [vmem:[%s1 + $0x168] sm:$0xff]
  %v63 = vld [vmem:[%s1 + $0x170] sm:$0xff]
  %v64 = vld [vmem:[%s1 + $0x178] sm:$0xff]
  %v65 = vld [vmem:[%s2] sm:$0x7]
  %v67 = vlaneseq
  %v68 = vshrl.u32 %v67, 7
  %v69 = vsub.s32 0, %v68
  %v70 = vrot.slane %v65, %v69
  %v71 = vlaneseq
  %v72 = vshrl.u32 %v71, 7
  %v73 = vsub.s32 1, %v72
  %v74 = vrot.slane %v65, %v73
  %v75 = vlaneseq
  %v76 = vshrl.u32 %v75, 7
  %v77 = vsub.s32 2, %v76
  %v78 = vrot.slane %v65, %v77
  %82 = vmatprep.subr.mxu0 %v18
  %83 = vmatpush1.msra.mxu0 %v17
  %84 = vmatprep.subr.mxu0 %v21
  %85 = vmatpush1.msra.mxu0 %v20
  %86 = vmatprep.subr.mxu0 %v24
  %87 = vmatpush1.msra.mxu0 %v23
  %88 = vmatprep.subr.mxu0 %v27
  %89 = vmatpush1.msra.mxu0 %v26
  %90 = vmatprep.subr.mxu0 %v30
  %91 = vmatpush1.msra.mxu0 %v29
  %92 = vmatprep.subr.mxu0 %v33
  %93 = vmatpush1.msra.mxu0 %v32
  %94 = vmatprep.subr.mxu0 %v36
  %95 = vmatpush1.msra.mxu0 %v35
  %96 = vmatprep.subr.mxu0 %v39
  %97 = vmatpush1.msra.mxu0 %v38
  %98 = vmatprep.subr.mxu0 %v42
  %99 = vmatpush1.msra.mxu0 %v41
  %100 = vmatprep.subr.mxu0 %v45
  %101 = vmatpush1.msra.mxu0 %v44
  %102 = vmatprep.subr.mxu0 %v48
  %103 = vmatpush1.msra.mxu0 %v47
  %104 = vmatprep.subr.mxu0 %v51
  %105 = vmatpush1.msra.mxu0 %v50
  %106 = vmatprep.subr.mxu0 %v54
  %107 = vmatpush1.msra.mxu0 %v53
  %108 = vmatprep.subr.mxu0 %v57
  %109 = vmatpush1.msra.mxu0 %v56
  %110 = vmatprep.subr.mxu0 %v60
  %111 = vmatpush1.msra.mxu0 %v59
  %112 = vmatprep.subr.mxu0 %v63
  %113 = vmatpush1.msra.mxu0 %v62
  %114 = vmatprep.subr.mxu0 0.0
  %115 = vmatpush1.msra.mxu0 0.0
  %116 = vmatprep.subr.mxu0 0.0
  %117 = vmatpush1.msra.mxu0 0.0
  %118 = vmatprep.subr.mxu0 0.0
  %119 = vmatpush1.msra.mxu0 0.0
  %120 = vmatprep.subr.mxu0 0.0
  %121 = vmatpush1.msra.mxu0 0.0
  %122 = vmatprep.subr.mxu0 0.0
  %123 = vmatpush1.msra.mxu0 0.0
  %124 = vmatprep.subr.mxu0 0.0
  %125 = vmatpush1.msra.mxu0 0.0
  %126 = vmatprep.subr.mxu0 0.0
  %127 = vmatpush1.msra.mxu0 0.0
  %128 = vmatprep.subr.mxu0 0.0
  %129 = vmatpush1.msra.mxu0 0.0
  %130 = vmatprep.subr.mxu0 0.0
  %131 = vmatpush1.msra.mxu0 0.0
  %132 = vmatprep.subr.mxu0 0.0
  %133 = vmatpush1.msra.mxu0 0.0
  %134 = vmatprep.subr.mxu0 0.0
  %135 = vmatpush1.msra.mxu0 0.0
  %136 = vmatprep.subr.mxu0 0.0
  %137 = vmatpush1.msra.mxu0 0.0
  %138 = vmatprep.subr.mxu0 0.0
  %139 = vmatpush1.msra.mxu0 0.0
  %140 = vmatprep.subr.mxu0 0.0
  %141 = vmatpush1.msra.mxu0 0.0
  %142 = vmatprep.subr.mxu0 0.0
  %143 = vmatpush1.msra.mxu0 0.0
  %144 = vmatprep.subr.mxu0 0.0
  %145 = vmatpush1.msra.mxu0 0.0
  %146 = vmatprep.mubr.f32.mxu0 0.0
  %147 = vmatmul.mubr.f32.gmra.mrb[0].mxu0 %v14
  %v148 = vpop.f32.mrb[0].mxu0
  %v149 = vadd.f32 %v70, %v148
  %v150 = vpop.f32.mrb[0].mxu0
  %v151 = vadd.f32 %v74, %v150
  %152 = vmatprep.mubr.f32.mxu0 0.0
  %153 = vmatmul.mubr.f32.gmra.mrb[0].mxu0 %v15
  %v154 = vpop.f32.mrb[0].mxu0
  %v155 = vadd.f32 %v70, %v154
  %v156 = vpop.f32.mrb[0].mxu0
  %v157 = vadd.f32 %v74, %v156
  %158 = vmatprep.mubr.f32.mxu0 0.0
  %159 = vmatmul.mubr.f32.gmra.mrb[0].mxu0 %v16
  %v160 = vpop.f32.mrb[0].mxu0
  %v161 = vadd.f32 %v70, %v160
  %v162 = vpop.f32.mrb[0].mxu0
  %v163 = vadd.f32 %v74, %v162
  %164 = vdwg.mxu0
  %165 = vmatprep.subr.mxu0 0.0
  %166 = vmatpush1.msra.mxu0 %v19
  %167 = vmatprep.subr.mxu0 0.0
  %168 = vmatpush1.msra.mxu0 %v22
  %169 = vmatprep.subr.mxu0 0.0
  %170 = vmatpush1.msra.mxu0 %v25
  %171 = vmatprep.subr.mxu0 0.0
  %172 = vmatpush1.msra.mxu0 %v28
  %173 = vmatprep.subr.mxu0 0.0
  %174 = vmatpush1.msra.mxu0 %v31
  %175 = vmatprep.subr.mxu0 0.0
  %176 = vmatpush1.msra.mxu0 %v34
  %177 = vmatprep.subr.mxu0 0.0
  %178 = vmatpush1.msra.mxu0 %v37
  %179 = vmatprep.subr.mxu0 0.0
  %180 = vmatpush1.msra.mxu0 %v40
  %181 = vmatprep.subr.mxu0 0.0
  %182 = vmatpush1.msra.mxu0 %v43
  %183 = vmatprep.subr.mxu0 0.0
  %184 = vmatpush1.msra.mxu0 %v46
  %185 = vmatprep.subr.mxu0 0.0
  %186 = vmatpush1.msra.mxu0 %v49
  %187 = vmatprep.subr.mxu0 0.0
  %188 = vmatpush1.msra.mxu0 %v52
  %189 = vmatprep.subr.mxu0 0.0
  %190 = vmatpush1.msra.mxu0 %v55
  %191 = vmatprep.subr.mxu0 0.0
  %192 = vmatpush1.msra.mxu0 %v58
  %193 = vmatprep.subr.mxu0 0.0
  %194 = vmatpush1.msra.mxu0 %v61
  %195 = vmatprep.subr.mxu0 0.0
  %196 = vmatpush1.msra.mxu0 %v64
  %197 = vmatprep.subr.mxu0 0.0
  %198 = vmatpush1.msra.mxu0 0.0
  %199 = vmatprep.subr.mxu0 0.0
  %200 = vmatpush1.msra.mxu0 0.0
  %201 = vmatprep.subr.mxu0 0.0
  %202 = vmatpush1.msra.mxu0 0.0
  %203 = vmatprep.subr.mxu0 0.0
  %204 = vmatpush1.msra.mxu0 0.0
  %205 = vmatprep.subr.mxu0 0.0
  %206 = vmatpush1.msra.mxu0 0.0
  %207 = vmatprep.subr.mxu0 0.0
  %208 = vmatpush1.msra.mxu0 0.0
  %209 = vmatprep.subr.mxu0 0.0
  %210 = vmatpush1.msra.mxu0 0.0
  %211 = vmatprep.subr.mxu0 0.0
  %212 = vmatpush1.msra.mxu0 0.0
  %213 = vmatprep.subr.mxu0 0.0
  %214 = vmatpush1.msra.mxu0 0.0
  %215 = vmatprep.subr.mxu0 0.0
  %216 = vmatpush1.msra.mxu0 0.0
  %217 = vmatprep.subr.mxu0 0.0
  %218 = vmatpush1.msra.mxu0 0.0
  %219 = vmatprep.subr.mxu0 0.0
  %220 = vmatpush1.msra.mxu0 0.0
  %221 = vmatprep.subr.mxu0 0.0
  %222 = vmatpush1.msra.mxu0 0.0
  %223 = vmatprep.subr.mxu0 0.0
  %224 = vmatpush1.msra.mxu0 0.0
  %225 = vmatprep.subr.mxu0 0.0
  %226 = vmatpush1.msra.mxu0 0.0
  %227 = vmatprep.subr.mxu0 0.0
  %228 = vmatpush1.msra.mxu0 0.0
  %229 = vmatprep.mubr.f32.mxu0 0.0
  %230 = vmatmul.mubr.f32.gmra.mrb[0].mxu0 %v14
  %v231 = vpop.f32.mrb[0].mxu0
  %v232 = vadd.f32 %v78, %v231
  %v233 = vpop.f32.mrb[0].mxu0
  %234 = vmatprep.mubr.f32.mxu0 0.0
  %235 = vmatmul.mubr.f32.gmra.mrb[0].mxu0 %v15
  %v236 = vpop.f32.mrb[0].mxu0
  %v237 = vadd.f32 %v78, %v236
  %v238 = vpop.f32.mrb[0].mxu0
  %239 = vmatprep.mubr.f32.mxu0 0.0
  %240 = vmatmul.mubr.f32.gmra.mrb[0].mxu0 %v16
  %v241 = vpop.f32.mrb[0].mxu0
  %v242 = vadd.f32 %v78, %v241
  %v243 = vpop.f32.mrb[0].mxu0
  %244 = vdwg.mxu0
  %245 = vst [vmem:[%s3] sm:$0xff] %v149
  %246 = vst [vmem:[%s3 + $0x8] sm:$0xff] %v151
  %247 = vst [vmem:[%s3 + $0x10] sm:$0xff] %v232
  %248 = vst [vmem:[%s3 + $0x18] sm:$0xff] %v155
  %249 = vst [vmem:[%s3 + $0x20] sm:$0xff] %v157
  %250 = vst [vmem:[%s3 + $0x28] sm:$0xff] %v237
  %251 = vst [vmem:[%s3 + $0x30] sm:$0x3] %v161
  %252 = vst [vmem:[%s3 + $0x38] sm:$0x3] %v163
  %253 = vst [vmem:[%s3 + $0x40] sm:$0x3] %v242
  // Predicated region
  $region14: #{forward.13} parent=0 // pred_check
    _
  $region15: #{forward.13} parent=0 // pred_check_branch
    %255 = sbr.rel (0) target = $region17
  $region16: #{forward.13} parent=0 // pred_region
    _
  $region17: #{forward.13} parent=0 // pred_fallthru
    _
  // Predicated region
  $region18: #{forward.13} parent=0 // pred_check
    _
  $region19: #{forward.13} parent=0 // pred_check_branch
    %257 = sbr.rel (0) target = $region21
  $region20: #{forward.13} parent=0 // pred_region
    _
  $region21: #{forward.13} parent=0 // pred_fallthru
    _

// kernel: forward.15
$region0: #{forward.15}
  #allocation0 [shape = 'u32[]', space=smem, size = 0x4, offset = 0x4, fixed_abs, tag = 'smem constant byte address 0x4 - core index']
  #allocation1 [shape = 'u32[144,128]{1,0:T(1,128)}', space=vmem, size = 0x12000, scoped, tag = 'internal scratch']
  %s0 = inlined_call_operand.vmem [shape: f32[18,128], index: 0, kind: input, shape index: {}]
  %s1 = inlined_call_operand.vmem [shape: f32[18,128], index: 1, kind: input, shape index: {}]
  %s2 = inlined_call_operand.vmem [shape: f32[128,128], index: 2, kind: input, shape index: {}]
  %s3 = inlined_call_operand.vmem [shape: f32[1,128], index: 3, kind: input, shape index: {}]
  %s4 = inlined_call_operand.vmem [shape: f32[1,128], index: 4, kind: input, shape index: {}]
  %s5 = inlined_call_operand.vmem [shape: f32[1,128], index: 5, kind: input, shape index: {}]
  %s6 = inlined_call_operand.vmem [shape: f32[18,128], index: 6, kind: output, shape index: {}]
  %s7 = sld [smem:[#allocation0]]
  $region34: #{forward.15} parent=0
    _
  %s9 = ssub.s32 1, %s7
  %s10 = scalar_select 0, %s9, %s7
  // Predicated region
  $region2: #{forward.15} parent=0 // pred_check
    _
  $region3: #{forward.15} parent=0 // pred_check_branch
    %12 = sbr.rel (0) target = $region5
  $region4: #{forward.15} parent=0 // pred_region
    _
  $region5: #{forward.15} parent=0 // pred_fallthru
    _
  // Predicated region
  $region6: #{forward.15} parent=0 // pred_check
    _
  $region7: #{forward.15} parent=0 // pred_check_branch
    %14 = sbr.rel (0) target = $region9
  $region8: #{forward.15} parent=0 // pred_region
    _
  $region9: #{forward.15} parent=0 // pred_fallthru
    _
  // Predicated region
  $region10: #{forward.15} parent=0 // pred_check
    _
  $region11: #{forward.15} parent=0 // pred_check_branch
    %16 = sbr.rel (0) target = $region13
  $region12: #{forward.15} parent=0 // pred_region
    _
  $region13: #{forward.15} parent=0 // pred_fallthru
    _
  // Predicated region
  $region14: #{forward.15} parent=0 // pred_check
    _
  $region15: #{forward.15} parent=0 // pred_check_branch
    %18 = sbr.rel (0) target = $region17
  $region16: #{forward.15} parent=0 // pred_region
    _
  $region17: #{forward.15} parent=0 // pred_fallthru
    _
  // Predicated region
  $region18: #{forward.15} parent=0 // pred_check
    _
  $region19: #{forward.15} parent=0 // pred_check_branch
    %20 = sbr.rel (0) target = $region21
  $region20: #{forward.15} parent=0 // pred_region
    _
  $region21: #{forward.15} parent=0 // pred_fallthru
    _
  // Predicated region
  $region22: #{forward.15} parent=0 // pred_check
    _
  $region23: #{forward.15} parent=0 // pred_check_branch
    %22 = sbr.rel (0) target = $region25
  $region24: #{forward.15} parent=0 // pred_region
    _
  $region25: #{forward.15} parent=0 // pred_fallthru
    _
  %v23 = vld [vmem:[%s1] sm:$0xff]
  %v24 = vld [vmem:[%s1 + $0x8] sm:$0xff]
  %v25 = vld [vmem:[%s1 + $0x10] sm:$0x3]
  %v26 = vld [vmem:[%s0] sm:$0xff]
  %v27 = vld [vmem:[%s0 + $0x8] sm:$0xff]
  %v28 = vld [vmem:[%s0 + $0x10] sm:$0x3]
  %v29 = vld [vmem:[%s2] sm:$0xff]
  %v30 = vld [vmem:[%s2 + $0x8] sm:$0xff]
  %v31 = vld [vmem:[%s2 + $0x10] sm:$0xff]
  %v32 = vld [vmem:[%s2 + $0x18] sm:$0xff]
  %v33 = vld [vmem:[%s2 + $0x20] sm:$0xff]
  %v34 = vld [vmem:[%s2 + $0x28] sm:$0xff]
  %v35 = vld [vmem:[%s2 + $0x30] sm:$0xff]
  %v36 = vld [vmem:[%s2 + $0x38] sm:$0xff]
  %v37 = vld [vmem:[%s2 + $0x40] sm:$0xff]
  %v38 = vld [vmem:[%s2 + $0x48] sm:$0xff]
  %v39 = vld [vmem:[%s2 + $0x50] sm:$0xff]
  %v40 = vld [vmem:[%s2 + $0x58] sm:$0xff]
  %v41 = vld [vmem:[%s2 + $0x60] sm:$0xff]
  %v42 = vld [vmem:[%s2 + $0x68] sm:$0xff]
  %v43 = vld [vmem:[%s2 + $0x70] sm:$0xff]
  %v44 = vld [vmem:[%s2 + $0x78] sm:$0xff]
  %45 = vmatprep.subr.mxu0 0.0
  %46 = vmatpush1.msra.mxu0 %v29
  %47 = vmatprep.subr.mxu0 0.0
  %48 = vmatpush1.msra.mxu0 %v30
  %49 = vmatprep.subr.mxu0 0.0
  %50 = vmatpush1.msra.mxu0 %v31
  %51 = vmatprep.subr.mxu0 0.0
  %52 = vmatpush1.msra.mxu0 %v32
  %53 = vmatprep.subr.mxu0 0.0
  %54 = vmatpush1.msra.mxu0 %v33
  %55 = vmatprep.subr.mxu0 0.0
  %56 = vmatpush1.msra.mxu0 %v34
  %57 = vmatprep.subr.mxu0 0.0
  %58 = vmatpush1.msra.mxu0 %v35
  %59 = vmatprep.subr.mxu0 0.0
  %60 = vmatpush1.msra.mxu0 %v36
  %61 = vmatprep.subr.mxu0 0.0
  %62 = vmatpush1.msra.mxu0 %v37
  %63 = vmatprep.subr.mxu0 0.0
  %64 = vmatpush1.msra.mxu0 %v38
  %65 = vmatprep.subr.mxu0 0.0
  %66 = vmatpush1.msra.mxu0 %v39
  %67 = vmatprep.subr.mxu0 0.0
  %68 = vmatpush1.msra.mxu0 %v40
  %69 = vmatprep.subr.mxu0 0.0
  %70 = vmatpush1.msra.mxu0 %v41
  %71 = vmatprep.subr.mxu0 0.0
  %72 = vmatpush1.msra.mxu0 %v42
  %73 = vmatprep.subr.mxu0 0.0
  %74 = vmatpush1.msra.mxu0 %v43
  %75 = vmatprep.subr.mxu0 0.0
  %76 = vmatpush1.msra.mxu0 %v44
  %77 = vmatprep.subr.mxu0 0.0
  %78 = vmatpush1.msra.mxu0 0.0
  %79 = vmatprep.subr.mxu0 0.0
  %80 = vmatpush1.msra.mxu0 0.0
  %81 = vmatprep.subr.mxu0 0.0
  %82 = vmatpush1.msra.mxu0 0.0
  %83 = vmatprep.subr.mxu0 0.0
  %84 = vmatpush1.msra.mxu0 0.0
  %85 = vmatprep.subr.mxu0 0.0
  %86 = vmatpush1.msra.mxu0 0.0
  %87 = vmatprep.subr.mxu0 0.0
  %88 = vmatpush1.msra.mxu0 0.0
  %89 = vmatprep.subr.mxu0 0.0
  %90 = vmatpush1.msra.mxu0 0.0
  %91 = vmatprep.subr.mxu0 0.0
  %92 = vmatpush1.msra.mxu0 0.0
  %93 = vmatprep.subr.mxu0 0.0
  %94 = vmatpush1.msra.mxu0 0.0
  %95 = vmatprep.subr.mxu0 0.0
  %96 = vmatpush1.msra.mxu0 0.0
  %97 = vmatprep.subr.mxu0 0.0
  %98 = vmatpush1.msra.mxu0 0.0
  %99 = vmatprep.subr.mxu0 0.0
  %100 = vmatpush1.msra.mxu0 0.0
  %101 = vmatprep.subr.mxu0 0.0
  %102 = vmatpush1.msra.mxu0 0.0
  %103 = vmatprep.subr.mxu0 0.0
  %104 = vmatpush1.msra.mxu0 0.0
  %105 = vmatprep.subr.mxu0 0.0
  %106 = vmatpush1.msra.mxu0 0.0
  %107 = vmatprep.subr.mxu0 0.0
  %108 = vmatpush1.msra.mxu0 0.0
  %109 = vmatprep.mubr.f32.mxu0 0.0
  %110 = vmatmul.mubr.f32.gmra.mrb[0].mxu0 %v26
  %v111 = vpop.f32.mrb[0].mxu0
  %v112 = vadd.f32 0.0, %v111
  %v113 = vpop.f32.mrb[0].mxu0
  %114 = vmatprep.mubr.f32.mxu0 0.0
  %115 = vmatmul.mubr.f32.gmra.mrb[0].mxu0 %v27
  %v116 = vpop.f32.mrb[0].mxu0
  %v117 = vadd.f32 0.0, %v116
  %v118 = vpop.f32.mrb[0].mxu0
  %119 = vmatprep.mubr.f32.mxu0 0.0
  %120 = vmatmul.mubr.f32.gmra.mrb[0].mxu0 %v28
  %v121 = vpop.f32.mrb[0].mxu0
  %v122 = vadd.f32 0.0, %v121
  %v123 = vpop.f32.mrb[0].mxu0
  %124 = vdwg.mxu0
  %v125 = vadd.f32 %v23, %v112
  %v126 = vadd.f32 %v24, %v117
  %v127 = vadd.f32 %v25, %v122
  %v128 = vld [vmem:[%s3] sm:$0x1]
  %v130 = vlaneseq
  %v131 = vshrl.u32 %v130, 7
  %v132 = vsub.s32 0, %v131
  %v133 = vrot.slane %v128, %v132
  %v135 = vadd.f32 %v125, %v133
  %v136 = vadd.f32 %v126, %v133
  %v137 = vadd.f32 %v127, %v133
  %v138 = vld [vmem:[%s4] sm:$0x1]
  %v139 = vld [vmem:[%s5] sm:$0x1]
  %140 = vadd.xlane.f32.xlu0 %v135
  %v141 = vpop.xlane.xlu0 %140
  %142 = vadd.xlane.f32.xlu0 %v136
  %v143 = vpop.xlane.xlu0 %142
  %vm144 = vcmask 1041408
  %v145 = vsel %vm144, %v137, 0.0
  %146 = vadd.xlane.f32.xlu0 %v145
  %v147 = vpop.xlane.xlu0 %146
  %v148 = vmul.f32 %v141, 0.03125
  %v149 = vmul.f32 %v143, 0.03125
  %v150 = vmul.f32 %v147, 0.03125
  %v151 = vmul.f32 %v135, %v135
  %v152 = vmul.f32 %v136, %v136
  %v153 = vmul.f32 %v137, %v137
  %154 = vadd.xlane.f32.xlu0 %v151
  %v155 = vpop.xlane.xlu0 %154
  %156 = vadd.xlane.f32.xlu0 %v152
  %v157 = vpop.xlane.xlu0 %156
  %v158 = vsel %vm144, %v153, 0.0
  %159 = vadd.xlane.f32.xlu0 %v158
  %v160 = vpop.xlane.xlu0 %159
  %v161 = vmul.f32 %v155, 0.03125
  %v162 = vmul.f32 %v157, 0.03125
  %v163 = vmul.f32 %v160, 0.03125
  %v164 = vmul.f32 %v148, %v148
  %v165 = vmul.f32 %v149, %v149
  %v166 = vmul.f32 %v150, %v150
  %v167 = vsub.f32 %v161, %v164
  %v168 = vsub.f32 %v162, %v165
  %v169 = vsub.f32 %v163, %v166
  %v170 = vmax.f32 %v167, 0.0
  %v171 = vmax.f32 %v168, 0.0
  %v172 = vmax.f32 %v169, 0.0
  %v173 = vsub.f32 %v135, %v148
  %v174 = vsub.f32 %v136, %v149
  %v175 = vsub.f32 %v137, %v150
  %v176 = vadd.f32 %v170, 1e-05
  %v177 = vadd.f32 %v171, 1e-05
  %v178 = vadd.f32 %v172, 1e-05
  %v179 = vrsqrt.pop %v176
  %v180 = vrsqrt.pop %v177
  %v181 = vrsqrt.pop %v178
  %v182 = vmul.f32 %v173, %v179
  %v183 = vmul.f32 %v174, %v180
  %v184 = vmul.f32 %v175, %v181
  %v186 = vlaneseq
  %v187 = vshrl.u32 %v186, 7
  %v188 = vsub.s32 0, %v187
  %v189 = vrot.slane %v138, %v188
  %v191 = vmul.f32 %v182, %v189
  %v192 = vmul.f32 %v183, %v189
  %v193 = vmul.f32 %v184, %v189
  %v195 = vlaneseq
  %v196 = vshrl.u32 %v195, 7
  %v197 = vsub.s32 0, %v196
  %v198 = vrot.slane %v139, %v197
  %v200 = vadd.f32 %v191, %v198
  %v201 = vadd.f32 %v192, %v198
  %v202 = vadd.f32 %v193, %v198
  %203 = vst [vmem:[%s6] sm:$0xff] %v200
  %204 = vst [vmem:[%s6 + $0x8] sm:$0xff] %v201
  %205 = vst [vmem:[%s6 + $0x10] sm:$0x3] %v202
  // Predicated region
  $region26: #{forward.15} parent=0 // pred_check
    _
  $region27: #{forward.15} parent=0 // pred_check_branch
    %207 = sbr.rel (0) target = $region29
  $region28: #{forward.15} parent=0 // pred_region
    _
  $region29: #{forward.15} parent=0 // pred_fallthru
    _
  // Predicated region
  $region30: #{forward.15} parent=0 // pred_check
    _
  $region31: #{forward.15} parent=0 // pred_check_branch
    %209 = sbr.rel (0) target = $region33
  $region32: #{forward.15} parent=0 // pred_region
    _
  $region33: #{forward.15} parent=0 // pred_fallthru
    _

// kernel: forward.16
$region0: #{forward.16}
  #allocation0 [shape = 'u32[]', space=smem, size = 0x4, offset = 0x4, fixed_abs, tag = 'smem constant byte address 0x4 - core index']
  #allocation1 [shape = 'u32[144,128]{1,0:T(1,128)}', space=vmem, size = 0x12000, scoped, tag = 'internal scratch']
  %s0 = inlined_call_operand.vmem [shape: f32[18,128], index: 0, kind: input, shape index: {}]
  %s1 = inlined_call_operand.vmem [shape: f32[128,128], index: 1, kind: input, shape index: {}]
  %s2 = inlined_call_operand.vmem [shape: f32[1,128], index: 2, kind: input, shape index: {}]
  %s3 = inlined_call_operand.vmem [shape: f32[128,128], index: 3, kind: input, shape index: {}]
  %s4 = inlined_call_operand.vmem [shape: f32[1,128], index: 4, kind: input, shape index: {}]
  %s5 = inlined_call_operand.vmem [shape: f32[1,128], index: 5, kind: input, shape index: {}]
  %s6 = inlined_call_operand.vmem [shape: f32[1,128], index: 6, kind: input, shape index: {}]
  %s7 = inlined_call_operand.vmem [shape: f32[18,128], index: 7, kind: output, shape index: {}]
  %s8 = sld [smem:[#allocation0]]
  $region38: #{forward.16} parent=0
    _
  %s10 = ssub.s32 1, %s8
  %s11 = scalar_select 0, %s10, %s8
  // Predicated region
  $region2: #{forward.16} parent=0 // pred_check
    _
  $region3: #{forward.16} parent=0 // pred_check_branch
    %13 = sbr.rel (0) target = $region5
  $region4: #{forward.16} parent=0 // pred_region
    _
  $region5: #{forward.16} parent=0 // pred_fallthru
    _
  // Predicated region
  $region6: #{forward.16} parent=0 // pred_check
    _
  $region7: #{forward.16} parent=0 // pred_check_branch
    %15 = sbr.rel (0) target = $region9
  $region8: #{forward.16} parent=0 // pred_region
    _
  $region9: #{forward.16} parent=0 // pred_fallthru
    _
  // Predicated region
  $region10: #{forward.16} parent=0 // pred_check
    _
  $region11: #{forward.16} parent=0 // pred_check_branch
    %17 = sbr.rel (0) target = $region13
  $region12: #{forward.16} parent=0 // pred_region
    _
  $region13: #{forward.16} parent=0 // pred_fallthru
    _
  // Predicated region
  $region14: #{forward.16} parent=0 // pred_check
    _
  $region15: #{forward.16} parent=0 // pred_check_branch
    %19 = sbr.rel (0) target = $region17
  $region16: #{forward.16} parent=0 // pred_region
    _
  $region17: #{forward.16} parent=0 // pred_fallthru
    _
  // Predicated region
  $region18: #{forward.16} parent=0 // pred_check
    _
  $region19: #{forward.16} parent=0 // pred_check_branch
    %21 = sbr.rel (0) target = $region21
  $region20: #{forward.16} parent=0 // pred_region
    _
  $region21: #{forward.16} parent=0 // pred_fallthru
    _
  // Predicated region
  $region22: #{forward.16} parent=0 // pred_check
    _
  $region23: #{forward.16} parent=0 // pred_check_branch
    %23 = sbr.rel (0) target = $region25
  $region24: #{forward.16} parent=0 // pred_region
    _
  $region25: #{forward.16} parent=0 // pred_fallthru
    _
  // Predicated region
  $region26: #{forward.16} parent=0 // pred_check
    _
  $region27: #{forward.16} parent=0 // pred_check_branch
    %25 = sbr.rel (0) target = $region29
  $region28: #{forward.16} parent=0 // pred_region
    _
  $region29: #{forward.16} parent=0 // pred_fallthru
    _
  %v26 = vld [vmem:[%s0] sm:$0xff]
  %v27 = vld [vmem:[%s0 + $0x8] sm:$0xff]
  %v28 = vld [vmem:[%s0 + $0x10] sm:$0x3]
  %v29 = vld [vmem:[%s1] sm:$0xff]
  %v30 = vld [vmem:[%s1 + $0x8] sm:$0xff]
  %v31 = vld [vmem:[%s1 + $0x10] sm:$0xff]
  %v32 = vld [vmem:[%s1 + $0x18] sm:$0xff]
  %v33 = vld [vmem:[%s1 + $0x20] sm:$0xff]
  %v34 = vld [vmem:[%s1 + $0x28] sm:$0xff]
  %v35 = vld [vmem:[%s1 + $0x30] sm:$0xff]
  %v36 = vld [vmem:[%s1 + $0x38] sm:$0xff]
  %v37 = vld [vmem:[%s1 + $0x40] sm:$0xff]
  %v38 = vld [vmem:[%s1 + $0x48] sm:$0xff]
  %v39 = vld [vmem:[%s1 + $0x50] sm:$0xff]
  %v40 = vld [vmem:[%s1 + $0x58] sm:$0xff]
  %v41 = vld [vmem:[%s1 + $0x60] sm:$0xff]
  %v42 = vld [vmem:[%s1 + $0x68] sm:$0xff]
  %v43 = vld [vmem:[%s1 + $0x70] sm:$0xff]
  %v44 = vld [vmem:[%s1 + $0x78] sm:$0xff]
  %v45 = vld [vmem:[%s2] sm:$0x1]
  %v47 = vlaneseq
  %v48 = vshrl.u32 %v47, 7
  %v49 = vsub.s32 0, %v48
  %v50 = vrot.slane %v45, %v49
  %52 = vmatprep.subr.mxu0 0.0
  %53 = vmatpush1.msra.mxu0 %v29
  %54 = vmatprep.subr.mxu0 0.0
  %55 = vmatpush1.msra.mxu0 %v30
  %56 = vmatprep.subr.mxu0 0.0
  %57 = vmatpush1.msra.mxu0 %v31
  %58 = vmatprep.subr.mxu0 0.0
  %59 = vmatpush1.msra.mxu0 %v32
  %60 = vmatprep.subr.mxu0 0.0
  %61 = vmatpush1.msra.mxu0 %v33
  %62 = vmatprep.subr.mxu0 0.0
  %63 = vmatpush1.msra.mxu0 %v34
  %64 = vmatprep.subr.mxu0 0.0
  %65 = vmatpush1.msra.mxu0 %v35
  %66 = vmatprep.subr.mxu0 0.0
  %67 = vmatpush1.msra.mxu0 %v36
  %68 = vmatprep.subr.mxu0 0.0
  %69 = vmatpush1.msra.mxu0 %v37
  %70 = vmatprep.subr.mxu0 0.0
  %71 = vmatpush1.msra.mxu0 %v38
  %72 = vmatprep.subr.mxu0 0.0
  %73 = vmatpush1.msra.mxu0 %v39
  %74 = vmatprep.subr.mxu0 0.0
  %75 = vmatpush1.msra.mxu0 %v40
  %76 = vmatprep.subr.mxu0 0.0
  %77 = vmatpush1.msra.mxu0 %v41
  %78 = vmatprep.subr.mxu0 0.0
  %79 = vmatpush1.msra.mxu0 %v42
  %80 = vmatprep.subr.mxu0 0.0
  %81 = vmatpush1.msra.mxu0 %v43
  %82 = vmatprep.subr.mxu0 0.0
  %83 = vmatpush1.msra.mxu0 %v44
  %84 = vmatprep.subr.mxu0 0.0
  %85 = vmatpush1.msra.mxu0 0.0
  %86 = vmatprep.subr.mxu0 0.0
  %87 = vmatpush1.msra.mxu0 0.0
  %88 = vmatprep.subr.mxu0 0.0
  %89 = vmatpush1.msra.mxu0 0.0
  %90 = vmatprep.subr.mxu0 0.0
  %91 = vmatpush1.msra.mxu0 0.0
  %92 = vmatprep.subr.mxu0 0.0
  %93 = vmatpush1.msra.mxu0 0.0
  %94 = vmatprep.subr.mxu0 0.0
  %95 = vmatpush1.msra.mxu0 0.0
  %96 = vmatprep.subr.mxu0 0.0
  %97 = vmatpush1.msra.mxu0 0.0
  %98 = vmatprep.subr.mxu0 0.0
  %99 = vmatpush1.msra.mxu0 0.0
  %100 = vmatprep.subr.mxu0 0.0
  %101 = vmatpush1.msra.mxu0 0.0
  %102 = vmatprep.subr.mxu0 0.0
  %103 = vmatpush1.msra.mxu0 0.0
  %104 = vmatprep.subr.mxu0 0.0
  %105 = vmatpush1.msra.mxu0 0.0
  %106 = vmatprep.subr.mxu0 0.0
  %107 = vmatpush1.msra.mxu0 0.0
  %108 = vmatprep.subr.mxu0 0.0
  %109 = vmatpush1.msra.mxu0 0.0
  %110 = vmatprep.subr.mxu0 0.0
  %111 = vmatpush1.msra.mxu0 0.0
  %112 = vmatprep.subr.mxu0 0.0
  %113 = vmatpush1.msra.mxu0 0.0
  %114 = vmatprep.subr.mxu0 0.0
  %115 = vmatpush1.msra.mxu0 0.0
  %116 = vmatprep.mubr.f32.mxu0 0.0
  %117 = vmatmul.mubr.f32.gmra.mrb[0].mxu0 %v26
  %v118 = vpop.f32.mrb[0].mxu0
  %v119 = vadd.f32 %v50, %v118
  %v120 = vpop.f32.mrb[0].mxu0
  %121 = vmatprep.mubr.f32.mxu0 0.0
  %122 = vmatmul.mubr.f32.gmra.mrb[0].mxu0 %v27
  %v123 = vpop.f32.mrb[0].mxu0
  %v124 = vadd.f32 %v50, %v123
  %v125 = vpop.f32.mrb[0].mxu0
  %126 = vmatprep.mubr.f32.mxu0 0.0
  %127 = vmatmul.mubr.f32.gmra.mrb[0].mxu0 %v28
  %v128 = vpop.f32.mrb[0].mxu0
  %v129 = vadd.f32 %v50, %v128
  %v130 = vpop.f32.mrb[0].mxu0
  %131 = vdwg.mxu0
  %v132 = vmax.f32 %v119, 0.0
  %v133 = vmax.f32 %v124, 0.0
  %v134 = vmax.f32 %v129, 0.0
  %v135 = vld [vmem:[%s3] sm:$0xff]
  %v136 = vld [vmem:[%s3 + $0x8] sm:$0xff]
  %v137 = vld [vmem:[%s3 + $0x10] sm:$0xff]
  %v138 = vld [vmem:[%s3 + $0x18] sm:$0xff]
  %v139 = vld [vmem:[%s3 + $0x20] sm:$0xff]
  %v140 = vld [vmem:[%s3 + $0x28] sm:$0xff]
  %v141 = vld [vmem:[%s3 + $0x30] sm:$0xff]
  %v142 = vld [vmem:[%s3 + $0x38] sm:$0xff]
  %v143 = vld [vmem:[%s3 + $0x40] sm:$0xff]
  %v144 = vld [vmem:[%s3 + $0x48] sm:$0xff]
  %v145 = vld [vmem:[%s3 + $0x50] sm:$0xff]
  %v146 = vld [vmem:[%s3 + $0x58] sm:$0xff]
  %v147 = vld [vmem:[%s3 + $0x60] sm:$0xff]
  %v148 = vld [vmem:[%s3 + $0x68] sm:$0xff]
  %v149 = vld [vmem:[%s3 + $0x70] sm:$0xff]
  %v150 = vld [vmem:[%s3 + $0x78] sm:$0xff]
  %151 = vmatprep.subr.mxu0 0.0
  %152 = vmatpush1.msra.mxu0 %v135
  %153 = vmatprep.subr.mxu0 0.0
  %154 = vmatpush1.msra.mxu0 %v136
  %155 = vmatprep.subr.mxu0 0.0
  %156 = vmatpush1.msra.mxu0 %v137
  %157 = vmatprep.subr.mxu0 0.0
  %158 = vmatpush1.msra.mxu0 %v138
  %159 = vmatprep.subr.mxu0 0.0
  %160 = vmatpush1.msra.mxu0 %v139
  %161 = vmatprep.subr.mxu0 0.0
  %162 = vmatpush1.msra.mxu0 %v140
  %163 = vmatprep.subr.mxu0 0.0
  %164 = vmatpush1.msra.mxu0 %v141
  %165 = vmatprep.subr.mxu0 0.0
  %166 = vmatpush1.msra.mxu0 %v142
  %167 = vmatprep.subr.mxu0 0.0
  %168 = vmatpush1.msra.mxu0 %v143
  %169 = vmatprep.subr.mxu0 0.0
  %170 = vmatpush1.msra.mxu0 %v144
  %171 = vmatprep.subr.mxu0 0.0
  %172 = vmatpush1.msra.mxu0 %v145
  %173 = vmatprep.subr.mxu0 0.0
  %174 = vmatpush1.msra.mxu0 %v146
  %175 = vmatprep.subr.mxu0 0.0
  %176 = vmatpush1.msra.mxu0 %v147
  %177 = vmatprep.subr.mxu0 0.0
  %178 = vmatpush1.msra.mxu0 %v148
  %179 = vmatprep.subr.mxu0 0.0
  %180 = vmatpush1.msra.mxu0 %v149
  %181 = vmatprep.subr.mxu0 0.0
  %182 = vmatpush1.msra.mxu0 %v150
  %183 = vmatprep.subr.mxu0 0.0
  %184 = vmatpush1.msra.mxu0 0.0
  %185 = vmatprep.subr.mxu0 0.0
  %186 = vmatpush1.msra.mxu0 0.0
  %187 = vmatprep.subr.mxu0 0.0
  %188 = vmatpush1.msra.mxu0 0.0
  %189 = vmatprep.subr.mxu0 0.0
  %190 = vmatpush1.msra.mxu0 0.0
  %191 = vmatprep.subr.mxu0 0.0
  %192 = vmatpush1.msra.mxu0 0.0
  %193 = vmatprep.subr.mxu0 0.0
  %194 = vmatpush1.msra.mxu0 0.0
  %195 = vmatprep.subr.mxu0 0.0
  %196 = vmatpush1.msra.mxu0 0.0
  %197 = vmatprep.subr.mxu0 0.0
  %198 = vmatpush1.msra.mxu0 0.0
  %199 = vmatprep.subr.mxu0 0.0
  %200 = vmatpush1.msra.mxu0 0.0
  %201 = vmatprep.subr.mxu0 0.0
  %202 = vmatpush1.msra.mxu0 0.0
  %203 = vmatprep.subr.mxu0 0.0
  %204 = vmatpush1.msra.mxu0 0.0
  %205 = vmatprep.subr.mxu0 0.0
  %206 = vmatpush1.msra.mxu0 0.0
  %207 = vmatprep.subr.mxu0 0.0
  %208 = vmatpush1.msra.mxu0 0.0
  %209 = vmatprep.subr.mxu0 0.0
  %210 = vmatpush1.msra.mxu0 0.0
  %211 = vmatprep.subr.mxu0 0.0
  %212 = vmatpush1.msra.mxu0 0.0
  %213 = vmatprep.subr.mxu0 0.0
  %214 = vmatpush1.msra.mxu0 0.0
  %215 = vmatprep.mubr.f32.mxu0 0.0
  %216 = vmatmul.mubr.f32.gmra.mrb[0].mxu0 %v132
  %v217 = vpop.f32.mrb[0].mxu0
  %v218 = vadd.f32 0.0, %v217
  %v219 = vpop.f32.mrb[0].mxu0
  %220 = vmatprep.mubr.f32.mxu0 0.0
  %221 = vmatmul.mubr.f32.gmra.mrb[0].mxu0 %v133
  %v222 = vpop.f32.mrb[0].mxu0
  %v223 = vadd.f32 0.0, %v222
  %v224 = vpop.f32.mrb[0].mxu0
  %225 = vmatprep.mubr.f32.mxu0 0.0
  %226 = vmatmul.mubr.f32.gmra.mrb[0].mxu0 %v134
  %v227 = vpop.f32.mrb[0].mxu0
  %v228 = vadd.f32 0.0, %v227
  %v229 = vpop.f32.mrb[0].mxu0
  %230 = vdwg.mxu0
  %v231 = vadd.f32 %v26, %v218
  %v232 = vadd.f32 %v27, %v223
  %v233 = vadd.f32 %v28, %v228
  %v234 = vld [vmem:[%s4] sm:$0x1]
  %v236 = vlaneseq
  %v237 = vshrl.u32 %v236, 7
  %v238 = vsub.s32 0, %v237
  %v239 = vrot.slane %v234, %v238
  %v241 = vadd.f32 %v231, %v239
  %v242 = vadd.f32 %v232, %v239
  %v243 = vadd.f32 %v233, %v239
  %v244 = vld [vmem:[%s5] sm:$0x1]
  %v245 = vld [vmem:[%s6] sm:$0x1]
  %246 = vadd.xlane.f32.xlu0 %v241
  %v247 = vpop.xlane.xlu0 %246
  %248 = vadd.xlane.f32.xlu0 %v242
  %v249 = vpop.xlane.xlu0 %248
  %vm250 = vcmask 1041408
  %v251 = vsel %vm250, %v243, 0.0
  %252 = vadd.xlane.f32.xlu0 %v251
  %v253 = vpop.xlane.xlu0 %252
  %v254 = vmul.f32 %v247, 0.03125
  %v255 = vmul.f32 %v249, 0.03125
  %v256 = vmul.f32 %v253, 0.03125
  %v257 = vmul.f32 %v241, %v241
  %v258 = vmul.f32 %v242, %v242
  %v259 = vmul.f32 %v243, %v243
  %260 = vadd.xlane.f32.xlu0 %v257
  %v261 = vpop.xlane.xlu0 %260
  %262 = vadd.xlane.f32.xlu0 %v258
  %v263 = vpop.xlane.xlu0 %262
  %v264 = vsel %vm250, %v259, 0.0
  %265 = vadd.xlane.f32.xlu0 %v264
  %v266 = vpop.xlane.xlu0 %265
  %v267 = vmul.f32 %v261, 0.03125
  %v268 = vmul.f32 %v263, 0.03125
  %v269 = vmul.f32 %v266, 0.03125
  %v270 = vmul.f32 %v254, %v254
  %v271 = vmul.f32 %v255, %v255
  %v272 = vmul.f32 %v256, %v256
  %v273 = vsub.f32 %v267, %v270
  %v274 = vsub.f32 %v268, %v271
  %v275 = vsub.f32 %v269, %v272
  %v276 = vmax.f32 %v273, 0.0
  %v277 = vmax.f32 %v274, 0.0
  %v278 = vmax.f32 %v275, 0.0
  %v279 = vsub.f32 %v241, %v254
  %v280 = vsub.f32 %v242, %v255
  %v281 = vsub.f32 %v243, %v256
  %v282 = vadd.f32 %v276, 1e-05
  %v283 = vadd.f32 %v277, 1e-05
  %v284 = vadd.f32 %v278, 1e-05
  %v285 = vrsqrt.pop %v282
  %v286 = vrsqrt.pop %v283
  %v287 = vrsqrt.pop %v284
  %v288 = vmul.f32 %v279, %v285
  %v289 = vmul.f32 %v280, %v286
  %v290 = vmul.f32 %v281, %v287
  %v292 = vlaneseq
  %v293 = vshrl.u32 %v292, 7
  %v294 = vsub.s32 0, %v293
  %v295 = vrot.slane %v244, %v294
  %v297 = vmul.f32 %v288, %v295
  %v298 = vmul.f32 %v289, %v295
  %v299 = vmul.f32 %v290, %v295
  %v301 = vlaneseq
  %v302 = vshrl.u32 %v301, 7
  %v303 = vsub.s32 0, %v302
  %v304 = vrot.slane %v245, %v303
  %v306 = vadd.f32 %v297, %v304
  %v307 = vadd.f32 %v298, %v304
  %v308 = vadd.f32 %v299, %v304
  %309 = vst [vmem:[%s7] sm:$0xff] %v306
  %310 = vst [vmem:[%s7 + $0x8] sm:$0xff] %v307
  %311 = vst [vmem:[%s7 + $0x10] sm:$0x3] %v308
  // Predicated region
  $region30: #{forward.16} parent=0 // pred_check
    _
  $region31: #{forward.16} parent=0 // pred_check_branch
    %313 = sbr.rel (0) target = $region33
  $region32: #{forward.16} parent=0 // pred_region
    _
  $region33: #{forward.16} parent=0 // pred_fallthru
    _
  // Predicated region
  $region34: #{forward.16} parent=0 // pred_check
    _
  $region35: #{forward.16} parent=0 // pred_check_branch
    %315 = sbr.rel (0) target = $region37
  $region36: #{forward.16} parent=0 // pred_region
    _
  $region37: #{forward.16} parent=0 // pred_fallthru
    _

// kernel: forward.21
$region0: #{forward.21}
  #allocation0 [shape = 'u32[]', space=smem, size = 0x4, offset = 0x4, fixed_abs, tag = 'smem constant byte address 0x4 - core index']
  #allocation1 [shape = 'u32[144,128]{1,0:T(1,128)}', space=vmem, size = 0x12000, scoped, tag = 'internal scratch']
  %s0 = inlined_call_operand.vmem [shape: f32[18,128], index: 0, kind: input, shape index: {}]
  %s1 = inlined_call_operand.vmem [shape: f32[128,128], index: 1, kind: input, shape index: {}]
  %s2 = inlined_call_operand.vmem [shape: f32[1,128], index: 2, kind: input, shape index: {}]
  %s3 = inlined_call_operand.vmem [shape: f32[128,128], index: 3, kind: input, shape index: {}]
  %s4 = inlined_call_operand.vmem [shape: f32[1,128], index: 4, kind: input, shape index: {}]
  %s5 = inlined_call_operand.vmem [shape: f32[18,128], index: 5, kind: output, shape index: {}]
  %s6 = sld [smem:[#allocation0]]
  $region30: #{forward.21} parent=0
    _
  %s8 = ssub.s32 1, %s6
  %s9 = scalar_select 0, %s8, %s6
  // Predicated region
  $region2: #{forward.21} parent=0 // pred_check
    _
  $region3: #{forward.21} parent=0 // pred_check_branch
    %11 = sbr.rel (0) target = $region5
  $region4: #{forward.21} parent=0 // pred_region
    _
  $region5: #{forward.21} parent=0 // pred_fallthru
    _
  // Predicated region
  $region6: #{forward.21} parent=0 // pred_check
    _
  $region7: #{forward.21} parent=0 // pred_check_branch
    %13 = sbr.rel (0) target = $region9
  $region8: #{forward.21} parent=0 // pred_region
    _
  $region9: #{forward.21} parent=0 // pred_fallthru
    _
  // Predicated region
  $region10: #{forward.21} parent=0 // pred_check
    _
  $region11: #{forward.21} parent=0 // pred_check_branch
    %15 = sbr.rel (0) target = $region13
  $region12: #{forward.21} parent=0 // pred_region
    _
  $region13: #{forward.21} parent=0 // pred_fallthru
    _
  // Predicated region
  $region14: #{forward.21} parent=0 // pred_check
    _
  $region15: #{forward.21} parent=0 // pred_check_branch
    %17 = sbr.rel (0) target = $region17
  $region16: #{forward.21} parent=0 // pred_region
    _
  $region17: #{forward.21} parent=0 // pred_fallthru
    _
  // Predicated region
  $region18: #{forward.21} parent=0 // pred_check
    _
  $region19: #{forward.21} parent=0 // pred_check_branch
    %19 = sbr.rel (0) target = $region21
  $region20: #{forward.21} parent=0 // pred_region
    _
  $region21: #{forward.21} parent=0 // pred_fallthru
    _
  %v20 = vld [vmem:[%s0] sm:$0xff]
  %v21 = vld [vmem:[%s0 + $0x8] sm:$0xff]
  %v22 = vld [vmem:[%s0 + $0x10] sm:$0x3]
  %v23 = vld [vmem:[%s1] sm:$0xff]
  %v24 = vld [vmem:[%s1 + $0x8] sm:$0xff]
  %v25 = vld [vmem:[%s1 + $0x10] sm:$0xff]
  %v26 = vld [vmem:[%s1 + $0x18] sm:$0xff]
  %v27 = vld [vmem:[%s1 + $0x20] sm:$0xff]
  %v28 = vld [vmem:[%s1 + $0x28] sm:$0xff]
  %v29 = vld [vmem:[%s1 + $0x30] sm:$0xff]
  %v30 = vld [vmem:[%s1 + $0x38] sm:$0xff]
  %v31 = vld [vmem:[%s1 + $0x40] sm:$0xff]
  %v32 = vld [vmem:[%s1 + $0x48] sm:$0xff]
  %v33 = vld [vmem:[%s1 + $0x50] sm:$0xff]
  %v34 = vld [vmem:[%s1 + $0x58] sm:$0xff]
  %v35 = vld [vmem:[%s1 + $0x60] sm:$0xff]
  %v36 = vld [vmem:[%s1 + $0x68] sm:$0xff]
  %v37 = vld [vmem:[%s1 + $0x70] sm:$0xff]
  %v38 = vld [vmem:[%s1 + $0x78] sm:$0xff]
  %v39 = vld [vmem:[%s2] sm:$0x1]
  %v41 = vlaneseq
  %v42 = vshrl.u32 %v41, 7
  %v43 = vsub.s32 0, %v42
  %v44 = vrot.slane %v39, %v43
  %46 = vmatprep.subr.mxu0 0.0
  %47 = vmatpush1.msra.mxu0 %v23
  %48 = vmatprep.subr.mxu0 0.0
  %49 = vmatpush1.msra.mxu0 %v24
  %50 = vmatprep.subr.mxu0 0.0
  %51 = vmatpush1.msra.mxu0 %v25
  %52 = vmatprep.subr.mxu0 0.0
  %53 = vmatpush1.msra.mxu0 %v26
  %54 = vmatprep.subr.mxu0 0.0
  %55 = vmatpush1.msra.mxu0 %v27
  %56 = vmatprep.subr.mxu0 0.0
  %57 = vmatpush1.msra.mxu0 %v28
  %58 = vmatprep.subr.mxu0 0.0
  %59 = vmatpush1.msra.mxu0 %v29
  %60 = vmatprep.subr.mxu0 0.0
  %61 = vmatpush1.msra.mxu0 %v30
  %62 = vmatprep.subr.mxu0 0.0
  %63 = vmatpush1.msra.mxu0 %v31
  %64 = vmatprep.subr.mxu0 0.0
  %65 = vmatpush1.msra.mxu0 %v32
  %66 = vmatprep.subr.mxu0 0.0
  %67 = vmatpush1.msra.mxu0 %v33
  %68 = vmatprep.subr.mxu0 0.0
  %69 = vmatpush1.msra.mxu0 %v34
  %70 = vmatprep.subr.mxu0 0.0
  %71 = vmatpush1.msra.mxu0 %v35
  %72 = vmatprep.subr.mxu0 0.0
  %73 = vmatpush1.msra.mxu0 %v36
  %74 = vmatprep.subr.mxu0 0.0
  %75 = vmatpush1.msra.mxu0 %v37
  %76 = vmatprep.subr.mxu0 0.0
  %77 = vmatpush1.msra.mxu0 %v38
  %78 = vmatprep.subr.mxu0 0.0
  %79 = vmatpush1.msra.mxu0 0.0
  %80 = vmatprep.subr.mxu0 0.0
  %81 = vmatpush1.msra.mxu0 0.0
  %82 = vmatprep.subr.mxu0 0.0
  %83 = vmatpush1.msra.mxu0 0.0
  %84 = vmatprep.subr.mxu0 0.0
  %85 = vmatpush1.msra.mxu0 0.0
  %86 = vmatprep.subr.mxu0 0.0
  %87 = vmatpush1.msra.mxu0 0.0
  %88 = vmatprep.subr.mxu0 0.0
  %89 = vmatpush1.msra.mxu0 0.0
  %90 = vmatprep.subr.mxu0 0.0
  %91 = vmatpush1.msra.mxu0 0.0
  %92 = vmatprep.subr.mxu0 0.0
  %93 = vmatpush1.msra.mxu0 0.0
  %94 = vmatprep.subr.mxu0 0.0
  %95 = vmatpush1.msra.mxu0 0.0
  %96 = vmatprep.subr.mxu0 0.0
  %97 = vmatpush1.msra.mxu0 0.0
  %98 = vmatprep.subr.mxu0 0.0
  %99 = vmatpush1.msra.mxu0 0.0
  %100 = vmatprep.subr.mxu0 0.0
  %101 = vmatpush1.msra.mxu0 0.0
  %102 = vmatprep.subr.mxu0 0.0
  %103 = vmatpush1.msra.mxu0 0.0
  %104 = vmatprep.subr.mxu0 0.0
  %105 = vmatpush1.msra.mxu0 0.0
  %106 = vmatprep.subr.mxu0 0.0
  %107 = vmatpush1.msra.mxu0 0.0
  %108 = vmatprep.subr.mxu0 0.0
  %109 = vmatpush1.msra.mxu0 0.0
  %110 = vmatprep.mubr.f32.mxu0 0.0
  %111 = vmatmul.mubr.f32.gmra.mrb[0].mxu0 %v20
  %v112 = vpop.f32.mrb[0].mxu0
  %v113 = vadd.f32 %v44, %v112
  %v114 = vpop.f32.mrb[0].mxu0
  %115 = vmatprep.mubr.f32.mxu0 0.0
  %116 = vmatmul.mubr.f32.gmra.mrb[0].mxu0 %v21
  %v117 = vpop.f32.mrb[0].mxu0
  %v118 = vadd.f32 %v44, %v117
  %v119 = vpop.f32.mrb[0].mxu0
  %120 = vmatprep.mubr.f32.mxu0 0.0
  %121 = vmatmul.mubr.f32.gmra.mrb[0].mxu0 %v22
  %v122 = vpop.f32.mrb[0].mxu0
  %v123 = vadd.f32 %v44, %v122
  %v124 = vpop.f32.mrb[0].mxu0
  %125 = vdwg.mxu0
  %v126 = vmax.f32 %v113, 0.0
  %v127 = vmax.f32 %v118, 0.0
  %v128 = vmax.f32 %v123, 0.0
  %v129 = vld [vmem:[%s3] sm:$0xff]
  %v130 = vld [vmem:[%s3 + $0x8] sm:$0xff]
  %v131 = vld [vmem:[%s3 + $0x10] sm:$0xff]
  %v132 = vld [vmem:[%s3 + $0x18] sm:$0xff]
  %v133 = vld [vmem:[%s3 + $0x20] sm:$0xff]
  %v134 = vld [vmem:[%s3 + $0x28] sm:$0xff]
  %v135 = vld [vmem:[%s3 + $0x30] sm:$0xff]
  %v136 = vld [vmem:[%s3 + $0x38] sm:$0xff]
  %v137 = vld [vmem:[%s3 + $0x40] sm:$0xff]
  %v138 = vld [vmem:[%s3 + $0x48] sm:$0xff]
  %v139 = vld [vmem:[%s3 + $0x50] sm:$0xff]
  %v140 = vld [vmem:[%s3 + $0x58] sm:$0xff]
  %v141 = vld [vmem:[%s3 + $0x60] sm:$0xff]
  %v142 = vld [vmem:[%s3 + $0x68] sm:$0xff]
  %v143 = vld [vmem:[%s3 + $0x70] sm:$0xff]
  %v144 = vld [vmem:[%s3 + $0x78] sm:$0xff]
  %v145 = vld [vmem:[%s4] sm:$0x1]
  %v147 = vlaneseq
  %v148 = vshrl.u32 %v147, 7
  %v149 = vsub.s32 0, %v148
  %v150 = vrot.slane %v145, %v149
  %152 = vmatprep.subr.mxu0 0.0
  %153 = vmatpush1.msra.mxu0 %v129
  %154 = vmatprep.subr.mxu0 0.0
  %155 = vmatpush1.msra.mxu0 %v130
  %156 = vmatprep.subr.mxu0 0.0
  %157 = vmatpush1.msra.mxu0 %v131
  %158 = vmatprep.subr.mxu0 0.0
  %159 = vmatpush1.msra.mxu0 %v132
  %160 = vmatprep.subr.mxu0 0.0
  %161 = vmatpush1.msra.mxu0 %v133
  %162 = vmatprep.subr.mxu0 0.0
  %163 = vmatpush1.msra.mxu0 %v134
  %164 = vmatprep.subr.mxu0 0.0
  %165 = vmatpush1.msra.mxu0 %v135
  %166 = vmatprep.subr.mxu0 0.0
  %167 = vmatpush1.msra.mxu0 %v136
  %168 = vmatprep.subr.mxu0 0.0
  %169 = vmatpush1.msra.mxu0 %v137
  %170 = vmatprep.subr.mxu0 0.0
  %171 = vmatpush1.msra.mxu0 %v138
  %172 = vmatprep.subr.mxu0 0.0
  %173 = vmatpush1.msra.mxu0 %v139
  %174 = vmatprep.subr.mxu0 0.0
  %175 = vmatpush1.msra.mxu0 %v140
  %176 = vmatprep.subr.mxu0 0.0
  %177 = vmatpush1.msra.mxu0 %v141
  %178 = vmatprep.subr.mxu0 0.0
  %179 = vmatpush1.msra.mxu0 %v142
  %180 = vmatprep.subr.mxu0 0.0
  %181 = vmatpush1.msra.mxu0 %v143
  %182 = vmatprep.subr.mxu0 0.0
  %183 = vmatpush1.msra.mxu0 %v144
  %184 = vmatprep.subr.mxu0 0.0
  %185 = vmatpush1.msra.mxu0 0.0
  %186 = vmatprep.subr.mxu0 0.0
  %187 = vmatpush1.msra.mxu0 0.0
  %188 = vmatprep.subr.mxu0 0.0
  %189 = vmatpush1.msra.mxu0 0.0
  %190 = vmatprep.subr.mxu0 0.0
  %191 = vmatpush1.msra.mxu0 0.0
  %192 = vmatprep.subr.mxu0 0.0
  %193 = vmatpush1.msra.mxu0 0.0
  %194 = vmatprep.subr.mxu0 0.0
  %195 = vmatpush1.msra.mxu0 0.0
  %196 = vmatprep.subr.mxu0 0.0
  %197 = vmatpush1.msra.mxu0 0.0
  %198 = vmatprep.subr.mxu0 0.0
  %199 = vmatpush1.msra.mxu0 0.0
  %200 = vmatprep.subr.mxu0 0.0
  %201 = vmatpush1.msra.mxu0 0.0
  %202 = vmatprep.subr.mxu0 0.0
  %203 = vmatpush1.msra.mxu0 0.0
  %204 = vmatprep.subr.mxu0 0.0
  %205 = vmatpush1.msra.mxu0 0.0
  %206 = vmatprep.subr.mxu0 0.0
  %207 = vmatpush1.msra.mxu0 0.0
  %208 = vmatprep.subr.mxu0 0.0
  %209 = vmatpush1.msra.mxu0 0.0
  %210 = vmatprep.subr.mxu0 0.0
  %211 = vmatpush1.msra.mxu0 0.0
  %212 = vmatprep.subr.mxu0 0.0
  %213 = vmatpush1.msra.mxu0 0.0
  %214 = vmatprep.subr.mxu0 0.0
  %215 = vmatpush1.msra.mxu0 0.0
  %216 = vmatprep.mubr.f32.mxu0 0.0
  %217 = vmatmul.mubr.f32.gmra.mrb[0].mxu0 %v126
  %v218 = vpop.f32.mrb[0].mxu0
  %v219 = vadd.f32 %v150, %v218
  %v220 = vpop.f32.mrb[0].mxu0
  %221 = vmatprep.mubr.f32.mxu0 0.0
  %222 = vmatmul.mubr.f32.gmra.mrb[0].mxu0 %v127
  %v223 = vpop.f32.mrb[0].mxu0
  %v224 = vadd.f32 %v150, %v223
  %v225 = vpop.f32.mrb[0].mxu0
  %226 = vmatprep.mubr.f32.mxu0 0.0
  %227 = vmatmul.mubr.f32.gmra.mrb[0].mxu0 %v128
  %v228 = vpop.f32.mrb[0].mxu0
  %v229 = vadd.f32 %v150, %v228
  %v230 = vpop.f32.mrb[0].mxu0
  %231 = vdwg.mxu0
  %232 = vst [vmem:[%s5] sm:$0xff] %v219
  %233 = vst [vmem:[%s5 + $0x8] sm:$0xff] %v224
  %234 = vst [vmem:[%s5 + $0x10] sm:$0x3] %v229
  // Predicated region
  $region22: #{forward.21} parent=0 // pred_check
    _
  $region23: #{forward.21} parent=0 // pred_check_branch
    %236 = sbr.rel (0) target = $region25
  $region24: #{forward.21} parent=0 // pred_region
    _
  $region25: #{forward.21} parent=0 // pred_fallthru
    _
  // Predicated region
  $region26: #{forward.21} parent=0 // pred_check
    _
  $region27: #{forward.21} parent=0 // pred_check_branch
    %238 = sbr.rel (0) target = $region29
  $region28: #{forward.21} parent=0 // pred_region
    _
  $region29: #{forward.21} parent=0 // pred_fallthru
    _

// kernel: forward.14
$region0: #{forward.14}
  #allocation0 [shape = 'u32[]', space=smem, size = 0x4, offset = 0x4, fixed_abs, tag = 'smem constant byte address 0x4 - core index']
  #allocation1 [shape = 'u32[144,128]{1,0:T(1,128)}', space=vmem, size = 0x12000, scoped, tag = 'internal scratch']
  %s0 = inlined_call_operand.vmem [shape: f32[2,4,9,8], index: 0, kind: input, shape index: {}]
  %s1 = inlined_call_operand.vmem [shape: f32[2,4,9,8], index: 1, kind: input, shape index: {}]
  %s2 = inlined_call_operand.vmem [shape: f32[2,4,9,8], index: 2, kind: input, shape index: {}]
  %s3 = inlined_call_operand.vmem [shape: f32[9,9], index: 3, kind: input, shape index: {}]
  %s4 = inlined_call_operand.vmem [shape: f32[2,1,9], index: 4, kind: input, shape index: {}]
  %s5 = inlined_call_operand.vmem [shape: f32[2,4,9,8], index: 5, kind: output, shape index: {}]
  %s6 = sld [smem:[#allocation0]]
  $region53: #{forward.14} parent=0
    _
  %s8 = ssub.s32 1, %s6
  %s9 = scalar_select 0, %s8, %s6
  loop: start=0, step=1, limit=4
  $region2: #{forward.14} parent=0 // loop_pre_header
    _
  $region3: #{forward.14} parent=0 // loop_header
    %s11 = sphi 0, %s15
    %p12 = scmp.ge.s32.totalorder %s11, 4
    %s21 = sphi 0, %s23
    %s24 = sphi 0, %s21
    %s25 = sphi 0, %s24
    %s41 = sphi 0, %s25
    %s47 = sphi 0, %s49
    %s50 = sphi 0, %s47
    %s51 = sphi 0, %s50
    %s67 = sphi 0, %s51
    %s73 = sphi 0, %s75
    %s76 = sphi 0, %s73
    %s77 = sphi 0, %s76
    %s93 = sphi 0, %s77
    %s97 = sphi 0, %s97
    %s99 = sphi 0, %s97
    %s100 = sphi 0, %s99
    %s114 = sphi 0, %s100
    %s120 = sphi 0, %s122
    %s123 = sphi 0, %s120
    %s124 = sphi 0, %s123
    %s140 = sphi 0, %s124
    %s146 = sphi 0, %s148
    %s149 = sphi 0, %s146
    %s150 = sphi 0, %s149
    %s166 = sphi 0, %s150
  $region4: #{forward.14} parent=0 // loop_header_branch
    %14 = sbr.rel (%p12) target = $region8
  $region5: #{forward.14} parent=0 // loop_body
    %s16 = ssub.s32 %s11, 1
    %s17 = ssub.s32 %s11, 2
    %s18 = sadd.s32 %s11, 1
    %s19 = ssub.s32 %s11, %s18
    %p20 = scmp.eq.s32.totalorder %s19, 0
    %s22 = sadd.s32 %s21, 1
    %s23 = scalar_select %p20, %s21, %s22
    %p26 = pneg %p20
    %p27 = scmp.eq.s32.totalorder %s11, 1
    %p28 = por %p26, %p27
    %p29 = scmp.ne.s32.totalorder %s21, %s24
    %p30 = scmp.eq.s32.totalorder %s11, 0
    %p31 = por %p29, %p30
    %p32 = scmp.ne.s32.totalorder %s21, %s24
    %p33 = scmp.eq.s32.totalorder %s16, 1
    %p34 = por %p32, %p33
    %p35 = scmp.ne.s32.totalorder %s24, %s25
    %p36 = scmp.eq.s32.totalorder %s16, 0
    %p37 = por %p35, %p36
    %p38 = scmp.ne.s32.totalorder %s24, %s25
    %p39 = scmp.eq.s32.totalorder %s17, 1
    %p40 = por %p38, %p39
    %p42 = scmp.ne.s32.totalorder %s25, %s41
    %p43 = scmp.eq.s32.totalorder %s17, 0
    %p44 = por %p42, %p43
    %s45 = ssub.s32 %s11, %s18
    %p46 = scmp.eq.s32.totalorder %s45, 0
    %s48 = sadd.s32 %s47, 1
    %s49 = scalar_select %p46, %s47, %s48
    %p52 = pneg %p46
    %p53 = scmp.eq.s32.totalorder %s11, 1
    %p54 = por %p52, %p53
    %p55 = scmp.ne.s32.totalorder %s47, %s50
    %p56 = scmp.eq.s32.totalorder %s11, 0
    %p57 = por %p55, %p56
    %p58 = scmp.ne.s32.totalorder %s47, %s50
    %p59 = scmp.eq.s32.totalorder %s16, 1
    %p60 = por %p58, %p59
    %p61 = scmp.ne.s32.totalorder %s50, %s51
    %p62 = scmp.eq.s32.totalorder %s16, 0
    %p63 = por %p61, %p62
    %p64 = scmp.ne.s32.totalorder %s50, %s51
    %p65 = scmp.eq.s32.totalorder %s17, 1
    %p66 = por %p64, %p65
    %p68 = scmp.ne.s32.totalorder %s51, %s67
    %p69 = scmp.eq.s32.totalorder %s17, 0
    %p70 = por %p68, %p69
    %s71 = ssub.s32 %s11, %s18
    %p72 = scmp.eq.s32.totalorder %s71, 0
    %s74 = sadd.s32 %s73, 1
    %s75 = scalar_select %p72, %s73, %s74
    %p78 = pneg %p72
    %p79 = scmp.eq.s32.totalorder %s11, 1
    %p80 = por %p78, %p79
    %p81 = scmp.ne.s32.totalorder %s73, %s76
    %p82 = scmp.eq.s32.totalorder %s11, 0
    %p83 = por %p81, %p82
    %p84 = scmp.ne.s32.totalorder %s73, %s76
    %p85 = scmp.eq.s32.totalorder %s16, 1
    %p86 = por %p84, %p85
    %p87 = scmp.ne.s32.totalorder %s76, %s77
    %p88 = scmp.eq.s32.totalorder %s16, 0
    %p89 = por %p87, %p88
    %p90 = scmp.ne.s32.totalorder %s76, %s77
    %p91 = scmp.eq.s32.totalorder %s17, 1
    %p92 = por %p90, %p91
    %p94 = scmp.ne.s32.totalorder %s77, %s93
    %p95 = scmp.eq.s32.totalorder %s17, 0
    %p96 = por %p94, %p95
    %s98 = sadd.s32 %s97, 1
    %p101 = scmp.eq.s32.totalorder %s11, 1
    %p102 = scmp.ne.s32.totalorder %s97, %s99
    %p103 = scmp.eq.s32.totalorder %s11, 0
    %p104 = por %p102, %p103
    %p105 = scmp.ne.s32.totalorder %s97, %s99
    %p106 = scmp.eq.s32.totalorder %s16, 1
    %p107 = por %p105, %p106
    %p108 = scmp.ne.s32.totalorder %s99, %s100
    %p109 = scmp.eq.s32.totalorder %s16, 0
    %p110 = por %p108, %p109
    %p111 = scmp.ne.s32.totalorder %s99, %s100
    %p112 = scmp.eq.s32.totalorder %s17, 1
    %p113 = por %p111, %p112
    %p115 = scmp.ne.s32.totalorder %s100, %s114
    %p116 = scmp.eq.s32.totalorder %s17, 0
    %p117 = por %p115, %p116
    %s118 = ssub.s32 %s11, %s18
    %p119 = scmp.eq.s32.totalorder %s118, 0
    %s121 = sadd.s32 %s120, 1
    %s122 = scalar_select %p119, %s120, %s121
    %p125 = pneg %p119
    %p126 = scmp.eq.s32.totalorder %s11, 1
    %p127 = por %p125, %p126
    %p128 = scmp.ne.s32.totalorder %s120, %s123
    %p129 = scmp.eq.s32.totalorder %s11, 0
    %p130 = por %p128, %p129
    %p131 = scmp.ne.s32.totalorder %s120, %s123
    %p132 = scmp.eq.s32.totalorder %s16, 1
    %p133 = por %p131, %p132
    %p134 = scmp.ne.s32.totalorder %s123, %s124
    %p135 = scmp.eq.s32.totalorder %s16, 0
    %p136 = por %p134, %p135
    %p137 = scmp.ne.s32.totalorder %s123, %s124
    %p138 = scmp.eq.s32.totalorder %s17, 1
    %p139 = por %p137, %p138
    %p141 = scmp.ne.s32.totalorder %s124, %s140
    %p142 = scmp.eq.s32.totalorder %s17, 0
    %p143 = por %p141, %p142
    %s144 = ssub.s32 %s11, %s18
    %p145 = scmp.eq.s32.totalorder %s144, 0
    %s147 = sadd.s32 %s146, 1
    %s148 = scalar_select %p145, %s146, %s147
    %p151 = pneg %p145
    %p152 = scmp.eq.s32.totalorder %s11, 1
    %p153 = por %p151, %p152
    %p154 = scmp.ne.s32.totalorder %s146, %s149
    %p155 = scmp.eq.s32.totalorder %s11, 0
    %p156 = por %p154, %p155
    %p157 = scmp.ne.s32.totalorder %s146, %s149
    %p158 = scmp.eq.s32.totalorder %s16, 1
    %p159 = por %p157, %p158
    %p160 = scmp.ne.s32.totalorder %s149, %s150
    %p161 = scmp.eq.s32.totalorder %s16, 0
    %p162 = por %p160, %p161
    %p163 = scmp.ne.s32.totalorder %s149, %s150
    %p164 = scmp.eq.s32.totalorder %s17, 1
    %p165 = por %p163, %p164
    %p167 = scmp.ne.s32.totalorder %s150, %s166
    %p168 = scmp.eq.s32.totalorder %s17, 0
    %p169 = por %p167, %p168
    %p170 = scmp.le.s32.totalorder 1, %s11
    %p171 = scmp.lt.s32.totalorder %s11, 3
    %p172 = pnand %p170, %p171
    %p173 = pneg %p172
    // Predicated region
    $region9: #{forward.14} parent=5 // pred_check
      _
    $region10: #{forward.14} parent=5 // pred_check_branch
      %175 = sbr.rel (%p172) target = $region12
    $region11: #{forward.14} parent=5 // pred_region
      %s176 = ssub.s32 %s11, 1
      // Predicated region
      $region13: #{forward.14} parent=11 // pred_check
        %p177 = pneg %p110
      $region14: #{forward.14} parent=11 // pred_check_branch
        %179 = sbr.rel (%p177) target = $region16
      $region15: #{forward.14} parent=11 // pred_region
        _
      $region16: #{forward.14} parent=11 // pred_fallthru
        _
    $region12: #{forward.14} parent=5 // pred_fallthru
      _
    %p180 = scmp.lt.s32.totalorder %s11, 2
    // Predicated region
    $region17: #{forward.14} parent=5 // pred_check
      %p181 = pneg %p180
    $region18: #{forward.14} parent=5 // pred_check_branch
      %183 = sbr.rel (%p181) target = $region20
    $region19: #{forward.14} parent=5 // pred_region
      // Predicated region
      $region21: #{forward.14} parent=19 // pred_check
        %p184 = pneg %p31
      $region22: #{forward.14} parent=19 // pred_check_branch
        %186 = sbr.rel (%p184) target = $region24
      $region23: #{forward.14} parent=19 // pred_region
        %p187 = scmp.lt.s32.totalorder %s11, 1
        %s188 = scalar_select %p187, %s11, 1
        %s189 = smul.addr %s188, 8
        %s190 = smul.addr %s189, 8
        %s191 = scalar_lea.vmem %s0, %s190
      $region24: #{forward.14} parent=19 // pred_fallthru
        _
      // Predicated region
      $region25: #{forward.14} parent=19 // pred_check
        %p192 = pneg %p57
      $region26: #{forward.14} parent=19 // pred_check_branch
        %194 = sbr.rel (%p192) target = $region28
      $region27: #{forward.14} parent=19 // pred_region
        %p195 = scmp.lt.s32.totalorder %s11, 1
        %s196 = scalar_select %p195, %s11, 1
        %s197 = smul.addr %s196, 8
        %s198 = smul.addr %s197, 8
        %s199 = scalar_lea.vmem %s1, %s198
      $region28: #{forward.14} parent=19 // pred_fallthru
        _
      // Predicated region
      $region29: #{forward.14} parent=19 // pred_check
        %p200 = pneg %p83
      $region30: #{forward.14} parent=19 // pred_check_branch
        %202 = sbr.rel (%p200) target = $region32
      $region31: #{forward.14} parent=19 // pred_region
        %p203 = scmp.lt.s32.totalorder %s11, 1
        %s204 = scalar_select %p203, %s11, 1
        %s205 = smul.addr %s204, 8
        %s206 = smul.addr %s205, 8
        %s207 = scalar_lea.vmem %s2, %s206
      $region32: #{forward.14} parent=19 // pred_fallthru
        _
      // Predicated region
      $region33: #{forward.14} parent=19 // pred_check
        %p208 = pneg %p130
      $region34: #{forward.14} parent=19 // pred_check_branch
        %210 = sbr.rel (%p208) target = $region36
      $region35: #{forward.14} parent=19 // pred_region
        %p211 = scmp.lt.s32.totalorder %s11, 1
        %s212 = scalar_select %p211, %s11, 1
        %s213 = scalar_lea.vmem %s4, %s212
      $region36: #{forward.14} parent=19 // pred_fallthru
        _
    $region20: #{forward.14} parent=5 // pred_fallthru
      _
    %p214 = scmp.le.s32.totalorder 1, %s11
    %p215 = scmp.lt.s32.totalorder %s11, 3
    %p216 = pnand %p214, %p215
    %p217 = pneg %p216
    // Predicated region
    $region37: #{forward.14} parent=5 // pred_check
      _
    $region38: #{forward.14} parent=5 // pred_check_branch
      %219 = sbr.rel (%p216) target = $region40
    $region39: #{forward.14} parent=5 // pred_region
      %s220 = ssub.s32 %s11, 1
      %p221 = scmp.lt.s32.totalorder %s16, 1
      %s222 = scalar_select %p221, %s16, 1
      %s223 = smul.addr %s222, 8
      %s224 = smul.addr %s223, 8
      %s225 = scalar_lea.vmem %s0, %s224
      %p226 = pneg %p37
      %p227 = pneg %p34
      %p228 = scmp.lt.s32.totalorder %s16, 1
      %s229 = scalar_select %p228, %s16, 1
      %s230 = smul.addr %s229, 8
      %s231 = smul.addr %s230, 8
      %s232 = scalar_lea.vmem %s1, %s231
      %p233 = pneg %p63
      %p234 = pneg %p60
      %p235 = scmp.lt.s32.totalorder %s16, 1
      %s236 = scalar_select %p235, %s16, 1
      %s237 = smul.addr %s236, 8
      %s238 = smul.addr %s237, 8
      %s239 = scalar_lea.vmem %s2, %s238
      %p240 = pneg %p89
      %p241 = pneg %p86
      %p242 = pneg %p110
      %p243 = pneg %p107
      %p244 = scmp.lt.s32.totalorder %s16, 1
      %s245 = scalar_select %p244, %s16, 1
      %s246 = scalar_lea.vmem %s4, %s245
      %p247 = pneg %p136
      %p248 = pneg %p133
      %p249 = pneg %p162
      %p250 = pneg %p159
      %p251 = scmp.lt.s32.totalorder %s16, 1
      %s252 = scalar_select %p251, %s16, 1
      %s253 = smul.addr %s252, 8
      %s254 = smul.addr %s253, 8
      %s255 = scalar_lea.vmem %s5, %s254
      %p256 = scmp.lt.s32.totalorder %s16, 1
      %s257 = scalar_select %p256, %s16, 1
      %s258 = smul.addr %s257, 8
      %s259 = smul.addr %s258, 8
      %s260 = scalar_lea.vmem %s0, %s259
      %p261 = scmp.lt.s32.totalorder %s16, 1
      %s262 = scalar_select %p261, %s16, 1
      %s263 = smul.addr %s262, 8
      %s264 = smul.addr %s263, 8
      %s265 = scalar_lea.vmem %s1, %s264
      %p266 = scmp.lt.s32.totalorder %s16, 1
      %s267 = scalar_select %p266, %s16, 1
      %s268 = smul.addr %s267, 8
      %s269 = smul.addr %s268, 8
      %s270 = scalar_lea.vmem %s2, %s269
      %p271 = scmp.lt.s32.totalorder %s16, 1
      %s272 = scalar_select %p271, %s16, 1
      %s273 = scalar_lea.vmem %s4, %s272
      %p274 = scmp.lt.s32.totalorder %s16, 1
      %s275 = scalar_select %p274, %s16, 1
      %s276 = smul.addr %s275, 8
      %s277 = smul.addr %s276, 8
      %s278 = scalar_lea.vmem %s5, %s277
      %v279 = vld [vmem:[%s260] sm:$0xff]
      %v280 = vld [vmem:[%s260 + $0x8] sm:$0x1]
      %v281 = vld [vmem:[%s260 + $0x10] sm:$0xff]
      %v282 = vld [vmem:[%s260 + $0x18] sm:$0x1]
      %v283 = vld [vmem:[%s260 + $0x20] sm:$0xff]
      %v284 = vld [vmem:[%s260 + $0x28] sm:$0x1]
      %v285 = vld [vmem:[%s260 + $0x30] sm:$0xff]
      %v286 = vld [vmem:[%s260 + $0x38] sm:$0x1]
      %v287 = vmul.f32 %v279, 0.35355338
      %v288 = vmul.f32 %v280, 0.35355338
      %v289 = vmul.f32 %v281, 0.35355338
      %v290 = vmul.f32 %v282, 0.35355338
      %v291 = vmul.f32 %v283, 0.35355338
      %v292 = vmul.f32 %v284, 0.35355338
      %v293 = vmul.f32 %v285, 0.35355338
      %v294 = vmul.f32 %v286, 0.35355338
      %v295 = vld [vmem:[%s265] sm:$0xff]
      %v296 = vld [vmem:[%s265 + $0x8] sm:$0x1]
      %v297 = vld [vmem:[%s265 + $0x10] sm:$0xff]
      %v298 = vld [vmem:[%s265 + $0x18] sm:$0x1]
      %v299 = vld [vmem:[%s265 + $0x20] sm:$0xff]
      %v300 = vld [vmem:[%s265 + $0x28] sm:$0x1]
      %v301 = vld [vmem:[%s265 + $0x30] sm:$0xff]
      %v302 = vld [vmem:[%s265 + $0x38] sm:$0x1]
      %v303 = vld [vmem:[%s270] sm:$0xff]
      %v304 = vld [vmem:[%s270 + $0x8] sm:$0x1]
      %v305 = vld [vmem:[%s270 + $0x10] sm:$0xff]
      %v306 = vld [vmem:[%s270 + $0x18] sm:$0x1]
      %v307 = vld [vmem:[%s270 + $0x20] sm:$0xff]
      %v308 = vld [vmem:[%s270 + $0x28] sm:$0x1]
      %v309 = vld [vmem:[%s270 + $0x30] sm:$0xff]
      %v310 = vld [vmem:[%s270 + $0x38] sm:$0x1]
      %v311 = vld [vmem:[%s3] sm:$0xff]
      %v312 = vld [vmem:[%s3 + $0x8] sm:$0x1]
      %v313 = vld [vmem:[%s273] sm:$0x1]
      %v315 = vlaneseq
      %v316 = vshrl.u32 %v315, 7
      %v317 = vsub.s32 0, %v316
      %v318 = vrot.slane %v313, %v317
      %v320 = vadd.f32 %v311, %v318
      %v321 = vadd.f32 %v312, %v318
      %vm322 = vcmask 64512
      %v324 = vsel %vm322, %v287, 0
      %v327 = vsel %vm322, %v288, 0
      %v330 = vsel %vm322, %v295, 0
      %v333 = vsel %vm322, %v296, 0
      %335 = vmatprep.subr.mxu0 0.0
      %336 = vmatpush1.xpose.msra.mxu0 %v330
      %337 = vmatprep.subr.mxu0 0.0
      %338 = vmatpush1.xpose.msra.mxu0 %v333
      %339 = vmatprep.subr.mxu0 0.0
      %340 = vmatpush1.xpose.msra.mxu0 0.0
      %341 = vmatprep.subr.mxu0 0.0
      %342 = vmatpush1.xpose.msra.mxu0 0.0
      %343 = vmatprep.subr.mxu0 0.0
      %344 = vmatpush1.xpose.msra.mxu0 0.0
      %345 = vmatprep.subr.mxu0 0.0
      %346 = vmatpush1.xpose.msra.mxu0 0.0
      %347 = vmatprep.subr.mxu0 0.0
      %348 = vmatpush1.xpose.msra.mxu0 0.0
      %349 = vmatprep.subr.mxu0 0.0
      %350 = vmatpush1.xpose.msra.mxu0 0.0
      %351 = vmatprep.subr.mxu0 0.0
      %352 = vmatpush1.xpose.msra.mxu0 0.0
      %353 = vmatprep.subr.mxu0 0.0
      %354 = vmatpush1.xpose.msra.mxu0 0.0
      %355 = vmatprep.subr.mxu0 0.0
      %356 = vmatpush1.xpose.msra.mxu0 0.0
      %357 = vmatprep.subr.mxu0 0.0
      %358 = vmatpush1.xpose.msra.mxu0 0.0
      %359 = vmatprep.subr.mxu0 0.0
      %360 = vmatpush1.xpose.msra.mxu0 0.0
      %361 = vmatprep.subr.mxu0 0.0
      %362 = vmatpush1.xpose.msra.mxu0 0.0
      %363 = vmatprep.subr.mxu0 0.0
      %364 = vmatpush1.xpose.msra.mxu0 0.0
      %365 = vmatprep.subr.mxu0 0.0
      %366 = vmatpush1.xpose.msra.mxu0 0.0
      %367 = vmatprep.subr.mxu0 0.0
      %368 = vmatpush1.xpose.msra.mxu0 0.0
      %369 = vmatprep.subr.mxu0 0.0
      %370 = vmatpush1.xpose.msra.mxu0 0.0
      %371 = vmatprep.subr.mxu0 0.0
      %372 = vmatpush1.xpose.msra.mxu0 0.0
      %373 = vmatprep.subr.mxu0 0.0
      %374 = vmatpush1.xpose.msra.mxu0 0.0
      %375 = vmatprep.subr.mxu0 0.0
      %376 = vmatpush1.xpose.msra.mxu0 0.0
      %377 = vmatprep.subr.mxu0 0.0
      %378 = vmatpush1.xpose.msra.mxu0 0.0
      %379 = vmatprep.subr.mxu0 0.0
      %380 = vmatpush1.xpose.msra.mxu0 0.0
      %381 = vmatprep.subr.mxu0 0.0
      %382 = vmatpush1.xpose.msra.mxu0 0.0
      %383 = vmatprep.subr.mxu0 0.0
      %384 = vmatpush1.xpose.msra.mxu0 0.0
      %385 = vmatprep.subr.mxu0 0.0
      %386 = vmatpush1.xpose.msra.mxu0 0.0
      %387 = vmatprep.subr.mxu0 0.0
      %388 = vmatpush1.xpose.msra.mxu0 0.0
      %389 = vmatprep.subr.mxu0 0.0
      %390 = vmatpush1.xpose.msra.mxu0 0.0
      %391 = vmatprep.subr.mxu0 0.0
      %392 = vmatpush1.xpose.msra.mxu0 0.0
      %393 = vmatprep.subr.mxu0 0.0
      %394 = vmatpush1.xpose.msra.mxu0 0.0
      %395 = vmatprep.subr.mxu0 0.0
      %396 = vmatpush1.xpose.msra.mxu0 0.0
      %397 = vmatprep.subr.mxu0 0.0
      %398 = vmatpush1.xpose.msra.mxu0 0.0
      %399 = vmatprep.mubr.f32.mxu0 0.0
      %400 = vmatmul.mubr.f32.gmra.mrb[0].mxu0 %v324
      %v401 = vpop.f32.mrb[0].mxu0
      %v402 = vadd.f32 %v320, %v401
      %v403 = vpop.f32.mrb[0].mxu0
      %404 = vmatprep.mubr.f32.mxu0 0.0
      %405 = vmatmul.mubr.f32.gmra.mrb[0].mxu0 %v327
      %v406 = vpop.f32.mrb[0].mxu0
      %v407 = vadd.f32 %v321, %v406
      %v408 = vpop.f32.mrb[0].mxu0
      %409 = vdwg.mxu0
      %v411 = vsel %vm322, %v289, 0
      %v414 = vsel %vm322, %v290, 0
      %v417 = vsel %vm322, %v297, 0
      %v420 = vsel %vm322, %v298, 0
      %422 = vmatprep.subr.mxu0 0.0
      %423 = vmatpush1.xpose.msra.mxu0 %v417
      %424 = vmatprep.subr.mxu0 0.0
      %425 = vmatpush1.xpose.msra.mxu0 %v420
      %426 = vmatprep.subr.mxu0 0.0
      %427 = vmatpush1.xpose.msra.mxu0 0.0
      %428 = vmatprep.subr.mxu0 0.0
      %429 = vmatpush1.xpose.msra.mxu0 0.0
      %430 = vmatprep.subr.mxu0 0.0
      %431 = vmatpush1.xpose.msra.mxu0 0.0
      %432 = vmatprep.subr.mxu0 0.0
      %433 = vmatpush1.xpose.msra.mxu0 0.0
      %434 = vmatprep.subr.mxu0 0.0
      %435 = vmatpush1.xpose.msra.mxu0 0.0
      %436 = vmatprep.subr.mxu0 0.0
      %437 = vmatpush1.xpose.msra.mxu0 0.0
      %438 = vmatprep.subr.mxu0 0.0
      %439 = vmatpush1.xpose.msra.mxu0 0.0
      %440 = vmatprep.subr.mxu0 0.0
      %441 = vmatpush1.xpose.msra.mxu0 0.0
      %442 = vmatprep.subr.mxu0 0.0
      %443 = vmatpush1.xpose.msra.mxu0 0.0
      %444 = vmatprep.subr.mxu0 0.0
      %445 = vmatpush1.xpose.msra.mxu0 0.0
      %446 = vmatprep.subr.mxu0 0.0
      %447 = vmatpush1.xpose.msra.mxu0 0.0
      %448 = vmatprep.subr.mxu0 0.0
      %449 = vmatpush1.xpose.msra.mxu0 0.0
      %450 = vmatprep.subr.mxu0 0.0
      %451 = vmatpush1.xpose.msra.mxu0 0.0
      %452 = vmatprep.subr.mxu0 0.0
      %453 = vmatpush1.xpose.msra.mxu0 0.0
      %454 = vmatprep.subr.mxu0 0.0
      %455 = vmatpush1.xpose.msra.mxu0 0.0
      %456 = vmatprep.subr.mxu0 0.0
      %457 = vmatpush1.xpose.msra.mxu0 0.0
      %458 = vmatprep.subr.mxu0 0.0
      %459 = vmatpush1.xpose.msra.mxu0 0.0
      %460 = vmatprep.subr.mxu0 0.0
      %461 = vmatpush1.xpose.msra.mxu0 0.0
      %462 = vmatprep.subr.mxu0 0.0
      %463 = vmatpush1.xpose.msra.mxu0 0.0
      %464 = vmatprep.subr.mxu0 0.0
      %465 = vmatpush1.xpose.msra.mxu0 0.0
      %466 = vmatprep.subr.mxu0 0.0
      %467 = vmatpush1.xpose.msra.mxu0 0.0
      %468 = vmatprep.subr.mxu0 0.0
      %469 = vmatpush1.xpose.msra.mxu0 0.0
      %470 = vmatprep.subr.mxu0 0.0
      %471 = vmatpush1.xpose.msra.mxu0 0.0
      %472 = vmatprep.subr.mxu0 0.0
      %473 = vmatpush1.xpose.msra.mxu0 0.0
      %474 = vmatprep.subr.mxu0 0.0
      %475 = vmatpush1.xpose.msra.mxu0 0.0
      %476 = vmatprep.subr.mxu0 0.0
      %477 = vmatpush1.xpose.msra.mxu0 0.0
      %478 = vmatprep.subr.mxu0 0.0
      %479 = vmatpush1.xpose.msra.mxu0 0.0
      %480 = vmatprep.subr.mxu0 0.0
      %481 = vmatpush1.xpose.msra.mxu0 0.0
      %482 = vmatprep.subr.mxu0 0.0
      %483 = vmatpush1.xpose.msra.mxu0 0.0
      %484 = vmatprep.subr.mxu0 0.0
      %485 = vmatpush1.xpose.msra.mxu0 0.0
      %486 = vmatprep.mubr.f32.mxu0 0.0
      %487 = vmatmul.mubr.f32.gmra.mrb[0].mxu0 %v411
      %v488 = vpop.f32.mrb[0].mxu0
      %v489 = vadd.f32 %v320, %v488
      %v490 = vpop.f32.mrb[0].mxu0
      %491 = vmatprep.mubr.f32.mxu0 0.0
      %492 = vmatmul.mubr.f32.gmra.mrb[0].mxu0 %v414
      %v493 = vpop.f32.mrb[0].mxu0
      %v494 = vadd.f32 %v321, %v493
      %v495 = vpop.f32.mrb[0].mxu0
      %496 = vdwg.mxu0
      %v498 = vsel %vm322, %v291, 0
      %v501 = vsel %vm322, %v292, 0
      %v504 = vsel %vm322, %v299, 0
      %v507 = vsel %vm322, %v300, 0
      %509 = vmatprep.subr.mxu0 0.0
      %510 = vmatpush1.xpose.msra.mxu0 %v504
      %511 = vmatprep.subr.mxu0 0.0
      %512 = vmatpush1.xpose.msra.mxu0 %v507
      %513 = vmatprep.subr.mxu0 0.0
      %514 = vmatpush1.xpose.msra.mxu0 0.0
      %515 = vmatprep.subr.mxu0 0.0
      %516 = vmatpush1.xpose.msra.mxu0 0.0
      %517 = vmatprep.subr.mxu0 0.0
      %518 = vmatpush1.xpose.msra.mxu0 0.0
      %519 = vmatprep.subr.mxu0 0.0
      %520 = vmatpush1.xpose.msra.mxu0 0.0
      %521 = vmatprep.subr.mxu0 0.0
      %522 = vmatpush1.xpose.msra.mxu0 0.0
      %523 = vmatprep.subr.mxu0 0.0
      %524 = vmatpush1.xpose.msra.mxu0 0.0
      %525 = vmatprep.subr.mxu0 0.0
      %526 = vmatpush1.xpose.msra.mxu0 0.0
      %527 = vmatprep.subr.mxu0 0.0
      %528 = vmatpush1.xpose.msra.mxu0 0.0
      %529 = vmatprep.subr.mxu0 0.0
      %530 = vmatpush1.xpose.msra.mxu0 0.0
      %531 = vmatprep.subr.mxu0 0.0
      %532 = vmatpush1.xpose.msra.mxu0 0.0
      %533 = vmatprep.subr.mxu0 0.0
      %534 = vmatpush1.xpose.msra.mxu0 0.0
      %535 = vmatprep.subr.mxu0 0.0
      %536 = vmatpush1.xpose.msra.mxu0 0.0
      %537 = vmatprep.subr.mxu0 0.0
      %538 = vmatpush1.xpose.msra.mxu0 0.0
      %539 = vmatprep.subr.mxu0 0.0
      %540 = vmatpush1.xpose.msra.mxu0 0.0
      %541 = vmatprep.subr.mxu0 0.0
      %542 = vmatpush1.xpose.msra.mxu0 0.0
      %543 = vmatprep.subr.mxu0 0.0
      %544 = vmatpush1.xpose.msra.mxu0 0.0
      %545 = vmatprep.subr.mxu0 0.0
      %546 = vmatpush1.xpose.msra.mxu0 0.0
      %547 = vmatprep.subr.mxu0 0.0
      %548 = vmatpush1.xpose.msra.mxu0 0.0
      %549 = vmatprep.subr.mxu0 0.0
      %550 = vmatpush1.xpose.msra.mxu0 0.0
      %551 = vmatprep.subr.mxu0 0.0
      %552 = vmatpush1.xpose.msra.mxu0 0.0
      %553 = vmatprep.subr.mxu0 0.0
      %554 = vmatpush1.xpose.msra.mxu0 0.0
      %555 = vmatprep.subr.mxu0 0.0
      %556 = vmatpush1.xpose.msra.mxu0 0.0
      %557 = vmatprep.subr.mxu0 0.0
      %558 = vmatpush1.xpose.msra.mxu0 0.0
      %559 = vmatprep.subr.mxu0 0.0
      %560 = vmatpush1.xpose.msra.mxu0 0.0
      %561 = vmatprep.subr.mxu0 0.0
      %562 = vmatpush1.xpose.msra.mxu0 0.0
      %563 = vmatprep.subr.mxu0 0.0
      %564 = vmatpush1.xpose.msra.mxu0 0.0
      %565 = vmatprep.subr.mxu0 0.0
      %566 = vmatpush1.xpose.msra.mxu0 0.0
      %567 = vmatprep.subr.mxu0 0.0
      %568 = vmatpush1.xpose.msra.mxu0 0.0
      %569 = vmatprep.subr.mxu0 0.0
      %570 = vmatpush1.xpose.msra.mxu0 0.0
      %571 = vmatprep.subr.mxu0 0.0
      %572 = vmatpush1.xpose.msra.mxu0 0.0
      %573 = vmatprep.mubr.f32.mxu0 0.0
      %574 = vmatmul.mubr.f32.gmra.mrb[0].mxu0 %v498
      %v575 = vpop.f32.mrb[0].mxu0
      %v576 = vadd.f32 %v320, %v575
      %v577 = vpop.f32.mrb[0].mxu0
      %578 = vmatprep.mubr.f32.mxu0 0.0
      %579 = vmatmul.mubr.f32.gmra.mrb[0].mxu0 %v501
      %v580 = vpop.f32.mrb[0].mxu0
      %v581 = vadd.f32 %v321, %v580
      %v582 = vpop.f32.mrb[0].mxu0
      %583 = vdwg.mxu0
      %v585 = vsel %vm322, %v293, 0
      %v588 = vsel %vm322, %v294, 0
      %v591 = vsel %vm322, %v301, 0
      %v594 = vsel %vm322, %v302, 0
      %596 = vmatprep.subr.mxu0 0.0
      %597 = vmatpush1.xpose.msra.mxu0 %v591
      %598 = vmatprep.subr.mxu0 0.0
      %599 = vmatpush1.xpose.msra.mxu0 %v594
      %600 = vmatprep.subr.mxu0 0.0
      %601 = vmatpush1.xpose.msra.mxu0 0.0
      %602 = vmatprep.subr.mxu0 0.0
      %603 = vmatpush1.xpose.msra.mxu0 0.0
      %604 = vmatprep.subr.mxu0 0.0
      %605 = vmatpush1.xpose.msra.mxu0 0.0
      %606 = vmatprep.subr.mxu0 0.0
      %607 = vmatpush1.xpose.msra.mxu0 0.0
      %608 = vmatprep.subr.mxu0 0.0
      %609 = vmatpush1.xpose.msra.mxu0 0.0
      %610 = vmatprep.subr.mxu0 0.0
      %611 = vmatpush1.xpose.msra.mxu0 0.0
      %612 = vmatprep.subr.mxu0 0.0
      %613 = vmatpush1.xpose.msra.mxu0 0.0
      %614 = vmatprep.subr.mxu0 0.0
      %615 = vmatpush1.xpose.msra.mxu0 0.0
      %616 = vmatprep.subr.mxu0 0.0
      %617 = vmatpush1.xpose.msra.mxu0 0.0
      %618 = vmatprep.subr.mxu0 0.0
      %619 = vmatpush1.xpose.msra.mxu0 0.0
      %620 = vmatprep.subr.mxu0 0.0
      %621 = vmatpush1.xpose.msra.mxu0 0.0
      %622 = vmatprep.subr.mxu0 0.0
      %623 = vmatpush1.xpose.msra.mxu0 0.0
      %624 = vmatprep.subr.mxu0 0.0
      %625 = vmatpush1.xpose.msra.mxu0 0.0
      %626 = vmatprep.subr.mxu0 0.0
      %627 = vmatpush1.xpose.msra.mxu0 0.0
      %628 = vmatprep.subr.mxu0 0.0
      %629 = vmatpush1.xpose.msra.mxu0 0.0
      %630 = vmatprep.subr.mxu0 0.0
      %631 = vmatpush1.xpose.msra.mxu0 0.0
      %632 = vmatprep.subr.mxu0 0.0
      %633 = vmatpush1.xpose.msra.mxu0 0.0
      %634 = vmatprep.subr.mxu0 0.0
      %635 = vmatpush1.xpose.msra.mxu0 0.0
      %636 = vmatprep.subr.mxu0 0.0
      %637 = vmatpush1.xpose.msra.mxu0 0.0
      %638 = vmatprep.subr.mxu0 0.0
      %639 = vmatpush1.xpose.msra.mxu0 0.0
      %640 = vmatprep.subr.mxu0 0.0
      %641 = vmatpush1.xpose.msra.mxu0 0.0
      %642 = vmatprep.subr.mxu0 0.0
      %643 = vmatpush1.xpose.msra.mxu0 0.0
      %644 = vmatprep.subr.mxu0 0.0
      %645 = vmatpush1.xpose.msra.mxu0 0.0
      %646 = vmatprep.subr.mxu0 0.0
      %647 = vmatpush1.xpose.msra.mxu0 0.0
      %648 = vmatprep.subr.mxu0 0.0
      %649 = vmatpush1.xpose.msra.mxu0 0.0
      %650 = vmatprep.subr.mxu0 0.0
      %651 = vmatpush1.xpose.msra.mxu0 0.0
      %652 = vmatprep.subr.mxu0 0.0
      %653 = vmatpush1.xpose.msra.mxu0 0.0
      %654 = vmatprep.subr.mxu0 0.0
      %655 = vmatpush1.xpose.msra.mxu0 0.0
      %656 = vmatprep.subr.mxu0 0.0
      %657 = vmatpush1.xpose.msra.mxu0 0.0
      %658 = vmatprep.subr.mxu0 0.0
      %659 = vmatpush1.xpose.msra.mxu0 0.0
      %660 = vmatprep.mubr.f32.mxu0 0.0
      %661 = vmatmul.mubr.f32.gmra.mrb[0].mxu0 %v585
      %v662 = vpop.f32.mrb[0].mxu0
      %v663 = vadd.f32 %v320, %v662
      %v664 = vpop.f32.mrb[0].mxu0
      %665 = vmatprep.mubr.f32.mxu0 0.0
      %666 = vmatmul.mubr.f32.gmra.mrb[0].mxu0 %v588
      %v667 = vpop.f32.mrb[0].mxu0
      %v668 = vadd.f32 %v321, %v667
      %v669 = vpop.f32.mrb[0].mxu0
      %670 = vdwg.mxu0
      %vm671 = vcmask 72704
      %v672 = vsel %vm671, %v402, -inf
      %673 = vmax.xlane.f32.xlu0 %v672
      %v674 = vpop.xlane.xlu0 %673
      %vm675 = vcmask 65536
      %v676 = vsel %vm675, %v407, -inf
      %677 = vmax.xlane.f32.xlu0 %v676
      %v678 = vpop.xlane.xlu0 %677
      %v679 = vsel %vm671, %v489, -inf
      %680 = vmax.xlane.f32.xlu0 %v679
      %v681 = vpop.xlane.xlu0 %680
      %v682 = vsel %vm675, %v494, -inf
      %683 = vmax.xlane.f32.xlu0 %v682
      %v684 = vpop.xlane.xlu0 %683
      %v685 = vsel %vm671, %v576, -inf
      %686 = vmax.xlane.f32.xlu0 %v685
      %v687 = vpop.xlane.xlu0 %686
      %v688 = vsel %vm675, %v581, -inf
      %689 = vmax.xlane.f32.xlu0 %v688
      %v690 = vpop.xlane.xlu0 %689
      %v691 = vsel %vm671, %v663, -inf
      %692 = vmax.xlane.f32.xlu0 %v691
      %v693 = vpop.xlane.xlu0 %692
      %v694 = vsel %vm675, %v668, -inf
      %695 = vmax.xlane.f32.xlu0 %v694
      %v696 = vpop.xlane.xlu0 %695
      %v697 = vsub.f32 %v402, %v674
      %v698 = vsub.f32 %v407, %v678
      %v699 = vsub.f32 %v489, %v681
      %v700 = vsub.f32 %v494, %v684
      %v701 = vsub.f32 %v576, %v687
      %v702 = vsub.f32 %v581, %v690
      %v703 = vsub.f32 %v663, %v693
      %v704 = vsub.f32 %v668, %v696
      %v705 = vmul.f32 %v697, 1.442695
      %v706 = vpow.pop %v705
      %v707 = vmul.f32 %v698, 1.442695
      %v708 = vpow.pop %v707
      %v709 = vmul.f32 %v699, 1.442695
      %v710 = vpow.pop %v709
      %v711 = vmul.f32 %v700, 1.442695
      %v712 = vpow.pop %v711
      %v713 = vmul.f32 %v701, 1.442695
      %v714 = vpow.pop %v713
      %v715 = vmul.f32 %v702, 1.442695
      %v716 = vpow.pop %v715
      %v717 = vmul.f32 %v703, 1.442695
      %v718 = vpow.pop %v717
      %v719 = vmul.f32 %v704, 1.442695
      %v720 = vpow.pop %v719
      %v721 = vsel %vm671, %v706, 0.0
      %722 = vadd.xlane.f32.xlu0 %v721
      %v723 = vpop.xlane.xlu0 %722
      %v724 = vsel %vm675, %v708, 0.0
      %725 = vadd.xlane.f32.xlu0 %v724
      %v726 = vpop.xlane.xlu0 %725
      %v727 = vsel %vm671, %v710, 0.0
      %728 = vadd.xlane.f32.xlu0 %v727
      %v729 = vpop.xlane.xlu0 %728
      %v730 = vsel %vm675, %v712, 0.0
      %731 = vadd.xlane.f32.xlu0 %v730
      %v732 = vpop.xlane.xlu0 %731
      %v733 = vsel %vm671, %v714, 0.0
      %734 = vadd.xlane.f32.xlu0 %v733
      %v735 = vpop.xlane.xlu0 %734
      %v736 = vsel %vm675, %v716, 0.0
      %737 = vadd.xlane.f32.xlu0 %v736
      %v738 = vpop.xlane.xlu0 %737
      %v739 = vsel %vm671, %v718, 0.0
      %740 = vadd.xlane.f32.xlu0 %v739
      %v741 = vpop.xlane.xlu0 %740
      %v742 = vsel %vm675, %v720, 0.0
      %743 = vadd.xlane.f32.xlu0 %v742
      %v744 = vpop.xlane.xlu0 %743
      %v745 = vrcp.pop %v723
      %v746 = vrcp.pop %v726
      %v747 = vrcp.pop %v729
      %v748 = vrcp.pop %v732
      %v749 = vrcp.pop %v735
      %v750 = vrcp.pop %v738
      %v751 = vrcp.pop %v741
      %v752 = vrcp.pop %v744
      %v753 = vmul.f32 %v706, %v745
      %v754 = vmul.f32 %v708, %v746
      %v755 = vmul.f32 %v710, %v747
      %v756 = vmul.f32 %v712, %v748
      %v757 = vmul.f32 %v714, %v749
      %v758 = vmul.f32 %v716, %v750
      %v759 = vmul.f32 %v718, %v751
      %v760 = vmul.f32 %v720, %v752
      %v762 = vsel %vm671, %v753, 0
      %v765 = vsel %vm671, %v754, 0
      %vm767 = vcmask 1040384
      %v769 = vsel %vm767, %v304, 0
      %771 = vmatprep.subr.mxu0 0.0
      %772 = vmatpush1.msra.mxu0 %v303
      %773 = vmatprep.subr.mxu0 0.0
      %774 = vmatpush1.msra.mxu0 %v769
      %775 = vmatprep.subr.mxu0 0.0
      %776 = vmatpush1.msra.mxu0 0.0
      %777 = vmatprep.subr.mxu0 0.0
      %778 = vmatpush1.msra.mxu0 0.0
      %779 = vmatprep.subr.mxu0 0.0
      %780 = vmatpush1.msra.mxu0 0.0
      %781 = vmatprep.subr.mxu0 0.0
      %782 = vmatpush1.msra.mxu0 0.0
      %783 = vmatprep.subr.mxu0 0.0
      %784 = vmatpush1.msra.mxu0 0.0
      %785 = vmatprep.subr.mxu0 0.0
      %786 = vmatpush1.msra.mxu0 0.0
      %787 = vmatprep.subr.mxu0 0.0
      %788 = vmatpush1.msra.mxu0 0.0
      %789 = vmatprep.subr.mxu0 0.0
      %790 = vmatpush1.msra.mxu0 0.0
      %791 = vmatprep.subr.mxu0 0.0
      %792 = vmatpush1.msra.mxu0 0.0
      %793 = vmatprep.subr.mxu0 0.0
      %794 = vmatpush1.msra.mxu0 0.0
      %795 = vmatprep.subr.mxu0 0.0
      %796 = vmatpush1.msra.mxu0 0.0
      %797 = vmatprep.subr.mxu0 0.0
      %798 = vmatpush1.msra.mxu0 0.0
      %799 = vmatprep.subr.mxu0 0.0
      %800 = vmatpush1.msra.mxu0 0.0
      %801 = vmatprep.subr.mxu0 0.0
      %802 = vmatpush1.msra.mxu0 0.0
      %803 = vmatprep.subr.mxu0 0.0
      %804 = vmatpush1.msra.mxu0 0.0
      %805 = vmatprep.subr.mxu0 0.0
      %806 = vmatpush1.msra.mxu0 0.0
      %807 = vmatprep.subr.mxu0 0.0
      %808 = vmatpush1.msra.mxu0 0.0
      %809 = vmatprep.subr.mxu0 0.0
      %810 = vmatpush1.msra.mxu0 0.0
      %811 = vmatprep.subr.mxu0 0.0
      %812 = vmatpush1.msra.mxu0 0.0
      %813 = vmatprep.subr.mxu0 0.0
      %814 = vmatpush1.msra.mxu0 0.0
      %815 = vmatprep.subr.mxu0 0.0
      %816 = vmatpush1.msra.mxu0 0.0
      %817 = vmatprep.subr.mxu0 0.0
      %818 = vmatpush1.msra.mxu0 0.0
      %819 = vmatprep.subr.mxu0 0.0
      %820 = vmatpush1.msra.mxu0 0.0
      %821 = vmatprep.subr.mxu0 0.0
      %822 = vmatpush1.msra.mxu0 0.0
      %823 = vmatprep.subr.mxu0 0.0
      %824 = vmatpush1.msra.mxu0 0.0
      %825 = vmatprep.subr.mxu0 0.0
      %826 = vmatpush1.msra.mxu0 0.0
      %827 = vmatprep.subr.mxu0 0.0
      %828 = vmatpush1.msra.mxu0 0.0
      %829 = vmatprep.subr.mxu0 0.0
      %830 = vmatpush1.msra.mxu0 0.0
      %831 = vmatprep.subr.mxu0 0.0
      %832 = vmatpush1.msra.mxu0 0.0
      %833 = vmatprep.subr.mxu0 0.0
      %834 = vmatpush1.msra.mxu0 0.0
      %835 = vmatprep.mubr.f32.mxu0 0.0
      %836 = vmatmul.mubr.f32.gmra.mrb[0].mxu0 %v762
      %v837 = vpop.f32.mrb[0].mxu0
      %v838 = vadd.f32 0.0, %v837
      %v839 = vpop.f32.mrb[0].mxu0
      %840 = vmatprep.mubr.f32.mxu0 0.0
      %841 = vmatmul.mubr.f32.gmra.mrb[0].mxu0 %v765
      %v842 = vpop.f32.mrb[0].mxu0
      %v843 = vadd.f32 0.0, %v842
      %v844 = vpop.f32.mrb[0].mxu0
      %845 = vdwg.mxu0
      %v847 = vsel %vm671, %v755, 0
      %v850 = vsel %vm671, %v756, 0
      %v853 = vsel %vm767, %v306, 0
      %855 = vmatprep.subr.mxu0 0.0
      %856 = vmatpush1.msra.mxu0 %v305
      %857 = vmatprep.subr.mxu0 0.0
      %858 = vmatpush1.msra.mxu0 %v853
      %859 = vmatprep.subr.mxu0 0.0
      %860 = vmatpush1.msra.mxu0 0.0
      %861 = vmatprep.subr.mxu0 0.0
      %862 = vmatpush1.msra.mxu0 0.0
      %863 = vmatprep.subr.mxu0 0.0
      %864 = vmatpush1.msra.mxu0 0.0
      %865 = vmatprep.subr.mxu0 0.0
      %866 = vmatpush1.msra.mxu0 0.0
      %867 = vmatprep.subr.mxu0 0.0
      %868 = vmatpush1.msra.mxu0 0.0
      %869 = vmatprep.subr.mxu0 0.0
      %870 = vmatpush1.msra.mxu0 0.0
      %871 = vmatprep.subr.mxu0 0.0
      %872 = vmatpush1.msra.mxu0 0.0
      %873 = vmatprep.subr.mxu0 0.0
      %874 = vmatpush1.msra.mxu0 0.0
      %875 = vmatprep.subr.mxu0 0.0
      %876 = vmatpush1.msra.mxu0 0.0
      %877 = vmatprep.subr.mxu0 0.0
      %878 = vmatpush1.msra.mxu0 0.0
      %879 = vmatprep.subr.mxu0 0.0
      %880 = vmatpush1.msra.mxu0 0.0
      %881 = vmatprep.subr.mxu0 0.0
      %882 = vmatpush1.msra.mxu0 0.0
      %883 = vmatprep.subr.mxu0 0.0
      %884 = vmatpush1.msra.mxu0 0.0
      %885 = vmatprep.subr.mxu0 0.0
      %886 = vmatpush1.msra.mxu0 0.0
      %887 = vmatprep.subr.mxu0 0.0
      %888 = vmatpush1.msra.mxu0 0.0
      %889 = vmatprep.subr.mxu0 0.0
      %890 = vmatpush1.msra.mxu0 0.0
      %891 = vmatprep.subr.mxu0 0.0
      %892 = vmatpush1.msra.mxu0 0.0
      %893 = vmatprep.subr.mxu0 0.0
      %894 = vmatpush1.msra.mxu0 0.0
      %895 = vmatprep.subr.mxu0 0.0
      %896 = vmatpush1.msra.mxu0 0.0
      %897 = vmatprep.subr.mxu0 0.0
      %898 = vmatpush1.msra.mxu0 0.0
      %899 = vmatprep.subr.mxu0 0.0
      %900 = vmatpush1.msra.mxu0 0.0
      %901 = vmatprep.subr.mxu0 0.0
      %902 = vmatpush1.msra.mxu0 0.0
      %903 = vmatprep.subr.mxu0 0.0
      %904 = vmatpush1.msra.mxu0 0.0
      %905 = vmatprep.subr.mxu0 0.0
      %906 = vmatpush1.msra.mxu0 0.0
      %907 = vmatprep.subr.mxu0 0.0
      %908 = vmatpush1.msra.mxu0 0.0
      %909 = vmatprep.subr.mxu0 0.0
      %910 = vmatpush1.msra.mxu0 0.0
      %911 = vmatprep.subr.mxu0 0.0
      %912 = vmatpush1.msra.mxu0 0.0
      %913 = vmatprep.subr.mxu0 0.0
      %914 = vmatpush1.msra.mxu0 0.0
      %915 = vmatprep.subr.mxu0 0.0
      %916 = vmatpush1.msra.mxu0 0.0
      %917 = vmatprep.subr.mxu0 0.0
      %918 = vmatpush1.msra.mxu0 0.0
      %919 = vmatprep.mubr.f32.mxu0 0.0
      %920 = vmatmul.mubr.f32.gmra.mrb[0].mxu0 %v847
      %v921 = vpop.f32.mrb[0].mxu0
      %v922 = vadd.f32 0.0, %v921
      %v923 = vpop.f32.mrb[0].mxu0
      %924 = vmatprep.mubr.f32.mxu0 0.0
      %925 = vmatmul.mubr.f32.gmra.mrb[0].mxu0 %v850
      %v926 = vpop.f32.mrb[0].mxu0
      %v927 = vadd.f32 0.0, %v926
      %v928 = vpop.f32.mrb[0].mxu0
      %929 = vdwg.mxu0
      %v931 = vsel %vm671, %v757, 0
      %v934 = vsel %vm671, %v758, 0
      %v937 = vsel %vm767, %v308, 0
      %939 = vmatprep.subr.mxu0 0.0
      %940 = vmatpush1.msra.mxu0 %v307
      %941 = vmatprep.subr.mxu0 0.0
      %942 = vmatpush1.msra.mxu0 %v937
      %943 = vmatprep.subr.mxu0 0.0
      %944 = vmatpush1.msra.mxu0 0.0
      %945 = vmatprep.subr.mxu0 0.0
      %946 = vmatpush1.msra.mxu0 0.0
      %947 = vmatprep.subr.mxu0 0.0
      %948 = vmatpush1.msra.mxu0 0.0
      %949 = vmatprep.subr.mxu0 0.0
      %950 = vmatpush1.msra.mxu0 0.0
      %951 = vmatprep.subr.mxu0 0.0
      %952 = vmatpush1.msra.mxu0 0.0
      %953 = vmatprep.subr.mxu0 0.0
      %954 = vmatpush1.msra.mxu0 0.0
      %955 = vmatprep.subr.mxu0 0.0
      %956 = vmatpush1.msra.mxu0 0.0
      %957 = vmatprep.subr.mxu0 0.0
      %958 = vmatpush1.msra.mxu0 0.0
      %959 = vmatprep.subr.mxu0 0.0
      %960 = vmatpush1.msra.mxu0 0.0
      %961 = vmatprep.subr.mxu0 0.0
      %962 = vmatpush1.msra.mxu0 0.0
      %963 = vmatprep.subr.mxu0 0.0
      %964 = vmatpush1.msra.mxu0 0.0
      %965 = vmatprep.subr.mxu0 0.0
      %966 = vmatpush1.msra.mxu0 0.0
      %967 = vmatprep.subr.mxu0 0.0
      %968 = vmatpush1.msra.mxu0 0.0
      %969 = vmatprep.subr.mxu0 0.0
      %970 = vmatpush1.msra.mxu0 0.0
      %971 = vmatprep.subr.mxu0 0.0
      %972 = vmatpush1.msra.mxu0 0.0
      %973 = vmatprep.subr.mxu0 0.0
      %974 = vmatpush1.msra.mxu0 0.0
      %975 = vmatprep.subr.mxu0 0.0
      %976 = vmatpush1.msra.mxu0 0.0
      %977 = vmatprep.subr.mxu0 0.0
      %978 = vmatpush1.msra.mxu0 0.0
      %979 = vmatprep.subr.mxu0 0.0
      %980 = vmatpush1.msra.mxu0 0.0
      %981 = vmatprep.subr.mxu0 0.0
      %982 = vmatpush1.msra.mxu0 0.0
      %983 = vmatprep.subr.mxu0 0.0
      %984 = vmatpush1.msra.mxu0 0.0
      %985 = vmatprep.subr.mxu0 0.0
      %986 = vmatpush1.msra.mxu0 0.0
      %987 = vmatprep.subr.mxu0 0.0
      %988 = vmatpush1.msra.mxu0 0.0
      %989 = vmatprep.subr.mxu0 0.0
      %990 = vmatpush1.msra.mxu0 0.0
      %991 = vmatprep.subr.mxu0 0.0
      %992 = vmatpush1.msra.mxu0 0.0
      %993 = vmatprep.subr.mxu0 0.0
      %994 = vmatpush1.msra.mxu0 0.0
      %995 = vmatprep.subr.mxu0 0.0
      %996 = vmatpush1.msra.mxu0 0.0
      %997 = vmatprep.subr.mxu0 0.0
      %998 = vmatpush1.msra.mxu0 0.0
      %999 = vmatprep.subr.mxu0 0.0
      %1000 = vmatpush1.msra.mxu0 0.0
      %1001 = vmatprep.subr.mxu0 0.0
      %1002 = vmatpush1.msra.mxu0 0.0
      %1003 = vmatprep.mubr.f32.mxu0 0.0
      %1004 = vmatmul.mubr.f32.gmra.mrb[0].mxu0 %v931
      %v1005 = vpop.f32.mrb[0].mxu0
      %v1006 = vadd.f32 0.0, %v1005
      %v1007 = vpop.f32.mrb[0].mxu0
      %1008 = vmatprep.mubr.f32.mxu0 0.0
      %1009 = vmatmul.mubr.f32.gmra.mrb[0].mxu0 %v934
      %v1010 = vpop.f32.mrb[0].mxu0
      %v1011 = vadd.f32 0.0, %v1010
      %v1012 = vpop.f32.mrb[0].mxu0
      %1013 = vdwg.mxu0
      %v1015 = vsel %vm671, %v759, 0
      %v1018 = vsel %vm671, %v760, 0
      %v1021 = vsel %vm767, %v310, 0
      %1023 = vmatprep.subr.mxu0 0.0
      %1024 = vmatpush1.msra.mxu0 %v309
      %1025 = vmatprep.subr.mxu0 0.0
      %1026 = vmatpush1.msra.mxu0 %v1021
      %1027 = vmatprep.subr.mxu0 0.0
      %1028 = vmatpush1.msra.mxu0 0.0
      %1029 = vmatprep.subr.mxu0 0.0
      %1030 = vmatpush1.msra.mxu0 0.0
      %1031 = vmatprep.subr.mxu0 0.0
      %1032 = vmatpush1.msra.mxu0 0.0
      %1033 = vmatprep.subr.mxu0 0.0
      %1034 = vmatpush1.msra.mxu0 0.0
      %1035 = vmatprep.subr.mxu0 0.0
      %1036 = vmatpush1.msra.mxu0 0.0
      %1037 = vmatprep.subr.mxu0 0.0
      %1038 = vmatpush1.msra.mxu0 0.0
      %1039 = vmatprep.subr.mxu0 0.0
      %1040 = vmatpush1.msra.mxu0 0.0
      %1041 = vmatprep.subr.mxu0 0.0
      %1042 = vmatpush1.msra.mxu0 0.0
      %1043 = vmatprep.subr.mxu0 0.0
      %1044 = vmatpush1.msra.mxu0 0.0
      %1045 = vmatprep.subr.mxu0 0.0
      %1046 = vmatpush1.msra.mxu0 0.0
      %1047 = vmatprep.subr.mxu0 0.0
      %1048 = vmatpush1.msra.mxu0 0.0
      %1049 = vmatprep.subr.mxu0 0.0
      %1050 = vmatpush1.msra.mxu0 0.0
      %1051 = vmatprep.subr.mxu0 0.0
      %1052 = vmatpush1.msra.mxu0 0.0
      %1053 = vmatprep.subr.mxu0 0.0
      %1054 = vmatpush1.msra.mxu0 0.0
      %1055 = vmatprep.subr.mxu0 0.0
      %1056 = vmatpush1.msra.mxu0 0.0
      %1057 = vmatprep.subr.mxu0 0.0
      %1058 = vmatpush1.msra.mxu0 0.0
      %1059 = vmatprep.subr.mxu0 0.0
      %1060 = vmatpush1.msra.mxu0 0.0
      %1061 = vmatprep.subr.mxu0 0.0
      %1062 = vmatpush1.msra.mxu0 0.0
      %1063 = vmatprep.subr.mxu0 0.0
      %1064 = vmatpush1.msra.mxu0 0.0
      %1065 = vmatprep.subr.mxu0 0.0
      %1066 = vmatpush1.msra.mxu0 0.0
      %1067 = vmatprep.subr.mxu0 0.0
      %1068 = vmatpush1.msra.mxu0 0.0
      %1069 = vmatprep.subr.mxu0 0.0
      %1070 = vmatpush1.msra.mxu0 0.0
      %1071 = vmatprep.subr.mxu0 0.0
      %1072 = vmatpush1.msra.mxu0 0.0
      %1073 = vmatprep.subr.mxu0 0.0
      %1074 = vmatpush1.msra.mxu0 0.0
      %1075 = vmatprep.subr.mxu0 0.0
      %1076 = vmatpush1.msra.mxu0 0.0
      %1077 = vmatprep.subr.mxu0 0.0
      %1078 = vmatpush1.msra.mxu0 0.0
      %1079 = vmatprep.subr.mxu0 0.0
      %1080 = vmatpush1.msra.mxu0 0.0
      %1081 = vmatprep.subr.mxu0 0.0
      %1082 = vmatpush1.msra.mxu0 0.0
      %1083 = vmatprep.subr.mxu0 0.0
      %1084 = vmatpush1.msra.mxu0 0.0
      %1085 = vmatprep.subr.mxu0 0.0
      %1086 = vmatpush1.msra.mxu0 0.0
      %1087 = vmatprep.mubr.f32.mxu0 0.0
      %1088 = vmatmul.mubr.f32.gmra.mrb[0].mxu0 %v1015
      %v1089 = vpop.f32.mrb[0].mxu0
      %v1090 = vadd.f32 0.0, %v1089
      %v1091 = vpop.f32.mrb[0].mxu0
      %1092 = vmatprep.mubr.f32.mxu0 0.0
      %1093 = vmatmul.mubr.f32.gmra.mrb[0].mxu0 %v1018
      %v1094 = vpop.f32.mrb[0].mxu0
      %v1095 = vadd.f32 0.0, %v1094
      %v1096 = vpop.f32.mrb[0].mxu0
      %1097 = vdwg.mxu0
      %1098 = vst.msk [vmem:[%s278] sm:$0xff] %vm322, %v838
      %vm1099 = vcmask 57344
      %1100 = vst.msk [vmem:[%s278 + $0x8] sm:$0x1] %vm1099, %v843
      %1101 = vst.msk [vmem:[%s278 + $0x10] sm:$0xff] %vm322, %v922
      %1102 = vst.msk [vmem:[%s278 + $0x18] sm:$0x1] %vm1099, %v927
      %1103 = vst.msk [vmem:[%s278 + $0x20] sm:$0xff] %vm322, %v1006
      %1104 = vst.msk [vmem:[%s278 + $0x28] sm:$0x1] %vm1099, %v1011
      %1105 = vst.msk [vmem:[%s278 + $0x30] sm:$0xff] %vm322, %v1090
      %1106 = vst.msk [vmem:[%s278 + $0x38] sm:$0x1] %vm1099, %v1095
      %p1107 = scmp.lt.s32.totalorder %s16, 1
      %s1108 = scalar_select %p1107, %s16, 1
      %s1109 = smul.addr %s1108, 8
      %s1110 = smul.addr %s1109, 8
      %s1111 = scalar_lea.vmem %s5, %s1110
      // Predicated region
      $region41: #{forward.14} parent=39 // pred_check
        %p1112 = pneg %p159
      $region42: #{forward.14} parent=39 // pred_check_branch
        %1114 = sbr.rel (%p1112) target = $region44
      $region43: #{forward.14} parent=39 // pred_region
        _
      $region44: #{forward.14} parent=39 // pred_fallthru
        _
    $region40: #{forward.14} parent=5 // pred_fallthru
      _
    %p1115 = scmp.le.s32.totalorder 2, %s11
    // Predicated region
    $region45: #{forward.14} parent=5 // pred_check
      %p1116 = pneg %p1115
    $region46: #{forward.14} parent=5 // pred_check_branch
      %1118 = sbr.rel (%p1116) target = $region48
    $region47: #{forward.14} parent=5 // pred_region
      %s1119 = ssub.s32 %s11, 2
      // Predicated region
      $region49: #{forward.14} parent=47 // pred_check
        %p1120 = pneg %p165
      $region50: #{forward.14} parent=47 // pred_check_branch
        %1122 = sbr.rel (%p1120) target = $region52
      $region51: #{forward.14} parent=47 // pred_region
        %p1123 = scmp.lt.s32.totalorder %s17, 1
        %s1124 = scalar_select %p1123, %s17, 1
        %s1125 = smul.addr %s1124, 8
        %s1126 = smul.addr %s1125, 8
        %s1127 = scalar_lea.vmem %s5, %s1126
      $region52: #{forward.14} parent=47 // pred_fallthru
        _
    $region48: #{forward.14} parent=5 // pred_fallthru
      _
  $region6: #{forward.14} parent=0 // loop_footer
    %s15 = sadd.s32 1, %s11
  $region7: #{forward.14} parent=0 // loop_footer_branch
    %10 = sbr.rel target = $region3
  $region8: #{forward.14} parent=0 // loop_exit
    _

</llo_original>
